<compile_context>
chip_gen: v7x
topology: tpu7x:2x2x1
jax: 0.10.0
libtpu: 0.0.40
codegen_flags: <defaults>
</compile_context>

<pallas_src>
import jax
import jax.numpy as jnp
from jax.experimental import pallas as pl
from jax.experimental.pallas import tpu as pltpu


# ----------------------------------------------------------------------------
# In-kernel GRU layer
# ----------------------------------------------------------------------------
def _gru_layer(x2d, wih_ref, whh_ref, b_ref, *, T, B, return_seq):
    """One GRU layer over a time-major flattened input.

    x2d     : (T*B, Din) array, row t*B + b == x[t, b, :]
    wih_ref : (3, Din, H) per-gate transposed input weights  (gate order r, z, n)
    whh_ref : (3, H, H)   per-gate transposed hidden weights
    b_ref   : (4, H)      rows = [b_ir+b_hr, b_iz+b_hz, b_in, b_hn]
    returns : (seq (T*B, H) or None, final hidden state (B, H))
    """
    H = whh_ref.shape[1]
    bv = b_ref[...]

    # Input projection for ALL timesteps (off the serial path): one matmul / gate.
    gi_r = jnp.dot(x2d, wih_ref[0], preferred_element_type=jnp.float32) + bv[0:1, :]
    gi_z = jnp.dot(x2d, wih_ref[1], preferred_element_type=jnp.float32) + bv[1:2, :]
    gi_n = jnp.dot(x2d, wih_ref[2], preferred_element_type=jnp.float32) + bv[2:3, :]

    # Loop-invariants hoisted (no per-step weight loads / broadcasts).
    w_hr, w_hz, w_hn = whh_ref[0], whh_ref[1], whh_ref[2]
    b_hn = jnp.broadcast_to(bv[3:4, :], (B, H))

    h = jnp.zeros((B, H), jnp.float32)
    hs = []
    # T is small & static -> fully unrolled, all slice indices static.
    for t in range(T):
        lo = t * B
        gh_r = jnp.dot(h, w_hr, preferred_element_type=jnp.float32)
        gh_z = jnp.dot(h, w_hz, preferred_element_type=jnp.float32)
        gh_n = jnp.dot(h, w_hn, preferred_element_type=jnp.float32)
        r = jax.nn.sigmoid(gi_r[lo:lo + B, :] + gh_r)
        z = jax.nn.sigmoid(gi_z[lo:lo + B, :] + gh_z)
        n = jnp.tanh(gi_n[lo:lo + B, :] + r * (gh_n + b_hn))
        h = (1.0 - z) * n + z * h
        if return_seq:
            hs.append(h)

    seq = jnp.concatenate(hs, axis=0) if return_seq else None
    return seq, h


def _make_kernel(num_layers, T, B):
    """Fused kernel: num_layers GRU layers + FC head, one launch."""

    def kernel(*refs):
        x_ref = refs[0]
        layer_refs = refs[1:1 + 3 * num_layers]
        wfc_ref = refs[1 + 3 * num_layers]
        bfc_ref = refs[2 + 3 * num_layers]
        out_ref = refs[3 + 3 * num_layers]

        x2d = x_ref[...]                                   # (T*B, Din) time-major
        h_last = None
        for l in range(num_layers):
            wih_ref, whh_ref, b_ref = layer_refs[3 * l:3 * l + 3]
            last = (l == num_layers - 1)
            # Top layer: only the final hidden state is needed (no (T*B, H) seq).
            x2d, h_last = _gru_layer(x2d, wih_ref, whh_ref, b_ref,
                                     T=T, B=B, return_seq=not last)

        # FC head on out[:, -1, :] of the top layer.
        out_ref[...] = (
            jnp.dot(h_last, wfc_ref[...], preferred_element_type=jnp.float32)
            + bfc_ref[...]
        )

    return kernel


# ----------------------------------------------------------------------------
# Wrapper
# ----------------------------------------------------------------------------
def _full_spec(shape):
    ndim = len(shape)
    return pl.BlockSpec(shape, lambda i, _nd=ndim: (0,) * _nd)


def pack_params(params):
    """One-time weight repacking (done outside the jitted forward)."""
    packed = []
    for layer in params["gru"]:
        w_ih = layer["w_ih"].astype(jnp.float32)                  # (3H, D)
        w_hh = layer["w_hh"].astype(jnp.float32)                  # (3H, H)
        H = w_hh.shape[1]
        D = w_ih.shape[1]
        b_ih = layer["b_ih"].astype(jnp.float32).reshape(3, H)
        b_hh = layer["b_hh"].astype(jnp.float32).reshape(3, H)

        # per-gate transposed weights, stacked on a leading axis (r, z, n)
        wih_g = jnp.transpose(w_ih.reshape(3, H, D), (0, 2, 1))   # (3, D, H)
        whh_g = jnp.transpose(w_hh.reshape(3, H, H), (0, 2, 1))   # (3, H, H)
        # fold r/z biases; keep b_in (into gi_n) and b_hn (inside n-gate) separate
        b_g = jnp.stack([b_ih[0] + b_hh[0],
                         b_ih[1] + b_hh[1],
                         b_ih[2],
                         b_hh[2]], axis=0)                        # (4, H)
        packed += [wih_g, whh_g, b_g]

    wfc_t = jnp.transpose(params["fc"]["w"]).astype(jnp.float32)  # (H, F)
    bfc = params["fc"]["b"].astype(jnp.float32).reshape(1, -1)    # (1, F)
    packed += [wfc_t, bfc]
    return packed


@jax.jit
def chl_predictor_forward(x_btd, packed):
    """x_btd: (B, T, input_size) float32, batch-first (PyTorch convention)."""
    x = x_btd.astype(jnp.float32)
    B, T, Din = x.shape
    num_layers = (len(packed) - 2) // 3
    H = packed[1].shape[1]
    F = packed[-2].shape[1]

    # time-major flattened input: row t*B + b  (pure layout plumbing, outside kernel)
    x2d = jnp.transpose(x, (1, 0, 2)).reshape(T * B, Din)

    in_specs = [_full_spec((T * B, Din))]
    for l in range(num_layers):
        wih_g, whh_g, b_g = packed[3 * l:3 * l + 3]
        in_specs += [_full_spec(wih_g.shape),
                     _full_spec(whh_g.shape),
                     _full_spec(b_g.shape)]
    in_specs += [_full_spec((H, F)), _full_spec((1, F))]

    kernel = _make_kernel(num_layers, T, B)
    return pl.pallas_call(
        kernel,
        out_shape=jax.ShapeDtypeStruct((B, F), jnp.float32),
        grid=(1,),
        in_specs=in_specs,
        out_specs=_full_spec((B, F)),
        compiler_params=pltpu.CompilerParams(
            dimension_semantics=("arbitrary",),
        ),
    )(x2d, *packed)


# ----------------------------------------------------------------------------
# Parameters (PyTorch-shaped) and pure-JAX reference
# ----------------------------------------------------------------------------
def init_params(key, input_size, hidden_size, num_layers, out_features):
    params = {"gru": [], "fc": None}
    bound = 1.0 / jnp.sqrt(hidden_size)
    for l in range(num_layers):
        d_in = input_size if l == 0 else hidden_size
        key, k1, k2, k3, k4 = jax.random.split(key, 5)
        params["gru"].append({
            "w_ih": jax.random.uniform(k1, (3 * hidden_size, d_in),
                                       jnp.float32, -bound, bound),
            "w_hh": jax.random.uniform(k2, (3 * hidden_size, hidden_size),
                                       jnp.float32, -bound, bound),
            "b_ih": jax.random.uniform(k3, (3 * hidden_size,),
                                       jnp.float32, -bound, bound),
            "b_hh": jax.random.uniform(k4, (3 * hidden_size,),
                                       jnp.float32, -bound, bound),
        })
    key, k1, k2 = jax.random.split(key, 3)
    params["fc"] = {
        "w": jax.random.uniform(k1, (out_features, hidden_size),
                                jnp.float32, -bound, bound),
        "b": jax.random.uniform(k2, (out_features,),
                                jnp.float32, -bound, bound),
    }
    return params


def gru_ref(x_btd, params):
    B, T, _ = x_btd.shape
    seq = x_btd
    for layer in params["gru"]:
        H = layer["w_hh"].shape[1]
        h = jnp.zeros((B, H), jnp.float32)
        outs = []
        for t in range(T):
            x_t = seq[:, t, :]
            gi = x_t @ layer["w_ih"].T + layer["b_ih"]
            gh = h @ layer["w_hh"].T + layer["b_hh"]
            i_r, i_z, i_n = jnp.split(gi, 3, axis=1)
            h_r, h_z, h_n = jnp.split(gh, 3, axis=1)
            r = jax.nn.sigmoid(i_r + h_r)
            z = jax.nn.sigmoid(i_z + h_z)
            n = jnp.tanh(i_n + r * h_n)
            h = (1.0 - z) * n + z * h
            outs.append(h)
        seq = jnp.stack(outs, axis=1)
    return seq[:, -1, :] @ params["fc"]["w"].T + params["fc"]["b"]


# ----------------------------------------------------------------------------
if __name__ == "__main__":
    B, T = 2, 8
    input_size, hidden_size, num_layers, out_features = 4, 32, 2, 1

    key = jax.random.PRNGKey(0)
    key, kx = jax.random.split(key)
    x = jax.random.normal(kx, (B, T, input_size), jnp.float32)

    params = init_params(key, input_size, hidden_size, num_layers, out_features)
    packed = pack_params(params)

    out = chl_predictor_forward(x, packed)
    out = jax.block_until_ready(out)
    assert out.shape == (B, out_features)

    ref = gru_ref(x, params)
    assert jnp.allclose(out, ref, atol=1e-4, rtol=1e-4), (out, ref)

    print("KERNEL_OK")
</pallas_src>

<mosaic_0001>
module attributes {stable_mosaic.version = 11 : i64} {
  func.func @kernel(%arg0: i32, %arg1: memref<16x4xf32, #tpu.memory_space<vmem>>, %arg2: memref<3x4x32xf32, #tpu.memory_space<vmem>>, %arg3: memref<3x32x32xf32, #tpu.memory_space<vmem>>, %arg4: memref<4x32xf32, #tpu.memory_space<vmem>>, %arg5: memref<3x32x32xf32, #tpu.memory_space<vmem>>, %arg6: memref<3x32x32xf32, #tpu.memory_space<vmem>>, %arg7: memref<4x32xf32, #tpu.memory_space<vmem>>, %arg8: memref<32x1xf32, #tpu.memory_space<vmem>>, %arg9: memref<1x1xf32, #tpu.memory_space<vmem>>, %arg10: memref<2x1xf32, #tpu.memory_space<vmem>>) attributes {dimension_semantics = [#tpu.dimension_semantics<arbitrary>], iteration_bounds = array<i64: 1>, scalar_prefetch = 0 : i64, scratch_operands = 0 : i64, tpu.core_type = #tpu.core_type<tc>, window_params = [{pipeline_mode = #tpu.pipeline_mode<synchronous>, transform_indices = @transform_0, window_bounds = array<i64: 16, 4>}, {pipeline_mode = #tpu.pipeline_mode<synchronous>, transform_indices = @transform_1, window_bounds = array<i64: 3, 4, 32>}, {pipeline_mode = #tpu.pipeline_mode<synchronous>, transform_indices = @transform_2, window_bounds = array<i64: 3, 32, 32>}, {pipeline_mode = #tpu.pipeline_mode<synchronous>, transform_indices = @transform_3, window_bounds = array<i64: 4, 32>}, {pipeline_mode = #tpu.pipeline_mode<synchronous>, transform_indices = @transform_4, window_bounds = array<i64: 3, 32, 32>}, {pipeline_mode = #tpu.pipeline_mode<synchronous>, transform_indices = @transform_5, window_bounds = array<i64: 3, 32, 32>}, {pipeline_mode = #tpu.pipeline_mode<synchronous>, transform_indices = @transform_6, window_bounds = array<i64: 4, 32>}, {pipeline_mode = #tpu.pipeline_mode<synchronous>, transform_indices = @transform_7, window_bounds = array<i64: 32, 1>}, {pipeline_mode = #tpu.pipeline_mode<synchronous>, transform_indices = @transform_8, window_bounds = array<i64: 1, 1>}, {pipeline_mode = #tpu.pipeline_mode<synchronous>, transform_indices = @transform_9, window_bounds = array<i64: 2, 1>}]} {
    %c0 = arith.constant 0 : index
    %c0_0 = arith.constant 0 : index
    %0 = vector.load %arg1[%c0, %c0_0] : memref<16x4xf32, #tpu.memory_space<vmem>>, vector<16x4xf32>
    %c0_1 = arith.constant 0 : index
    %c0_2 = arith.constant 0 : index
    %1 = vector.load %arg4[%c0_1, %c0_2] : memref<4x32xf32, #tpu.memory_space<vmem>>, vector<4x32xf32>
    %c0_3 = arith.constant 0 : index
    %c0_4 = arith.constant 0 : index
    %c0_5 = arith.constant 0 : index
    %2 = vector.load %arg2[%c0_3, %c0_4, %c0_5] : memref<3x4x32xf32, #tpu.memory_space<vmem>>, vector<1x4x32xf32>
    %3 = vector.shape_cast %2 : vector<1x4x32xf32> to vector<4x32xf32>
    %cst = arith.constant dense<0.000000e+00> : vector<16x32xf32>
    %4 = tpu.matmul %0, %3, %cst {dimension_numbers = #tpu.dot_dimension_numbers<[1], [0], [0], [1], [0, 0, 1, 1], [], []>} : vector<16x4xf32>, vector<4x32xf32>, vector<16x32xf32> -> vector<16x32xf32>
    %5 = vector.extract_strided_slice %1 {offsets = [0, 0], sizes = [1, 32], strides = [1, 1]} : vector<4x32xf32> to vector<1x32xf32>
    %6 = vector.broadcast %5 : vector<1x32xf32> to vector<16x32xf32>
    %7 = arith.addf %4, %6 : vector<16x32xf32>
    %c1 = arith.constant 1 : index
    %c0_6 = arith.constant 0 : index
    %c0_7 = arith.constant 0 : index
    %8 = vector.load %arg2[%c1, %c0_6, %c0_7] : memref<3x4x32xf32, #tpu.memory_space<vmem>>, vector<1x4x32xf32>
    %9 = vector.shape_cast %8 : vector<1x4x32xf32> to vector<4x32xf32>
    %cst_8 = arith.constant dense<0.000000e+00> : vector<16x32xf32>
    %10 = tpu.matmul %0, %9, %cst_8 {dimension_numbers = #tpu.dot_dimension_numbers<[1], [0], [0], [1], [0, 0, 1, 1], [], []>} : vector<16x4xf32>, vector<4x32xf32>, vector<16x32xf32> -> vector<16x32xf32>
    %11 = vector.extract_strided_slice %1 {offsets = [1, 0], sizes = [1, 32], strides = [1, 1]} : vector<4x32xf32> to vector<1x32xf32>
    %12 = vector.broadcast %11 : vector<1x32xf32> to vector<16x32xf32>
    %13 = arith.addf %10, %12 : vector<16x32xf32>
    %c2 = arith.constant 2 : index
    %c0_9 = arith.constant 0 : index
    %c0_10 = arith.constant 0 : index
    %14 = vector.load %arg2[%c2, %c0_9, %c0_10] : memref<3x4x32xf32, #tpu.memory_space<vmem>>, vector<1x4x32xf32>
    %15 = vector.shape_cast %14 : vector<1x4x32xf32> to vector<4x32xf32>
    %cst_11 = arith.constant dense<0.000000e+00> : vector<16x32xf32>
    %16 = tpu.matmul %0, %15, %cst_11 {dimension_numbers = #tpu.dot_dimension_numbers<[1], [0], [0], [1], [0, 0, 1, 1], [], []>} : vector<16x4xf32>, vector<4x32xf32>, vector<16x32xf32> -> vector<16x32xf32>
    %17 = vector.extract_strided_slice %1 {offsets = [2, 0], sizes = [1, 32], strides = [1, 1]} : vector<4x32xf32> to vector<1x32xf32>
    %18 = vector.broadcast %17 : vector<1x32xf32> to vector<16x32xf32>
    %19 = arith.addf %16, %18 : vector<16x32xf32>
    %c0_12 = arith.constant 0 : index
    %c0_13 = arith.constant 0 : index
    %c0_14 = arith.constant 0 : index
    %20 = vector.load %arg3[%c0_12, %c0_13, %c0_14] : memref<3x32x32xf32, #tpu.memory_space<vmem>>, vector<1x32x32xf32>
    %21 = vector.shape_cast %20 : vector<1x32x32xf32> to vector<32x32xf32>
    %c1_15 = arith.constant 1 : index
    %c0_16 = arith.constant 0 : index
    %c0_17 = arith.constant 0 : index
    %22 = vector.load %arg3[%c1_15, %c0_16, %c0_17] : memref<3x32x32xf32, #tpu.memory_space<vmem>>, vector<1x32x32xf32>
    %23 = vector.shape_cast %22 : vector<1x32x32xf32> to vector<32x32xf32>
    %c2_18 = arith.constant 2 : index
    %c0_19 = arith.constant 0 : index
    %c0_20 = arith.constant 0 : index
    %24 = vector.load %arg3[%c2_18, %c0_19, %c0_20] : memref<3x32x32xf32, #tpu.memory_space<vmem>>, vector<1x32x32xf32>
    %25 = vector.shape_cast %24 : vector<1x32x32xf32> to vector<32x32xf32>
    %26 = vector.extract_strided_slice %1 {offsets = [3, 0], sizes = [1, 32], strides = [1, 1]} : vector<4x32xf32> to vector<1x32xf32>
    %27 = vector.shape_cast %26 : vector<1x32xf32> to vector<1x32xf32>
    %28 = vector.broadcast %27 : vector<1x32xf32> to vector<2x32xf32>
    %cst_21 = arith.constant 0.000000e+00 : f32
    %29 = vector.broadcast %cst_21 : f32 to vector<2x32xf32>
    %cst_22 = arith.constant dense<0.000000e+00> : vector<2x32xf32>
    %30 = tpu.matmul %29, %21, %cst_22 {dimension_numbers = #tpu.dot_dimension_numbers<[1], [0], [0], [1], [0, 0, 1, 1], [], []>} : vector<2x32xf32>, vector<32x32xf32>, vector<2x32xf32> -> vector<2x32xf32>
    %cst_23 = arith.constant dense<0.000000e+00> : vector<2x32xf32>
    %31 = tpu.matmul %29, %23, %cst_23 {dimension_numbers = #tpu.dot_dimension_numbers<[1], [0], [0], [1], [0, 0, 1, 1], [], []>} : vector<2x32xf32>, vector<32x32xf32>, vector<2x32xf32> -> vector<2x32xf32>
    %cst_24 = arith.constant dense<0.000000e+00> : vector<2x32xf32>
    %32 = tpu.matmul %29, %25, %cst_24 {dimension_numbers = #tpu.dot_dimension_numbers<[1], [0], [0], [1], [0, 0, 1, 1], [], []>} : vector<2x32xf32>, vector<32x32xf32>, vector<2x32xf32> -> vector<2x32xf32>
    %33 = vector.extract_strided_slice %7 {offsets = [0, 0], sizes = [2, 32], strides = [1, 1]} : vector<16x32xf32> to vector<2x32xf32>
    %34 = arith.addf %33, %30 : vector<2x32xf32>
    %35 = arith.negf %34 : vector<2x32xf32>
    %36 = math.exp %35 : vector<2x32xf32>
    %cst_25 = arith.constant 1.000000e+00 : f32
    %37 = vector.broadcast %cst_25 : f32 to vector<2x32xf32>
    %38 = arith.addf %37, %36 : vector<2x32xf32>
    %39 = arith.divf %37, %38 : vector<2x32xf32>
    %40 = vector.extract_strided_slice %13 {offsets = [0, 0], sizes = [2, 32], strides = [1, 1]} : vector<16x32xf32> to vector<2x32xf32>
    %41 = arith.addf %40, %31 : vector<2x32xf32>
    %42 = arith.negf %41 : vector<2x32xf32>
    %43 = math.exp %42 : vector<2x32xf32>
    %cst_26 = arith.constant 1.000000e+00 : f32
    %44 = vector.broadcast %cst_26 : f32 to vector<2x32xf32>
    %45 = arith.addf %44, %43 : vector<2x32xf32>
    %46 = arith.divf %44, %45 : vector<2x32xf32>
    %47 = vector.extract_strided_slice %19 {offsets = [0, 0], sizes = [2, 32], strides = [1, 1]} : vector<16x32xf32> to vector<2x32xf32>
    %48 = arith.addf %32, %28 : vector<2x32xf32>
    %49 = arith.mulf %39, %48 : vector<2x32xf32>
    %50 = arith.addf %47, %49 : vector<2x32xf32>
    %51 = math.tanh %50 : vector<2x32xf32>
    %cst_27 = arith.constant 1.000000e+00 : f32
    %52 = vector.broadcast %cst_27 : f32 to vector<2x32xf32>
    %53 = arith.subf %52, %46 : vector<2x32xf32>
    %54 = arith.mulf %53, %51 : vector<2x32xf32>
    %55 = arith.mulf %46, %29 : vector<2x32xf32>
    %56 = arith.addf %54, %55 : vector<2x32xf32>
    %cst_28 = arith.constant dense<0.000000e+00> : vector<2x32xf32>
    %57 = tpu.matmul %56, %21, %cst_28 {dimension_numbers = #tpu.dot_dimension_numbers<[1], [0], [0], [1], [0, 0, 1, 1], [], []>} : vector<2x32xf32>, vector<32x32xf32>, vector<2x32xf32> -> vector<2x32xf32>
    %cst_29 = arith.constant dense<0.000000e+00> : vector<2x32xf32>
    %58 = tpu.matmul %56, %23, %cst_29 {dimension_numbers = #tpu.dot_dimension_numbers<[1], [0], [0], [1], [0, 0, 1, 1], [], []>} : vector<2x32xf32>, vector<32x32xf32>, vector<2x32xf32> -> vector<2x32xf32>
    %cst_30 = arith.constant dense<0.000000e+00> : vector<2x32xf32>
    %59 = tpu.matmul %56, %25, %cst_30 {dimension_numbers = #tpu.dot_dimension_numbers<[1], [0], [0], [1], [0, 0, 1, 1], [], []>} : vector<2x32xf32>, vector<32x32xf32>, vector<2x32xf32> -> vector<2x32xf32>
    %60 = vector.extract_strided_slice %7 {offsets = [2, 0], sizes = [2, 32], strides = [1, 1]} : vector<16x32xf32> to vector<2x32xf32>
    %61 = arith.addf %60, %57 : vector<2x32xf32>
    %62 = arith.negf %61 : vector<2x32xf32>
    %63 = math.exp %62 : vector<2x32xf32>
    %cst_31 = arith.constant 1.000000e+00 : f32
    %64 = vector.broadcast %cst_31 : f32 to vector<2x32xf32>
    %65 = arith.addf %64, %63 : vector<2x32xf32>
    %66 = arith.divf %64, %65 : vector<2x32xf32>
    %67 = vector.extract_strided_slice %13 {offsets = [2, 0], sizes = [2, 32], strides = [1, 1]} : vector<16x32xf32> to vector<2x32xf32>
    %68 = arith.addf %67, %58 : vector<2x32xf32>
    %69 = arith.negf %68 : vector<2x32xf32>
    %70 = math.exp %69 : vector<2x32xf32>
    %cst_32 = arith.constant 1.000000e+00 : f32
    %71 = vector.broadcast %cst_32 : f32 to vector<2x32xf32>
    %72 = arith.addf %71, %70 : vector<2x32xf32>
    %73 = arith.divf %71, %72 : vector<2x32xf32>
    %74 = vector.extract_strided_slice %19 {offsets = [2, 0], sizes = [2, 32], strides = [1, 1]} : vector<16x32xf32> to vector<2x32xf32>
    %75 = arith.addf %59, %28 : vector<2x32xf32>
    %76 = arith.mulf %66, %75 : vector<2x32xf32>
    %77 = arith.addf %74, %76 : vector<2x32xf32>
    %78 = math.tanh %77 : vector<2x32xf32>
    %cst_33 = arith.constant 1.000000e+00 : f32
    %79 = vector.broadcast %cst_33 : f32 to vector<2x32xf32>
    %80 = arith.subf %79, %73 : vector<2x32xf32>
    %81 = arith.mulf %80, %78 : vector<2x32xf32>
    %82 = arith.mulf %73, %56 : vector<2x32xf32>
    %83 = arith.addf %81, %82 : vector<2x32xf32>
    %cst_34 = arith.constant dense<0.000000e+00> : vector<2x32xf32>
    %84 = tpu.matmul %83, %21, %cst_34 {dimension_numbers = #tpu.dot_dimension_numbers<[1], [0], [0], [1], [0, 0, 1, 1], [], []>} : vector<2x32xf32>, vector<32x32xf32>, vector<2x32xf32> -> vector<2x32xf32>
    %cst_35 = arith.constant dense<0.000000e+00> : vector<2x32xf32>
    %85 = tpu.matmul %83, %23, %cst_35 {dimension_numbers = #tpu.dot_dimension_numbers<[1], [0], [0], [1], [0, 0, 1, 1], [], []>} : vector<2x32xf32>, vector<32x32xf32>, vector<2x32xf32> -> vector<2x32xf32>
    %cst_36 = arith.constant dense<0.000000e+00> : vector<2x32xf32>
    %86 = tpu.matmul %83, %25, %cst_36 {dimension_numbers = #tpu.dot_dimension_numbers<[1], [0], [0], [1], [0, 0, 1, 1], [], []>} : vector<2x32xf32>, vector<32x32xf32>, vector<2x32xf32> -> vector<2x32xf32>
    %87 = vector.extract_strided_slice %7 {offsets = [4, 0], sizes = [2, 32], strides = [1, 1]} : vector<16x32xf32> to vector<2x32xf32>
    %88 = arith.addf %87, %84 : vector<2x32xf32>
    %89 = arith.negf %88 : vector<2x32xf32>
    %90 = math.exp %89 : vector<2x32xf32>
    %cst_37 = arith.constant 1.000000e+00 : f32
    %91 = vector.broadcast %cst_37 : f32 to vector<2x32xf32>
    %92 = arith.addf %91, %90 : vector<2x32xf32>
    %93 = arith.divf %91, %92 : vector<2x32xf32>
    %94 = vector.extract_strided_slice %13 {offsets = [4, 0], sizes = [2, 32], strides = [1, 1]} : vector<16x32xf32> to vector<2x32xf32>
    %95 = arith.addf %94, %85 : vector<2x32xf32>
    %96 = arith.negf %95 : vector<2x32xf32>
    %97 = math.exp %96 : vector<2x32xf32>
    %cst_38 = arith.constant 1.000000e+00 : f32
    %98 = vector.broadcast %cst_38 : f32 to vector<2x32xf32>
    %99 = arith.addf %98, %97 : vector<2x32xf32>
    %100 = arith.divf %98, %99 : vector<2x32xf32>
    %101 = vector.extract_strided_slice %19 {offsets = [4, 0], sizes = [2, 32], strides = [1, 1]} : vector<16x32xf32> to vector<2x32xf32>
    %102 = arith.addf %86, %28 : vector<2x32xf32>
    %103 = arith.mulf %93, %102 : vector<2x32xf32>
    %104 = arith.addf %101, %103 : vector<2x32xf32>
    %105 = math.tanh %104 : vector<2x32xf32>
    %cst_39 = arith.constant 1.000000e+00 : f32
    %106 = vector.broadcast %cst_39 : f32 to vector<2x32xf32>
    %107 = arith.subf %106, %100 : vector<2x32xf32>
    %108 = arith.mulf %107, %105 : vector<2x32xf32>
    %109 = arith.mulf %100, %83 : vector<2x32xf32>
    %110 = arith.addf %108, %109 : vector<2x32xf32>
    %cst_40 = arith.constant dense<0.000000e+00> : vector<2x32xf32>
    %111 = tpu.matmul %110, %21, %cst_40 {dimension_numbers = #tpu.dot_dimension_numbers<[1], [0], [0], [1], [0, 0, 1, 1], [], []>} : vector<2x32xf32>, vector<32x32xf32>, vector<2x32xf32> -> vector<2x32xf32>
    %cst_41 = arith.constant dense<0.000000e+00> : vector<2x32xf32>
    %112 = tpu.matmul %110, %23, %cst_41 {dimension_numbers = #tpu.dot_dimension_numbers<[1], [0], [0], [1], [0, 0, 1, 1], [], []>} : vector<2x32xf32>, vector<32x32xf32>, vector<2x32xf32> -> vector<2x32xf32>
    %cst_42 = arith.constant dense<0.000000e+00> : vector<2x32xf32>
    %113 = tpu.matmul %110, %25, %cst_42 {dimension_numbers = #tpu.dot_dimension_numbers<[1], [0], [0], [1], [0, 0, 1, 1], [], []>} : vector<2x32xf32>, vector<32x32xf32>, vector<2x32xf32> -> vector<2x32xf32>
    %114 = vector.extract_strided_slice %7 {offsets = [6, 0], sizes = [2, 32], strides = [1, 1]} : vector<16x32xf32> to vector<2x32xf32>
    %115 = arith.addf %114, %111 : vector<2x32xf32>
    %116 = arith.negf %115 : vector<2x32xf32>
    %117 = math.exp %116 : vector<2x32xf32>
    %cst_43 = arith.constant 1.000000e+00 : f32
    %118 = vector.broadcast %cst_43 : f32 to vector<2x32xf32>
    %119 = arith.addf %118, %117 : vector<2x32xf32>
    %120 = arith.divf %118, %119 : vector<2x32xf32>
    %121 = vector.extract_strided_slice %13 {offsets = [6, 0], sizes = [2, 32], strides = [1, 1]} : vector<16x32xf32> to vector<2x32xf32>
    %122 = arith.addf %121, %112 : vector<2x32xf32>
    %123 = arith.negf %122 : vector<2x32xf32>
    %124 = math.exp %123 : vector<2x32xf32>
    %cst_44 = arith.constant 1.000000e+00 : f32
    %125 = vector.broadcast %cst_44 : f32 to vector<2x32xf32>
    %126 = arith.addf %125, %124 : vector<2x32xf32>
    %127 = arith.divf %125, %126 : vector<2x32xf32>
    %128 = vector.extract_strided_slice %19 {offsets = [6, 0], sizes = [2, 32], strides = [1, 1]} : vector<16x32xf32> to vector<2x32xf32>
    %129 = arith.addf %113, %28 : vector<2x32xf32>
    %130 = arith.mulf %120, %129 : vector<2x32xf32>
    %131 = arith.addf %128, %130 : vector<2x32xf32>
    %132 = math.tanh %131 : vector<2x32xf32>
    %cst_45 = arith.constant 1.000000e+00 : f32
    %133 = vector.broadcast %cst_45 : f32 to vector<2x32xf32>
    %134 = arith.subf %133, %127 : vector<2x32xf32>
    %135 = arith.mulf %134, %132 : vector<2x32xf32>
    %136 = arith.mulf %127, %110 : vector<2x32xf32>
    %137 = arith.addf %135, %136 : vector<2x32xf32>
    %cst_46 = arith.constant dense<0.000000e+00> : vector<2x32xf32>
    %138 = tpu.matmul %137, %21, %cst_46 {dimension_numbers = #tpu.dot_dimension_numbers<[1], [0], [0], [1], [0, 0, 1, 1], [], []>} : vector<2x32xf32>, vector<32x32xf32>, vector<2x32xf32> -> vector<2x32xf32>
    %cst_47 = arith.constant dense<0.000000e+00> : vector<2x32xf32>
    %139 = tpu.matmul %137, %23, %cst_47 {dimension_numbers = #tpu.dot_dimension_numbers<[1], [0], [0], [1], [0, 0, 1, 1], [], []>} : vector<2x32xf32>, vector<32x32xf32>, vector<2x32xf32> -> vector<2x32xf32>
    %cst_48 = arith.constant dense<0.000000e+00> : vector<2x32xf32>
    %140 = tpu.matmul %137, %25, %cst_48 {dimension_numbers = #tpu.dot_dimension_numbers<[1], [0], [0], [1], [0, 0, 1, 1], [], []>} : vector<2x32xf32>, vector<32x32xf32>, vector<2x32xf32> -> vector<2x32xf32>
    %141 = vector.extract_strided_slice %7 {offsets = [8, 0], sizes = [2, 32], strides = [1, 1]} : vector<16x32xf32> to vector<2x32xf32>
    %142 = arith.addf %141, %138 : vector<2x32xf32>
    %143 = arith.negf %142 : vector<2x32xf32>
    %144 = math.exp %143 : vector<2x32xf32>
    %cst_49 = arith.constant 1.000000e+00 : f32
    %145 = vector.broadcast %cst_49 : f32 to vector<2x32xf32>
    %146 = arith.addf %145, %144 : vector<2x32xf32>
    %147 = arith.divf %145, %146 : vector<2x32xf32>
    %148 = vector.extract_strided_slice %13 {offsets = [8, 0], sizes = [2, 32], strides = [1, 1]} : vector<16x32xf32> to vector<2x32xf32>
    %149 = arith.addf %148, %139 : vector<2x32xf32>
    %150 = arith.negf %149 : vector<2x32xf32>
    %151 = math.exp %150 : vector<2x32xf32>
    %cst_50 = arith.constant 1.000000e+00 : f32
    %152 = vector.broadcast %cst_50 : f32 to vector<2x32xf32>
    %153 = arith.addf %152, %151 : vector<2x32xf32>
    %154 = arith.divf %152, %153 : vector<2x32xf32>
    %155 = vector.extract_strided_slice %19 {offsets = [8, 0], sizes = [2, 32], strides = [1, 1]} : vector<16x32xf32> to vector<2x32xf32>
    %156 = arith.addf %140, %28 : vector<2x32xf32>
    %157 = arith.mulf %147, %156 : vector<2x32xf32>
    %158 = arith.addf %155, %157 : vector<2x32xf32>
    %159 = math.tanh %158 : vector<2x32xf32>
    %cst_51 = arith.constant 1.000000e+00 : f32
    %160 = vector.broadcast %cst_51 : f32 to vector<2x32xf32>
    %161 = arith.subf %160, %154 : vector<2x32xf32>
    %162 = arith.mulf %161, %159 : vector<2x32xf32>
    %163 = arith.mulf %154, %137 : vector<2x32xf32>
    %164 = arith.addf %162, %163 : vector<2x32xf32>
    %cst_52 = arith.constant dense<0.000000e+00> : vector<2x32xf32>
    %165 = tpu.matmul %164, %21, %cst_52 {dimension_numbers = #tpu.dot_dimension_numbers<[1], [0], [0], [1], [0, 0, 1, 1], [], []>} : vector<2x32xf32>, vector<32x32xf32>, vector<2x32xf32> -> vector<2x32xf32>
    %cst_53 = arith.constant dense<0.000000e+00> : vector<2x32xf32>
    %166 = tpu.matmul %164, %23, %cst_53 {dimension_numbers = #tpu.dot_dimension_numbers<[1], [0], [0], [1], [0, 0, 1, 1], [], []>} : vector<2x32xf32>, vector<32x32xf32>, vector<2x32xf32> -> vector<2x32xf32>
    %cst_54 = arith.constant dense<0.000000e+00> : vector<2x32xf32>
    %167 = tpu.matmul %164, %25, %cst_54 {dimension_numbers = #tpu.dot_dimension_numbers<[1], [0], [0], [1], [0, 0, 1, 1], [], []>} : vector<2x32xf32>, vector<32x32xf32>, vector<2x32xf32> -> vector<2x32xf32>
    %168 = vector.extract_strided_slice %7 {offsets = [10, 0], sizes = [2, 32], strides = [1, 1]} : vector<16x32xf32> to vector<2x32xf32>
    %169 = arith.addf %168, %165 : vector<2x32xf32>
    %170 = arith.negf %169 : vector<2x32xf32>
    %171 = math.exp %170 : vector<2x32xf32>
    %cst_55 = arith.constant 1.000000e+00 : f32
    %172 = vector.broadcast %cst_55 : f32 to vector<2x32xf32>
    %173 = arith.addf %172, %171 : vector<2x32xf32>
    %174 = arith.divf %172, %173 : vector<2x32xf32>
    %175 = vector.extract_strided_slice %13 {offsets = [10, 0], sizes = [2, 32], strides = [1, 1]} : vector<16x32xf32> to vector<2x32xf32>
    %176 = arith.addf %175, %166 : vector<2x32xf32>
    %177 = arith.negf %176 : vector<2x32xf32>
    %178 = math.exp %177 : vector<2x32xf32>
    %cst_56 = arith.constant 1.000000e+00 : f32
    %179 = vector.broadcast %cst_56 : f32 to vector<2x32xf32>
    %180 = arith.addf %179, %178 : vector<2x32xf32>
    %181 = arith.divf %179, %180 : vector<2x32xf32>
    %182 = vector.extract_strided_slice %19 {offsets = [10, 0], sizes = [2, 32], strides = [1, 1]} : vector<16x32xf32> to vector<2x32xf32>
    %183 = arith.addf %167, %28 : vector<2x32xf32>
    %184 = arith.mulf %174, %183 : vector<2x32xf32>
    %185 = arith.addf %182, %184 : vector<2x32xf32>
    %186 = math.tanh %185 : vector<2x32xf32>
    %cst_57 = arith.constant 1.000000e+00 : f32
    %187 = vector.broadcast %cst_57 : f32 to vector<2x32xf32>
    %188 = arith.subf %187, %181 : vector<2x32xf32>
    %189 = arith.mulf %188, %186 : vector<2x32xf32>
    %190 = arith.mulf %181, %164 : vector<2x32xf32>
    %191 = arith.addf %189, %190 : vector<2x32xf32>
    %cst_58 = arith.constant dense<0.000000e+00> : vector<2x32xf32>
    %192 = tpu.matmul %191, %21, %cst_58 {dimension_numbers = #tpu.dot_dimension_numbers<[1], [0], [0], [1], [0, 0, 1, 1], [], []>} : vector<2x32xf32>, vector<32x32xf32>, vector<2x32xf32> -> vector<2x32xf32>
    %cst_59 = arith.constant dense<0.000000e+00> : vector<2x32xf32>
    %193 = tpu.matmul %191, %23, %cst_59 {dimension_numbers = #tpu.dot_dimension_numbers<[1], [0], [0], [1], [0, 0, 1, 1], [], []>} : vector<2x32xf32>, vector<32x32xf32>, vector<2x32xf32> -> vector<2x32xf32>
    %cst_60 = arith.constant dense<0.000000e+00> : vector<2x32xf32>
    %194 = tpu.matmul %191, %25, %cst_60 {dimension_numbers = #tpu.dot_dimension_numbers<[1], [0], [0], [1], [0, 0, 1, 1], [], []>} : vector<2x32xf32>, vector<32x32xf32>, vector<2x32xf32> -> vector<2x32xf32>
    %195 = vector.extract_strided_slice %7 {offsets = [12, 0], sizes = [2, 32], strides = [1, 1]} : vector<16x32xf32> to vector<2x32xf32>
    %196 = arith.addf %195, %192 : vector<2x32xf32>
    %197 = arith.negf %196 : vector<2x32xf32>
    %198 = math.exp %197 : vector<2x32xf32>
    %cst_61 = arith.constant 1.000000e+00 : f32
    %199 = vector.broadcast %cst_61 : f32 to vector<2x32xf32>
    %200 = arith.addf %199, %198 : vector<2x32xf32>
    %201 = arith.divf %199, %200 : vector<2x32xf32>
    %202 = vector.extract_strided_slice %13 {offsets = [12, 0], sizes = [2, 32], strides = [1, 1]} : vector<16x32xf32> to vector<2x32xf32>
    %203 = arith.addf %202, %193 : vector<2x32xf32>
    %204 = arith.negf %203 : vector<2x32xf32>
    %205 = math.exp %204 : vector<2x32xf32>
    %cst_62 = arith.constant 1.000000e+00 : f32
    %206 = vector.broadcast %cst_62 : f32 to vector<2x32xf32>
    %207 = arith.addf %206, %205 : vector<2x32xf32>
    %208 = arith.divf %206, %207 : vector<2x32xf32>
    %209 = vector.extract_strided_slice %19 {offsets = [12, 0], sizes = [2, 32], strides = [1, 1]} : vector<16x32xf32> to vector<2x32xf32>
    %210 = arith.addf %194, %28 : vector<2x32xf32>
    %211 = arith.mulf %201, %210 : vector<2x32xf32>
    %212 = arith.addf %209, %211 : vector<2x32xf32>
    %213 = math.tanh %212 : vector<2x32xf32>
    %cst_63 = arith.constant 1.000000e+00 : f32
    %214 = vector.broadcast %cst_63 : f32 to vector<2x32xf32>
    %215 = arith.subf %214, %208 : vector<2x32xf32>
    %216 = arith.mulf %215, %213 : vector<2x32xf32>
    %217 = arith.mulf %208, %191 : vector<2x32xf32>
    %218 = arith.addf %216, %217 : vector<2x32xf32>
    %cst_64 = arith.constant dense<0.000000e+00> : vector<2x32xf32>
    %219 = tpu.matmul %218, %21, %cst_64 {dimension_numbers = #tpu.dot_dimension_numbers<[1], [0], [0], [1], [0, 0, 1, 1], [], []>} : vector<2x32xf32>, vector<32x32xf32>, vector<2x32xf32> -> vector<2x32xf32>
    %cst_65 = arith.constant dense<0.000000e+00> : vector<2x32xf32>
    %220 = tpu.matmul %218, %23, %cst_65 {dimension_numbers = #tpu.dot_dimension_numbers<[1], [0], [0], [1], [0, 0, 1, 1], [], []>} : vector<2x32xf32>, vector<32x32xf32>, vector<2x32xf32> -> vector<2x32xf32>
    %cst_66 = arith.constant dense<0.000000e+00> : vector<2x32xf32>
    %221 = tpu.matmul %218, %25, %cst_66 {dimension_numbers = #tpu.dot_dimension_numbers<[1], [0], [0], [1], [0, 0, 1, 1], [], []>} : vector<2x32xf32>, vector<32x32xf32>, vector<2x32xf32> -> vector<2x32xf32>
    %222 = vector.extract_strided_slice %7 {offsets = [14, 0], sizes = [2, 32], strides = [1, 1]} : vector<16x32xf32> to vector<2x32xf32>
    %223 = arith.addf %222, %219 : vector<2x32xf32>
    %224 = arith.negf %223 : vector<2x32xf32>
    %225 = math.exp %224 : vector<2x32xf32>
    %cst_67 = arith.constant 1.000000e+00 : f32
    %226 = vector.broadcast %cst_67 : f32 to vector<2x32xf32>
    %227 = arith.addf %226, %225 : vector<2x32xf32>
    %228 = arith.divf %226, %227 : vector<2x32xf32>
    %229 = vector.extract_strided_slice %13 {offsets = [14, 0], sizes = [2, 32], strides = [1, 1]} : vector<16x32xf32> to vector<2x32xf32>
    %230 = arith.addf %229, %220 : vector<2x32xf32>
    %231 = arith.negf %230 : vector<2x32xf32>
    %232 = math.exp %231 : vector<2x32xf32>
    %cst_68 = arith.constant 1.000000e+00 : f32
    %233 = vector.broadcast %cst_68 : f32 to vector<2x32xf32>
    %234 = arith.addf %233, %232 : vector<2x32xf32>
    %235 = arith.divf %233, %234 : vector<2x32xf32>
    %236 = vector.extract_strided_slice %19 {offsets = [14, 0], sizes = [2, 32], strides = [1, 1]} : vector<16x32xf32> to vector<2x32xf32>
    %237 = arith.addf %221, %28 : vector<2x32xf32>
    %238 = arith.mulf %228, %237 : vector<2x32xf32>
    %239 = arith.addf %236, %238 : vector<2x32xf32>
    %240 = math.tanh %239 : vector<2x32xf32>
    %cst_69 = arith.constant 1.000000e+00 : f32
    %241 = vector.broadcast %cst_69 : f32 to vector<2x32xf32>
    %242 = arith.subf %241, %235 : vector<2x32xf32>
    %243 = arith.mulf %242, %240 : vector<2x32xf32>
    %244 = arith.mulf %235, %218 : vector<2x32xf32>
    %245 = arith.addf %243, %244 : vector<2x32xf32>
    %246 = tpu.concatenate %56, %83, %110, %137, %164, %191, %218, %245 in 0 : vector<2x32xf32>, vector<2x32xf32>, vector<2x32xf32>, vector<2x32xf32>, vector<2x32xf32>, vector<2x32xf32>, vector<2x32xf32>, vector<2x32xf32> -> vector<16x32xf32>
    %c0_70 = arith.constant 0 : index
    %c0_71 = arith.constant 0 : index
    %247 = vector.load %arg7[%c0_70, %c0_71] : memref<4x32xf32, #tpu.memory_space<vmem>>, vector<4x32xf32>
    %c0_72 = arith.constant 0 : index
    %c0_73 = arith.constant 0 : index
    %c0_74 = arith.constant 0 : index
    %248 = vector.load %arg5[%c0_72, %c0_73, %c0_74] : memref<3x32x32xf32, #tpu.memory_space<vmem>>, vector<1x32x32xf32>
    %249 = vector.shape_cast %248 : vector<1x32x32xf32> to vector<32x32xf32>
    %cst_75 = arith.constant dense<0.000000e+00> : vector<16x32xf32>
    %250 = tpu.matmul %246, %249, %cst_75 {dimension_numbers = #tpu.dot_dimension_numbers<[1], [0], [0], [1], [0, 0, 1, 1], [], []>} : vector<16x32xf32>, vector<32x32xf32>, vector<16x32xf32> -> vector<16x32xf32>
    %251 = vector.extract_strided_slice %247 {offsets = [0, 0], sizes = [1, 32], strides = [1, 1]} : vector<4x32xf32> to vector<1x32xf32>
    %252 = vector.broadcast %251 : vector<1x32xf32> to vector<16x32xf32>
    %253 = arith.addf %250, %252 : vector<16x32xf32>
    %c1_76 = arith.constant 1 : index
    %c0_77 = arith.constant 0 : index
    %c0_78 = arith.constant 0 : index
    %254 = vector.load %arg5[%c1_76, %c0_77, %c0_78] : memref<3x32x32xf32, #tpu.memory_space<vmem>>, vector<1x32x32xf32>
    %255 = vector.shape_cast %254 : vector<1x32x32xf32> to vector<32x32xf32>
    %cst_79 = arith.constant dense<0.000000e+00> : vector<16x32xf32>
    %256 = tpu.matmul %246, %255, %cst_79 {dimension_numbers = #tpu.dot_dimension_numbers<[1], [0], [0], [1], [0, 0, 1, 1], [], []>} : vector<16x32xf32>, vector<32x32xf32>, vector<16x32xf32> -> vector<16x32xf32>
    %257 = vector.extract_strided_slice %247 {offsets = [1, 0], sizes = [1, 32], strides = [1, 1]} : vector<4x32xf32> to vector<1x32xf32>
    %258 = vector.broadcast %257 : vector<1x32xf32> to vector<16x32xf32>
    %259 = arith.addf %256, %258 : vector<16x32xf32>
    %c2_80 = arith.constant 2 : index
    %c0_81 = arith.constant 0 : index
    %c0_82 = arith.constant 0 : index
    %260 = vector.load %arg5[%c2_80, %c0_81, %c0_82] : memref<3x32x32xf32, #tpu.memory_space<vmem>>, vector<1x32x32xf32>
    %261 = vector.shape_cast %260 : vector<1x32x32xf32> to vector<32x32xf32>
    %cst_83 = arith.constant dense<0.000000e+00> : vector<16x32xf32>
    %262 = tpu.matmul %246, %261, %cst_83 {dimension_numbers = #tpu.dot_dimension_numbers<[1], [0], [0], [1], [0, 0, 1, 1], [], []>} : vector<16x32xf32>, vector<32x32xf32>, vector<16x32xf32> -> vector<16x32xf32>
    %263 = vector.extract_strided_slice %247 {offsets = [2, 0], sizes = [1, 32], strides = [1, 1]} : vector<4x32xf32> to vector<1x32xf32>
    %264 = vector.broadcast %263 : vector<1x32xf32> to vector<16x32xf32>
    %265 = arith.addf %262, %264 : vector<16x32xf32>
    %c0_84 = arith.constant 0 : index
    %c0_85 = arith.constant 0 : index
    %c0_86 = arith.constant 0 : index
    %266 = vector.load %arg6[%c0_84, %c0_85, %c0_86] : memref<3x32x32xf32, #tpu.memory_space<vmem>>, vector<1x32x32xf32>
    %267 = vector.shape_cast %266 : vector<1x32x32xf32> to vector<32x32xf32>
    %c1_87 = arith.constant 1 : index
    %c0_88 = arith.constant 0 : index
    %c0_89 = arith.constant 0 : index
    %268 = vector.load %arg6[%c1_87, %c0_88, %c0_89] : memref<3x32x32xf32, #tpu.memory_space<vmem>>, vector<1x32x32xf32>
    %269 = vector.shape_cast %268 : vector<1x32x32xf32> to vector<32x32xf32>
    %c2_90 = arith.constant 2 : index
    %c0_91 = arith.constant 0 : index
    %c0_92 = arith.constant 0 : index
    %270 = vector.load %arg6[%c2_90, %c0_91, %c0_92] : memref<3x32x32xf32, #tpu.memory_space<vmem>>, vector<1x32x32xf32>
    %271 = vector.shape_cast %270 : vector<1x32x32xf32> to vector<32x32xf32>
    %272 = vector.extract_strided_slice %247 {offsets = [3, 0], sizes = [1, 32], strides = [1, 1]} : vector<4x32xf32> to vector<1x32xf32>
    %273 = vector.shape_cast %272 : vector<1x32xf32> to vector<1x32xf32>
    %274 = vector.broadcast %273 : vector<1x32xf32> to vector<2x32xf32>
    %cst_93 = arith.constant 0.000000e+00 : f32
    %275 = vector.broadcast %cst_93 : f32 to vector<2x32xf32>
    %cst_94 = arith.constant dense<0.000000e+00> : vector<2x32xf32>
    %276 = tpu.matmul %275, %267, %cst_94 {dimension_numbers = #tpu.dot_dimension_numbers<[1], [0], [0], [1], [0, 0, 1, 1], [], []>} : vector<2x32xf32>, vector<32x32xf32>, vector<2x32xf32> -> vector<2x32xf32>
    %cst_95 = arith.constant dense<0.000000e+00> : vector<2x32xf32>
    %277 = tpu.matmul %275, %269, %cst_95 {dimension_numbers = #tpu.dot_dimension_numbers<[1], [0], [0], [1], [0, 0, 1, 1], [], []>} : vector<2x32xf32>, vector<32x32xf32>, vector<2x32xf32> -> vector<2x32xf32>
    %cst_96 = arith.constant dense<0.000000e+00> : vector<2x32xf32>
    %278 = tpu.matmul %275, %271, %cst_96 {dimension_numbers = #tpu.dot_dimension_numbers<[1], [0], [0], [1], [0, 0, 1, 1], [], []>} : vector<2x32xf32>, vector<32x32xf32>, vector<2x32xf32> -> vector<2x32xf32>
    %279 = vector.extract_strided_slice %253 {offsets = [0, 0], sizes = [2, 32], strides = [1, 1]} : vector<16x32xf32> to vector<2x32xf32>
    %280 = arith.addf %279, %276 : vector<2x32xf32>
    %281 = arith.negf %280 : vector<2x32xf32>
    %282 = math.exp %281 : vector<2x32xf32>
    %cst_97 = arith.constant 1.000000e+00 : f32
    %283 = vector.broadcast %cst_97 : f32 to vector<2x32xf32>
    %284 = arith.addf %283, %282 : vector<2x32xf32>
    %285 = arith.divf %283, %284 : vector<2x32xf32>
    %286 = vector.extract_strided_slice %259 {offsets = [0, 0], sizes = [2, 32], strides = [1, 1]} : vector<16x32xf32> to vector<2x32xf32>
    %287 = arith.addf %286, %277 : vector<2x32xf32>
    %288 = arith.negf %287 : vector<2x32xf32>
    %289 = math.exp %288 : vector<2x32xf32>
    %cst_98 = arith.constant 1.000000e+00 : f32
    %290 = vector.broadcast %cst_98 : f32 to vector<2x32xf32>
    %291 = arith.addf %290, %289 : vector<2x32xf32>
    %292 = arith.divf %290, %291 : vector<2x32xf32>
    %293 = vector.extract_strided_slice %265 {offsets = [0, 0], sizes = [2, 32], strides = [1, 1]} : vector<16x32xf32> to vector<2x32xf32>
    %294 = arith.addf %278, %274 : vector<2x32xf32>
    %295 = arith.mulf %285, %294 : vector<2x32xf32>
    %296 = arith.addf %293, %295 : vector<2x32xf32>
    %297 = math.tanh %296 : vector<2x32xf32>
    %cst_99 = arith.constant 1.000000e+00 : f32
    %298 = vector.broadcast %cst_99 : f32 to vector<2x32xf32>
    %299 = arith.subf %298, %292 : vector<2x32xf32>
    %300 = arith.mulf %299, %297 : vector<2x32xf32>
    %301 = arith.mulf %292, %275 : vector<2x32xf32>
    %302 = arith.addf %300, %301 : vector<2x32xf32>
    %cst_100 = arith.constant dense<0.000000e+00> : vector<2x32xf32>
    %303 = tpu.matmul %302, %267, %cst_100 {dimension_numbers = #tpu.dot_dimension_numbers<[1], [0], [0], [1], [0, 0, 1, 1], [], []>} : vector<2x32xf32>, vector<32x32xf32>, vector<2x32xf32> -> vector<2x32xf32>
    %cst_101 = arith.constant dense<0.000000e+00> : vector<2x32xf32>
    %304 = tpu.matmul %302, %269, %cst_101 {dimension_numbers = #tpu.dot_dimension_numbers<[1], [0], [0], [1], [0, 0, 1, 1], [], []>} : vector<2x32xf32>, vector<32x32xf32>, vector<2x32xf32> -> vector<2x32xf32>
    %cst_102 = arith.constant dense<0.000000e+00> : vector<2x32xf32>
    %305 = tpu.matmul %302, %271, %cst_102 {dimension_numbers = #tpu.dot_dimension_numbers<[1], [0], [0], [1], [0, 0, 1, 1], [], []>} : vector<2x32xf32>, vector<32x32xf32>, vector<2x32xf32> -> vector<2x32xf32>
    %306 = vector.extract_strided_slice %253 {offsets = [2, 0], sizes = [2, 32], strides = [1, 1]} : vector<16x32xf32> to vector<2x32xf32>
    %307 = arith.addf %306, %303 : vector<2x32xf32>
    %308 = arith.negf %307 : vector<2x32xf32>
    %309 = math.exp %308 : vector<2x32xf32>
    %cst_103 = arith.constant 1.000000e+00 : f32
    %310 = vector.broadcast %cst_103 : f32 to vector<2x32xf32>
    %311 = arith.addf %310, %309 : vector<2x32xf32>
    %312 = arith.divf %310, %311 : vector<2x32xf32>
    %313 = vector.extract_strided_slice %259 {offsets = [2, 0], sizes = [2, 32], strides = [1, 1]} : vector<16x32xf32> to vector<2x32xf32>
    %314 = arith.addf %313, %304 : vector<2x32xf32>
    %315 = arith.negf %314 : vector<2x32xf32>
    %316 = math.exp %315 : vector<2x32xf32>
    %cst_104 = arith.constant 1.000000e+00 : f32
    %317 = vector.broadcast %cst_104 : f32 to vector<2x32xf32>
    %318 = arith.addf %317, %316 : vector<2x32xf32>
    %319 = arith.divf %317, %318 : vector<2x32xf32>
    %320 = vector.extract_strided_slice %265 {offsets = [2, 0], sizes = [2, 32], strides = [1, 1]} : vector<16x32xf32> to vector<2x32xf32>
    %321 = arith.addf %305, %274 : vector<2x32xf32>
    %322 = arith.mulf %312, %321 : vector<2x32xf32>
    %323 = arith.addf %320, %322 : vector<2x32xf32>
    %324 = math.tanh %323 : vector<2x32xf32>
    %cst_105 = arith.constant 1.000000e+00 : f32
    %325 = vector.broadcast %cst_105 : f32 to vector<2x32xf32>
    %326 = arith.subf %325, %319 : vector<2x32xf32>
    %327 = arith.mulf %326, %324 : vector<2x32xf32>
    %328 = arith.mulf %319, %302 : vector<2x32xf32>
    %329 = arith.addf %327, %328 : vector<2x32xf32>
    %cst_106 = arith.constant dense<0.000000e+00> : vector<2x32xf32>
    %330 = tpu.matmul %329, %267, %cst_106 {dimension_numbers = #tpu.dot_dimension_numbers<[1], [0], [0], [1], [0, 0, 1, 1], [], []>} : vector<2x32xf32>, vector<32x32xf32>, vector<2x32xf32> -> vector<2x32xf32>
    %cst_107 = arith.constant dense<0.000000e+00> : vector<2x32xf32>
    %331 = tpu.matmul %329, %269, %cst_107 {dimension_numbers = #tpu.dot_dimension_numbers<[1], [0], [0], [1], [0, 0, 1, 1], [], []>} : vector<2x32xf32>, vector<32x32xf32>, vector<2x32xf32> -> vector<2x32xf32>
    %cst_108 = arith.constant dense<0.000000e+00> : vector<2x32xf32>
    %332 = tpu.matmul %329, %271, %cst_108 {dimension_numbers = #tpu.dot_dimension_numbers<[1], [0], [0], [1], [0, 0, 1, 1], [], []>} : vector<2x32xf32>, vector<32x32xf32>, vector<2x32xf32> -> vector<2x32xf32>
    %333 = vector.extract_strided_slice %253 {offsets = [4, 0], sizes = [2, 32], strides = [1, 1]} : vector<16x32xf32> to vector<2x32xf32>
    %334 = arith.addf %333, %330 : vector<2x32xf32>
    %335 = arith.negf %334 : vector<2x32xf32>
    %336 = math.exp %335 : vector<2x32xf32>
    %cst_109 = arith.constant 1.000000e+00 : f32
    %337 = vector.broadcast %cst_109 : f32 to vector<2x32xf32>
    %338 = arith.addf %337, %336 : vector<2x32xf32>
    %339 = arith.divf %337, %338 : vector<2x32xf32>
    %340 = vector.extract_strided_slice %259 {offsets = [4, 0], sizes = [2, 32], strides = [1, 1]} : vector<16x32xf32> to vector<2x32xf32>
    %341 = arith.addf %340, %331 : vector<2x32xf32>
    %342 = arith.negf %341 : vector<2x32xf32>
    %343 = math.exp %342 : vector<2x32xf32>
    %cst_110 = arith.constant 1.000000e+00 : f32
    %344 = vector.broadcast %cst_110 : f32 to vector<2x32xf32>
    %345 = arith.addf %344, %343 : vector<2x32xf32>
    %346 = arith.divf %344, %345 : vector<2x32xf32>
    %347 = vector.extract_strided_slice %265 {offsets = [4, 0], sizes = [2, 32], strides = [1, 1]} : vector<16x32xf32> to vector<2x32xf32>
    %348 = arith.addf %332, %274 : vector<2x32xf32>
    %349 = arith.mulf %339, %348 : vector<2x32xf32>
    %350 = arith.addf %347, %349 : vector<2x32xf32>
    %351 = math.tanh %350 : vector<2x32xf32>
    %cst_111 = arith.constant 1.000000e+00 : f32
    %352 = vector.broadcast %cst_111 : f32 to vector<2x32xf32>
    %353 = arith.subf %352, %346 : vector<2x32xf32>
    %354 = arith.mulf %353, %351 : vector<2x32xf32>
    %355 = arith.mulf %346, %329 : vector<2x32xf32>
    %356 = arith.addf %354, %355 : vector<2x32xf32>
    %cst_112 = arith.constant dense<0.000000e+00> : vector<2x32xf32>
    %357 = tpu.matmul %356, %267, %cst_112 {dimension_numbers = #tpu.dot_dimension_numbers<[1], [0], [0], [1], [0, 0, 1, 1], [], []>} : vector<2x32xf32>, vector<32x32xf32>, vector<2x32xf32> -> vector<2x32xf32>
    %cst_113 = arith.constant dense<0.000000e+00> : vector<2x32xf32>
    %358 = tpu.matmul %356, %269, %cst_113 {dimension_numbers = #tpu.dot_dimension_numbers<[1], [0], [0], [1], [0, 0, 1, 1], [], []>} : vector<2x32xf32>, vector<32x32xf32>, vector<2x32xf32> -> vector<2x32xf32>
    %cst_114 = arith.constant dense<0.000000e+00> : vector<2x32xf32>
    %359 = tpu.matmul %356, %271, %cst_114 {dimension_numbers = #tpu.dot_dimension_numbers<[1], [0], [0], [1], [0, 0, 1, 1], [], []>} : vector<2x32xf32>, vector<32x32xf32>, vector<2x32xf32> -> vector<2x32xf32>
    %360 = vector.extract_strided_slice %253 {offsets = [6, 0], sizes = [2, 32], strides = [1, 1]} : vector<16x32xf32> to vector<2x32xf32>
    %361 = arith.addf %360, %357 : vector<2x32xf32>
    %362 = arith.negf %361 : vector<2x32xf32>
    %363 = math.exp %362 : vector<2x32xf32>
    %cst_115 = arith.constant 1.000000e+00 : f32
    %364 = vector.broadcast %cst_115 : f32 to vector<2x32xf32>
    %365 = arith.addf %364, %363 : vector<2x32xf32>
    %366 = arith.divf %364, %365 : vector<2x32xf32>
    %367 = vector.extract_strided_slice %259 {offsets = [6, 0], sizes = [2, 32], strides = [1, 1]} : vector<16x32xf32> to vector<2x32xf32>
    %368 = arith.addf %367, %358 : vector<2x32xf32>
    %369 = arith.negf %368 : vector<2x32xf32>
    %370 = math.exp %369 : vector<2x32xf32>
    %cst_116 = arith.constant 1.000000e+00 : f32
    %371 = vector.broadcast %cst_116 : f32 to vector<2x32xf32>
    %372 = arith.addf %371, %370 : vector<2x32xf32>
    %373 = arith.divf %371, %372 : vector<2x32xf32>
    %374 = vector.extract_strided_slice %265 {offsets = [6, 0], sizes = [2, 32], strides = [1, 1]} : vector<16x32xf32> to vector<2x32xf32>
    %375 = arith.addf %359, %274 : vector<2x32xf32>
    %376 = arith.mulf %366, %375 : vector<2x32xf32>
    %377 = arith.addf %374, %376 : vector<2x32xf32>
    %378 = math.tanh %377 : vector<2x32xf32>
    %cst_117 = arith.constant 1.000000e+00 : f32
    %379 = vector.broadcast %cst_117 : f32 to vector<2x32xf32>
    %380 = arith.subf %379, %373 : vector<2x32xf32>
    %381 = arith.mulf %380, %378 : vector<2x32xf32>
    %382 = arith.mulf %373, %356 : vector<2x32xf32>
    %383 = arith.addf %381, %382 : vector<2x32xf32>
    %cst_118 = arith.constant dense<0.000000e+00> : vector<2x32xf32>
    %384 = tpu.matmul %383, %267, %cst_118 {dimension_numbers = #tpu.dot_dimension_numbers<[1], [0], [0], [1], [0, 0, 1, 1], [], []>} : vector<2x32xf32>, vector<32x32xf32>, vector<2x32xf32> -> vector<2x32xf32>
    %cst_119 = arith.constant dense<0.000000e+00> : vector<2x32xf32>
    %385 = tpu.matmul %383, %269, %cst_119 {dimension_numbers = #tpu.dot_dimension_numbers<[1], [0], [0], [1], [0, 0, 1, 1], [], []>} : vector<2x32xf32>, vector<32x32xf32>, vector<2x32xf32> -> vector<2x32xf32>
    %cst_120 = arith.constant dense<0.000000e+00> : vector<2x32xf32>
    %386 = tpu.matmul %383, %271, %cst_120 {dimension_numbers = #tpu.dot_dimension_numbers<[1], [0], [0], [1], [0, 0, 1, 1], [], []>} : vector<2x32xf32>, vector<32x32xf32>, vector<2x32xf32> -> vector<2x32xf32>
    %387 = vector.extract_strided_slice %253 {offsets = [8, 0], sizes = [2, 32], strides = [1, 1]} : vector<16x32xf32> to vector<2x32xf32>
    %388 = arith.addf %387, %384 : vector<2x32xf32>
    %389 = arith.negf %388 : vector<2x32xf32>
    %390 = math.exp %389 : vector<2x32xf32>
    %cst_121 = arith.constant 1.000000e+00 : f32
    %391 = vector.broadcast %cst_121 : f32 to vector<2x32xf32>
    %392 = arith.addf %391, %390 : vector<2x32xf32>
    %393 = arith.divf %391, %392 : vector<2x32xf32>
    %394 = vector.extract_strided_slice %259 {offsets = [8, 0], sizes = [2, 32], strides = [1, 1]} : vector<16x32xf32> to vector<2x32xf32>
    %395 = arith.addf %394, %385 : vector<2x32xf32>
    %396 = arith.negf %395 : vector<2x32xf32>
    %397 = math.exp %396 : vector<2x32xf32>
    %cst_122 = arith.constant 1.000000e+00 : f32
    %398 = vector.broadcast %cst_122 : f32 to vector<2x32xf32>
    %399 = arith.addf %398, %397 : vector<2x32xf32>
    %400 = arith.divf %398, %399 : vector<2x32xf32>
    %401 = vector.extract_strided_slice %265 {offsets = [8, 0], sizes = [2, 32], strides = [1, 1]} : vector<16x32xf32> to vector<2x32xf32>
    %402 = arith.addf %386, %274 : vector<2x32xf32>
    %403 = arith.mulf %393, %402 : vector<2x32xf32>
    %404 = arith.addf %401, %403 : vector<2x32xf32>
    %405 = math.tanh %404 : vector<2x32xf32>
    %cst_123 = arith.constant 1.000000e+00 : f32
    %406 = vector.broadcast %cst_123 : f32 to vector<2x32xf32>
    %407 = arith.subf %406, %400 : vector<2x32xf32>
    %408 = arith.mulf %407, %405 : vector<2x32xf32>
    %409 = arith.mulf %400, %383 : vector<2x32xf32>
    %410 = arith.addf %408, %409 : vector<2x32xf32>
    %cst_124 = arith.constant dense<0.000000e+00> : vector<2x32xf32>
    %411 = tpu.matmul %410, %267, %cst_124 {dimension_numbers = #tpu.dot_dimension_numbers<[1], [0], [0], [1], [0, 0, 1, 1], [], []>} : vector<2x32xf32>, vector<32x32xf32>, vector<2x32xf32> -> vector<2x32xf32>
    %cst_125 = arith.constant dense<0.000000e+00> : vector<2x32xf32>
    %412 = tpu.matmul %410, %269, %cst_125 {dimension_numbers = #tpu.dot_dimension_numbers<[1], [0], [0], [1], [0, 0, 1, 1], [], []>} : vector<2x32xf32>, vector<32x32xf32>, vector<2x32xf32> -> vector<2x32xf32>
    %cst_126 = arith.constant dense<0.000000e+00> : vector<2x32xf32>
    %413 = tpu.matmul %410, %271, %cst_126 {dimension_numbers = #tpu.dot_dimension_numbers<[1], [0], [0], [1], [0, 0, 1, 1], [], []>} : vector<2x32xf32>, vector<32x32xf32>, vector<2x32xf32> -> vector<2x32xf32>
    %414 = vector.extract_strided_slice %253 {offsets = [10, 0], sizes = [2, 32], strides = [1, 1]} : vector<16x32xf32> to vector<2x32xf32>
    %415 = arith.addf %414, %411 : vector<2x32xf32>
    %416 = arith.negf %415 : vector<2x32xf32>
    %417 = math.exp %416 : vector<2x32xf32>
    %cst_127 = arith.constant 1.000000e+00 : f32
    %418 = vector.broadcast %cst_127 : f32 to vector<2x32xf32>
    %419 = arith.addf %418, %417 : vector<2x32xf32>
    %420 = arith.divf %418, %419 : vector<2x32xf32>
    %421 = vector.extract_strided_slice %259 {offsets = [10, 0], sizes = [2, 32], strides = [1, 1]} : vector<16x32xf32> to vector<2x32xf32>
    %422 = arith.addf %421, %412 : vector<2x32xf32>
    %423 = arith.negf %422 : vector<2x32xf32>
    %424 = math.exp %423 : vector<2x32xf32>
    %cst_128 = arith.constant 1.000000e+00 : f32
    %425 = vector.broadcast %cst_128 : f32 to vector<2x32xf32>
    %426 = arith.addf %425, %424 : vector<2x32xf32>
    %427 = arith.divf %425, %426 : vector<2x32xf32>
    %428 = vector.extract_strided_slice %265 {offsets = [10, 0], sizes = [2, 32], strides = [1, 1]} : vector<16x32xf32> to vector<2x32xf32>
    %429 = arith.addf %413, %274 : vector<2x32xf32>
    %430 = arith.mulf %420, %429 : vector<2x32xf32>
    %431 = arith.addf %428, %430 : vector<2x32xf32>
    %432 = math.tanh %431 : vector<2x32xf32>
    %cst_129 = arith.constant 1.000000e+00 : f32
    %433 = vector.broadcast %cst_129 : f32 to vector<2x32xf32>
    %434 = arith.subf %433, %427 : vector<2x32xf32>
    %435 = arith.mulf %434, %432 : vector<2x32xf32>
    %436 = arith.mulf %427, %410 : vector<2x32xf32>
    %437 = arith.addf %435, %436 : vector<2x32xf32>
    %cst_130 = arith.constant dense<0.000000e+00> : vector<2x32xf32>
    %438 = tpu.matmul %437, %267, %cst_130 {dimension_numbers = #tpu.dot_dimension_numbers<[1], [0], [0], [1], [0, 0, 1, 1], [], []>} : vector<2x32xf32>, vector<32x32xf32>, vector<2x32xf32> -> vector<2x32xf32>
    %cst_131 = arith.constant dense<0.000000e+00> : vector<2x32xf32>
    %439 = tpu.matmul %437, %269, %cst_131 {dimension_numbers = #tpu.dot_dimension_numbers<[1], [0], [0], [1], [0, 0, 1, 1], [], []>} : vector<2x32xf32>, vector<32x32xf32>, vector<2x32xf32> -> vector<2x32xf32>
    %cst_132 = arith.constant dense<0.000000e+00> : vector<2x32xf32>
    %440 = tpu.matmul %437, %271, %cst_132 {dimension_numbers = #tpu.dot_dimension_numbers<[1], [0], [0], [1], [0, 0, 1, 1], [], []>} : vector<2x32xf32>, vector<32x32xf32>, vector<2x32xf32> -> vector<2x32xf32>
    %441 = vector.extract_strided_slice %253 {offsets = [12, 0], sizes = [2, 32], strides = [1, 1]} : vector<16x32xf32> to vector<2x32xf32>
    %442 = arith.addf %441, %438 : vector<2x32xf32>
    %443 = arith.negf %442 : vector<2x32xf32>
    %444 = math.exp %443 : vector<2x32xf32>
    %cst_133 = arith.constant 1.000000e+00 : f32
    %445 = vector.broadcast %cst_133 : f32 to vector<2x32xf32>
    %446 = arith.addf %445, %444 : vector<2x32xf32>
    %447 = arith.divf %445, %446 : vector<2x32xf32>
    %448 = vector.extract_strided_slice %259 {offsets = [12, 0], sizes = [2, 32], strides = [1, 1]} : vector<16x32xf32> to vector<2x32xf32>
    %449 = arith.addf %448, %439 : vector<2x32xf32>
    %450 = arith.negf %449 : vector<2x32xf32>
    %451 = math.exp %450 : vector<2x32xf32>
    %cst_134 = arith.constant 1.000000e+00 : f32
    %452 = vector.broadcast %cst_134 : f32 to vector<2x32xf32>
    %453 = arith.addf %452, %451 : vector<2x32xf32>
    %454 = arith.divf %452, %453 : vector<2x32xf32>
    %455 = vector.extract_strided_slice %265 {offsets = [12, 0], sizes = [2, 32], strides = [1, 1]} : vector<16x32xf32> to vector<2x32xf32>
    %456 = arith.addf %440, %274 : vector<2x32xf32>
    %457 = arith.mulf %447, %456 : vector<2x32xf32>
    %458 = arith.addf %455, %457 : vector<2x32xf32>
    %459 = math.tanh %458 : vector<2x32xf32>
    %cst_135 = arith.constant 1.000000e+00 : f32
    %460 = vector.broadcast %cst_135 : f32 to vector<2x32xf32>
    %461 = arith.subf %460, %454 : vector<2x32xf32>
    %462 = arith.mulf %461, %459 : vector<2x32xf32>
    %463 = arith.mulf %454, %437 : vector<2x32xf32>
    %464 = arith.addf %462, %463 : vector<2x32xf32>
    %cst_136 = arith.constant dense<0.000000e+00> : vector<2x32xf32>
    %465 = tpu.matmul %464, %267, %cst_136 {dimension_numbers = #tpu.dot_dimension_numbers<[1], [0], [0], [1], [0, 0, 1, 1], [], []>} : vector<2x32xf32>, vector<32x32xf32>, vector<2x32xf32> -> vector<2x32xf32>
    %cst_137 = arith.constant dense<0.000000e+00> : vector<2x32xf32>
    %466 = tpu.matmul %464, %269, %cst_137 {dimension_numbers = #tpu.dot_dimension_numbers<[1], [0], [0], [1], [0, 0, 1, 1], [], []>} : vector<2x32xf32>, vector<32x32xf32>, vector<2x32xf32> -> vector<2x32xf32>
    %cst_138 = arith.constant dense<0.000000e+00> : vector<2x32xf32>
    %467 = tpu.matmul %464, %271, %cst_138 {dimension_numbers = #tpu.dot_dimension_numbers<[1], [0], [0], [1], [0, 0, 1, 1], [], []>} : vector<2x32xf32>, vector<32x32xf32>, vector<2x32xf32> -> vector<2x32xf32>
    %468 = vector.extract_strided_slice %253 {offsets = [14, 0], sizes = [2, 32], strides = [1, 1]} : vector<16x32xf32> to vector<2x32xf32>
    %469 = arith.addf %468, %465 : vector<2x32xf32>
    %470 = arith.negf %469 : vector<2x32xf32>
    %471 = math.exp %470 : vector<2x32xf32>
    %cst_139 = arith.constant 1.000000e+00 : f32
    %472 = vector.broadcast %cst_139 : f32 to vector<2x32xf32>
    %473 = arith.addf %472, %471 : vector<2x32xf32>
    %474 = arith.divf %472, %473 : vector<2x32xf32>
    %475 = vector.extract_strided_slice %259 {offsets = [14, 0], sizes = [2, 32], strides = [1, 1]} : vector<16x32xf32> to vector<2x32xf32>
    %476 = arith.addf %475, %466 : vector<2x32xf32>
    %477 = arith.negf %476 : vector<2x32xf32>
    %478 = math.exp %477 : vector<2x32xf32>
    %cst_140 = arith.constant 1.000000e+00 : f32
    %479 = vector.broadcast %cst_140 : f32 to vector<2x32xf32>
    %480 = arith.addf %479, %478 : vector<2x32xf32>
    %481 = arith.divf %479, %480 : vector<2x32xf32>
    %482 = vector.extract_strided_slice %265 {offsets = [14, 0], sizes = [2, 32], strides = [1, 1]} : vector<16x32xf32> to vector<2x32xf32>
    %483 = arith.addf %467, %274 : vector<2x32xf32>
    %484 = arith.mulf %474, %483 : vector<2x32xf32>
    %485 = arith.addf %482, %484 : vector<2x32xf32>
    %486 = math.tanh %485 : vector<2x32xf32>
    %cst_141 = arith.constant 1.000000e+00 : f32
    %487 = vector.broadcast %cst_141 : f32 to vector<2x32xf32>
    %488 = arith.subf %487, %481 : vector<2x32xf32>
    %489 = arith.mulf %488, %486 : vector<2x32xf32>
    %490 = arith.mulf %481, %464 : vector<2x32xf32>
    %491 = arith.addf %489, %490 : vector<2x32xf32>
    %c0_142 = arith.constant 0 : index
    %c0_143 = arith.constant 0 : index
    %492 = vector.load %arg8[%c0_142, %c0_143] : memref<32x1xf32, #tpu.memory_space<vmem>>, vector<32x1xf32>
    %cst_144 = arith.constant dense<0.000000e+00> : vector<2x1xf32>
    %493 = tpu.matmul %491, %492, %cst_144 {dimension_numbers = #tpu.dot_dimension_numbers<[1], [0], [0], [1], [0, 0, 1, 1], [], []>} : vector<2x32xf32>, vector<32x1xf32>, vector<2x1xf32> -> vector<2x1xf32>
    %c0_145 = arith.constant 0 : index
    %c0_146 = arith.constant 0 : index
    %494 = vector.load %arg9[%c0_145, %c0_146] : memref<1x1xf32, #tpu.memory_space<vmem>>, vector<1x1xf32>
    %495 = vector.broadcast %494 : vector<1x1xf32> to vector<2x1xf32>
    %496 = arith.addf %493, %495 : vector<2x1xf32>
    %c0_147 = arith.constant 0 : index
    %c0_148 = arith.constant 0 : index
    %497 = vector.load %arg10[%c0_147, %c0_148] : memref<2x1xf32, #tpu.memory_space<vmem>>, vector<2x1xf32>
    tpu.vector_store %arg10[%c0_147, %c0_148], %496 {strides = array<i32>} : memref<2x1xf32, #tpu.memory_space<vmem>>, vector<2x1xf32>,
    return
  }
  func.func @transform_0(%arg0: i32) -> (i32, i32) {
    %c0_i32 = arith.constant 0 : i32
    %c0_i32_0 = arith.constant 0 : i32
    %c0_i32_1 = arith.constant 0 : i32
    return %c0_i32, %c0_i32_0 : i32, i32
  }
  func.func @transform_1(%arg0: i32) -> (i32, i32, i32) {
    %c0_i32 = arith.constant 0 : i32
    %c0_i32_0 = arith.constant 0 : i32
    %c0_i32_1 = arith.constant 0 : i32
    %c0_i32_2 = arith.constant 0 : i32
    return %c0_i32, %c0_i32_0, %c0_i32_1 : i32, i32, i32
  }
  func.func @transform_2(%arg0: i32) -> (i32, i32, i32) {
    %c0_i32 = arith.constant 0 : i32
    %c0_i32_0 = arith.constant 0 : i32
    %c0_i32_1 = arith.constant 0 : i32
    %c0_i32_2 = arith.constant 0 : i32
    return %c0_i32, %c0_i32_0, %c0_i32_1 : i32, i32, i32
  }
  func.func @transform_3(%arg0: i32) -> (i32, i32) {
    %c0_i32 = arith.constant 0 : i32
    %c0_i32_0 = arith.constant 0 : i32
    %c0_i32_1 = arith.constant 0 : i32
    return %c0_i32, %c0_i32_0 : i32, i32
  }
  func.func @transform_4(%arg0: i32) -> (i32, i32, i32) {
    %c0_i32 = arith.constant 0 : i32
    %c0_i32_0 = arith.constant 0 : i32
    %c0_i32_1 = arith.constant 0 : i32
    %c0_i32_2 = arith.constant 0 : i32
    return %c0_i32, %c0_i32_0, %c0_i32_1 : i32, i32, i32
  }
  func.func @transform_5(%arg0: i32) -> (i32, i32, i32) {
    %c0_i32 = arith.constant 0 : i32
    %c0_i32_0 = arith.constant 0 : i32
    %c0_i32_1 = arith.constant 0 : i32
    %c0_i32_2 = arith.constant 0 : i32
    return %c0_i32, %c0_i32_0, %c0_i32_1 : i32, i32, i32
  }
  func.func @transform_6(%arg0: i32) -> (i32, i32) {
    %c0_i32 = arith.constant 0 : i32
    %c0_i32_0 = arith.constant 0 : i32
    %c0_i32_1 = arith.constant 0 : i32
    return %c0_i32, %c0_i32_0 : i32, i32
  }
  func.func @transform_7(%arg0: i32) -> (i32, i32) {
    %c0_i32 = arith.constant 0 : i32
    %c0_i32_0 = arith.constant 0 : i32
    %c0_i32_1 = arith.constant 0 : i32
    return %c0_i32, %c0_i32_0 : i32, i32
  }
  func.func @transform_8(%arg0: i32) -> (i32, i32) {
    %c0_i32 = arith.constant 0 : i32
    %c0_i32_0 = arith.constant 0 : i32
    %c0_i32_1 = arith.constant 0 : i32
    return %c0_i32, %c0_i32_0 : i32, i32
  }
  func.func @transform_9(%arg0: i32) -> (i32, i32) {
    %c0_i32 = arith.constant 0 : i32
    %c0_i32_0 = arith.constant 0 : i32
    %c0_i32_1 = arith.constant 0 : i32
    return %c0_i32, %c0_i32_0 : i32, i32
  }
}

</mosaic_0001>

<llo_original>
// kernel: chl_predictor_forward.1
$region0: #{chl_predictor_forward.1}
  #allocation0 [shape = 'u32[]', space=smem, size = 0x4, offset = 0x4, fixed_abs, tag = 'smem constant byte address 0x4 - core index']
  #allocation1 [shape = 'u32[144,128]{1,0:T(1,128)}', space=vmem, size = 0x12000, scoped, tag = 'internal scratch']
  #allocation2 [shape = 'f32[1,1]{1,0:T(1,128)S(1)}', space=vmem, size = 0x200, scoped, tag = 'scoped memory for chl_predictor_forward.1']
  %s0 = inlined_call_operand.vmem [shape: f32[16,4], index: 0, kind: input, shape index: {}]
  %s1 = inlined_call_operand.vmem [shape: f32[3,4,32], index: 1, kind: input, shape index: {}]
  %s2 = inlined_call_operand.hbm [shape: f32[3,32,32], index: 2, kind: input, shape index: {}]
  %s3 = inlined_call_operand.vmem [shape: f32[4,32], index: 3, kind: input, shape index: {}]
  %s4 = inlined_call_operand.hbm [shape: f32[3,32,32], index: 4, kind: input, shape index: {}]
  %s5 = inlined_call_operand.hbm [shape: f32[3,32,32], index: 5, kind: input, shape index: {}]
  %s6 = inlined_call_operand.vmem [shape: f32[4,32], index: 6, kind: input, shape index: {}]
  %s7 = inlined_call_operand.vmem [shape: f32[32,1], index: 7, kind: input, shape index: {}]
  %s8 = inlined_call_operand.<no memory space> [shape: f32[1,1], index: 8, kind: input, shape index: {}]
  %s9 = inlined_call_operand.vmem [shape: f32[2,1], index: 9, kind: output, shape index: {}]
  %s10 = sld [smem:[#allocation0]]
  $region58: #{chl_predictor_forward.1} parent=0
    _
  %s12 = ssub.s32 1, %s10
  %s13 = scalar_select 0, %s12, %s10
  %v14 = vstv %s8
  %15 = vst [vmem:[#allocation2] sm:$0x1] %v14
  $region1: #{chl_predictor_forward.1} parent=0
    #allocation3 [shape = 'u8[49152]{0}', space=vmem, size = 0xc000, scoped, tag = 'input window, operand 2, single buffered']
    #allocation4 [shape = 's32[1]{0}', space=sflag, size = 0x4, scoped, tag = 'scoped memory for chl_predictor_forward.1']
    #allocation5 [shape = 'u8[49152]{0}', space=vmem, size = 0xc000, scoped, tag = 'input window, operand 4, single buffered']
    #allocation6 [shape = 's32[1]{0}', space=sflag, size = 0x4, scoped, tag = 'scoped memory for chl_predictor_forward.1']
    #allocation7 [shape = 'u8[49152]{0}', space=vmem, size = 0xc000, scoped, tag = 'input window, operand 5, single buffered']
    %16 = vsyncpa [#allocation4], 0
    %17 = vsyncpa [#allocation6], 0
    // Predicated region
    $region2: #{chl_predictor_forward.1} parent=1 // pred_check
      _
    $region3: #{chl_predictor_forward.1} parent=1 // pred_check_branch
      %19 = sbr.rel (0) target = $region5
    $region4: #{chl_predictor_forward.1} parent=1 // pred_region
      _
    $region5: #{chl_predictor_forward.1} parent=1 // pred_fallthru
      _
    // Predicated region
    $region6: #{chl_predictor_forward.1} parent=1 // pred_check
      _
    $region7: #{chl_predictor_forward.1} parent=1 // pred_check_branch
      %21 = sbr.rel (0) target = $region9
    $region8: #{chl_predictor_forward.1} parent=1 // pred_region
      _
    $region9: #{chl_predictor_forward.1} parent=1 // pred_fallthru
      _
    // Predicated region
    $region10: #{chl_predictor_forward.1} parent=1 // pred_check
      _
    $region11: #{chl_predictor_forward.1} parent=1 // pred_check_branch
      %23 = sbr.rel (0) target = $region13
    $region12: #{chl_predictor_forward.1} parent=1 // pred_region
      %s25 = ssub.s32 1536, 1536
      %26 = vsyncadd [#allocation4], %s25
      %s27 = sshll.u32 [#allocation3], 4
      %s28 = int_to_ptr.vmem [resolvable:$true] %s27
      %33 = dma.hbm_to_vmem [thread:$0]  %s2, 1536, %s28, [#allocation4], 128, 128, 8
    $region13: #{chl_predictor_forward.1} parent=1 // pred_fallthru
      _
    // Predicated region
    $region14: #{chl_predictor_forward.1} parent=1 // pred_check
      _
    $region15: #{chl_predictor_forward.1} parent=1 // pred_check_branch
      %35 = sbr.rel (0) target = $region17
    $region16: #{chl_predictor_forward.1} parent=1 // pred_region
      _
    $region17: #{chl_predictor_forward.1} parent=1 // pred_fallthru
      _
    // Predicated region
    $region18: #{chl_predictor_forward.1} parent=1 // pred_check
      _
    $region19: #{chl_predictor_forward.1} parent=1 // pred_check_branch
      %37 = sbr.rel (0) target = $region21
    $region20: #{chl_predictor_forward.1} parent=1 // pred_region
      %s39 = ssub.s32 1536, 1536
      %40 = vsyncadd [#allocation6], %s39
      %s41 = sshll.u32 [#allocation5], 4
      %s42 = int_to_ptr.vmem [resolvable:$true] %s41
      %47 = dma.hbm_to_vmem [thread:$0]  %s4, 1536, %s42, [#allocation6], 128, 128, 8
    $region21: #{chl_predictor_forward.1} parent=1 // pred_fallthru
      _
    // Predicated region
    $region22: #{chl_predictor_forward.1} parent=1 // pred_check
      _
    $region23: #{chl_predictor_forward.1} parent=1 // pred_check_branch
      %49 = sbr.rel (0) target = $region25
    $region24: #{chl_predictor_forward.1} parent=1 // pred_region
      %s51 = ssub.s32 1536, 1536
      %52 = vsyncadd [#allocation6], %s51
      %s53 = sshll.u32 [#allocation7], 4
      %s54 = int_to_ptr.vmem [resolvable:$true] %s53
      %59 = dma.hbm_to_vmem [thread:$0]  %s5, 1536, %s54, [#allocation6], 128, 128, 8
    $region25: #{chl_predictor_forward.1} parent=1 // pred_fallthru
      _
    // Predicated region
    $region26: #{chl_predictor_forward.1} parent=1 // pred_check
      _
    $region27: #{chl_predictor_forward.1} parent=1 // pred_check_branch
      %61 = sbr.rel (0) target = $region29
    $region28: #{chl_predictor_forward.1} parent=1 // pred_region
      _
    $region29: #{chl_predictor_forward.1} parent=1 // pred_fallthru
      _
    // Predicated region
    $region30: #{chl_predictor_forward.1} parent=1 // pred_check
      _
    $region31: #{chl_predictor_forward.1} parent=1 // pred_check_branch
      %63 = sbr.rel (0) target = $region33
    $region32: #{chl_predictor_forward.1} parent=1 // pred_region
      _
    $region33: #{chl_predictor_forward.1} parent=1 // pred_fallthru
      _
    // Predicated region
    $region34: #{chl_predictor_forward.1} parent=1 // pred_check
      _
    $region35: #{chl_predictor_forward.1} parent=1 // pred_check_branch
      %65 = sbr.rel (0) target = $region37
    $region36: #{chl_predictor_forward.1} parent=1 // pred_region
      _
    $region37: #{chl_predictor_forward.1} parent=1 // pred_fallthru
      _
    // Predicated region
    $region38: #{chl_predictor_forward.1} parent=1 // pred_check
      _
    $region39: #{chl_predictor_forward.1} parent=1 // pred_check_branch
      %67 = sbr.rel (0) target = $region41
    $region40: #{chl_predictor_forward.1} parent=1 // pred_region
      %68 = dma.done [#allocation4], 1536
    $region41: #{chl_predictor_forward.1} parent=1 // pred_fallthru
      _
    // Predicated region
    $region42: #{chl_predictor_forward.1} parent=1 // pred_check
      _
    $region43: #{chl_predictor_forward.1} parent=1 // pred_check_branch
      %70 = sbr.rel (0) target = $region45
    $region44: #{chl_predictor_forward.1} parent=1 // pred_region
      %71 = dma.done [#allocation6], 1536
    $region45: #{chl_predictor_forward.1} parent=1 // pred_fallthru
      _
    // Predicated region
    $region46: #{chl_predictor_forward.1} parent=1 // pred_check
      _
    $region47: #{chl_predictor_forward.1} parent=1 // pred_check_branch
      %73 = sbr.rel (0) target = $region49
    $region48: #{chl_predictor_forward.1} parent=1 // pred_region
      %74 = dma.done [#allocation6], 1536
    $region49: #{chl_predictor_forward.1} parent=1 // pred_fallthru
      _
    %v75 = vld [vmem:[%s0] sm:$0xff]
    %v76 = vld [vmem:[%s0 + $0x8] sm:$0xff]
    %v77 = vld [vmem:[%s3] sm:$0xf]
    %v78 = vld [vmem:[%s1] sm:$0xf]
    %v79 = vlaneseq
    %v80 = vshrl.u32 %v79, 7
    %v81 = vsub.s32 0, %v80
    %v82 = vrot.slane %v77, %v81
    %vm83 = vcmask 31744
    %v85 = vsel %vm83, %v75, 0
    %v88 = vsel %vm83, %v76, 0
    %vm90 = vcmask 1043456
    %v92 = vsel %vm90, %v78, 0
    %94 = vmatprep.subr.mxu0 0.0
    %95 = vmatpush1.msra.mxu0 %v92
    %96 = vmatprep.subr.mxu0 0.0
    %97 = vmatpush1.msra.mxu0 0.0
    %98 = vmatprep.subr.mxu0 0.0
    %99 = vmatpush1.msra.mxu0 0.0
    %100 = vmatprep.subr.mxu0 0.0
    %101 = vmatpush1.msra.mxu0 0.0
    %102 = vmatprep.subr.mxu0 0.0
    %103 = vmatpush1.msra.mxu0 0.0
    %104 = vmatprep.subr.mxu0 0.0
    %105 = vmatpush1.msra.mxu0 0.0
    %106 = vmatprep.subr.mxu0 0.0
    %107 = vmatpush1.msra.mxu0 0.0
    %108 = vmatprep.subr.mxu0 0.0
    %109 = vmatpush1.msra.mxu0 0.0
    %110 = vmatprep.subr.mxu0 0.0
    %111 = vmatpush1.msra.mxu0 0.0
    %112 = vmatprep.subr.mxu0 0.0
    %113 = vmatpush1.msra.mxu0 0.0
    %114 = vmatprep.subr.mxu0 0.0
    %115 = vmatpush1.msra.mxu0 0.0
    %116 = vmatprep.subr.mxu0 0.0
    %117 = vmatpush1.msra.mxu0 0.0
    %118 = vmatprep.subr.mxu0 0.0
    %119 = vmatpush1.msra.mxu0 0.0
    %120 = vmatprep.subr.mxu0 0.0
    %121 = vmatpush1.msra.mxu0 0.0
    %122 = vmatprep.subr.mxu0 0.0
    %123 = vmatpush1.msra.mxu0 0.0
    %124 = vmatprep.subr.mxu0 0.0
    %125 = vmatpush1.msra.mxu0 0.0
    %126 = vmatprep.subr.mxu0 0.0
    %127 = vmatpush1.msra.mxu0 0.0
    %128 = vmatprep.subr.mxu0 0.0
    %129 = vmatpush1.msra.mxu0 0.0
    %130 = vmatprep.subr.mxu0 0.0
    %131 = vmatpush1.msra.mxu0 0.0
    %132 = vmatprep.subr.mxu0 0.0
    %133 = vmatpush1.msra.mxu0 0.0
    %134 = vmatprep.subr.mxu0 0.0
    %135 = vmatpush1.msra.mxu0 0.0
    %136 = vmatprep.subr.mxu0 0.0
    %137 = vmatpush1.msra.mxu0 0.0
    %138 = vmatprep.subr.mxu0 0.0
    %139 = vmatpush1.msra.mxu0 0.0
    %140 = vmatprep.subr.mxu0 0.0
    %141 = vmatpush1.msra.mxu0 0.0
    %142 = vmatprep.subr.mxu0 0.0
    %143 = vmatpush1.msra.mxu0 0.0
    %144 = vmatprep.subr.mxu0 0.0
    %145 = vmatpush1.msra.mxu0 0.0
    %146 = vmatprep.subr.mxu0 0.0
    %147 = vmatpush1.msra.mxu0 0.0
    %148 = vmatprep.subr.mxu0 0.0
    %149 = vmatpush1.msra.mxu0 0.0
    %150 = vmatprep.subr.mxu0 0.0
    %151 = vmatpush1.msra.mxu0 0.0
    %152 = vmatprep.subr.mxu0 0.0
    %153 = vmatpush1.msra.mxu0 0.0
    %154 = vmatprep.subr.mxu0 0.0
    %155 = vmatpush1.msra.mxu0 0.0
    %156 = vmatprep.subr.mxu0 0.0
    %157 = vmatpush1.msra.mxu0 0.0
    %158 = vmatprep.mubr.f32.mxu0 0.0
    %159 = vmatmul.mubr.f32.gmra.mrb[0].mxu0 %v85
    %v160 = vpop.f32.mrb[0].mxu0
    %v161 = vadd.f32 %v82, %v160
    %v162 = vpop.f32.mrb[0].mxu0
    %163 = vmatprep.mubr.f32.mxu0 0.0
    %164 = vmatmul.mubr.f32.gmra.mrb[0].mxu0 %v88
    %v165 = vpop.f32.mrb[0].mxu0
    %v166 = vadd.f32 %v82, %v165
    %v167 = vpop.f32.mrb[0].mxu0
    %168 = vdwg.mxu0
    %s169 = scalar_lea.vmem %s1, 4
    %v170 = vld [vmem:[%s169] sm:$0xf]
    %v171 = vlaneseq
    %v172 = vshrl.u32 %v171, 7
    %v173 = vsub.s32 1, %v172
    %v174 = vrot.slane %v77, %v173
    %v176 = vsel %vm90, %v170, 0
    %178 = vmatprep.subr.mxu0 0.0
    %179 = vmatpush1.msra.mxu0 %v176
    %180 = vmatprep.subr.mxu0 0.0
    %181 = vmatpush1.msra.mxu0 0.0
    %182 = vmatprep.subr.mxu0 0.0
    %183 = vmatpush1.msra.mxu0 0.0
    %184 = vmatprep.subr.mxu0 0.0
    %185 = vmatpush1.msra.mxu0 0.0
    %186 = vmatprep.subr.mxu0 0.0
    %187 = vmatpush1.msra.mxu0 0.0
    %188 = vmatprep.subr.mxu0 0.0
    %189 = vmatpush1.msra.mxu0 0.0
    %190 = vmatprep.subr.mxu0 0.0
    %191 = vmatpush1.msra.mxu0 0.0
    %192 = vmatprep.subr.mxu0 0.0
    %193 = vmatpush1.msra.mxu0 0.0
    %194 = vmatprep.subr.mxu0 0.0
    %195 = vmatpush1.msra.mxu0 0.0
    %196 = vmatprep.subr.mxu0 0.0
    %197 = vmatpush1.msra.mxu0 0.0
    %198 = vmatprep.subr.mxu0 0.0
    %199 = vmatpush1.msra.mxu0 0.0
    %200 = vmatprep.subr.mxu0 0.0
    %201 = vmatpush1.msra.mxu0 0.0
    %202 = vmatprep.subr.mxu0 0.0
    %203 = vmatpush1.msra.mxu0 0.0
    %204 = vmatprep.subr.mxu0 0.0
    %205 = vmatpush1.msra.mxu0 0.0
    %206 = vmatprep.subr.mxu0 0.0
    %207 = vmatpush1.msra.mxu0 0.0
    %208 = vmatprep.subr.mxu0 0.0
    %209 = vmatpush1.msra.mxu0 0.0
    %210 = vmatprep.subr.mxu0 0.0
    %211 = vmatpush1.msra.mxu0 0.0
    %212 = vmatprep.subr.mxu0 0.0
    %213 = vmatpush1.msra.mxu0 0.0
    %214 = vmatprep.subr.mxu0 0.0
    %215 = vmatpush1.msra.mxu0 0.0
    %216 = vmatprep.subr.mxu0 0.0
    %217 = vmatpush1.msra.mxu0 0.0
    %218 = vmatprep.subr.mxu0 0.0
    %219 = vmatpush1.msra.mxu0 0.0
    %220 = vmatprep.subr.mxu0 0.0
    %221 = vmatpush1.msra.mxu0 0.0
    %222 = vmatprep.subr.mxu0 0.0
    %223 = vmatpush1.msra.mxu0 0.0
    %224 = vmatprep.subr.mxu0 0.0
    %225 = vmatpush1.msra.mxu0 0.0
    %226 = vmatprep.subr.mxu0 0.0
    %227 = vmatpush1.msra.mxu0 0.0
    %228 = vmatprep.subr.mxu0 0.0
    %229 = vmatpush1.msra.mxu0 0.0
    %230 = vmatprep.subr.mxu0 0.0
    %231 = vmatpush1.msra.mxu0 0.0
    %232 = vmatprep.subr.mxu0 0.0
    %233 = vmatpush1.msra.mxu0 0.0
    %234 = vmatprep.subr.mxu0 0.0
    %235 = vmatpush1.msra.mxu0 0.0
    %236 = vmatprep.subr.mxu0 0.0
    %237 = vmatpush1.msra.mxu0 0.0
    %238 = vmatprep.subr.mxu0 0.0
    %239 = vmatpush1.msra.mxu0 0.0
    %240 = vmatprep.subr.mxu0 0.0
    %241 = vmatpush1.msra.mxu0 0.0
    %242 = vmatprep.mubr.f32.mxu0 0.0
    %243 = vmatmul.mubr.f32.gmra.mrb[0].mxu0 %v85
    %v244 = vpop.f32.mrb[0].mxu0
    %v245 = vadd.f32 %v174, %v244
    %v246 = vpop.f32.mrb[0].mxu0
    %247 = vmatprep.mubr.f32.mxu0 0.0
    %248 = vmatmul.mubr.f32.gmra.mrb[0].mxu0 %v88
    %v249 = vpop.f32.mrb[0].mxu0
    %v250 = vadd.f32 %v174, %v249
    %v251 = vpop.f32.mrb[0].mxu0
    %252 = vdwg.mxu0
    %s253 = scalar_lea.vmem %s1, 8
    %v254 = vld [vmem:[%s253] sm:$0xf]
    %v255 = vlaneseq
    %v256 = vshrl.u32 %v255, 7
    %v257 = vsub.s32 2, %v256
    %v258 = vrot.slane %v77, %v257
    %v260 = vsel %vm90, %v254, 0
    %262 = vmatprep.subr.mxu0 0.0
    %263 = vmatpush1.msra.mxu0 %v260
    %264 = vmatprep.subr.mxu0 0.0
    %265 = vmatpush1.msra.mxu0 0.0
    %266 = vmatprep.subr.mxu0 0.0
    %267 = vmatpush1.msra.mxu0 0.0
    %268 = vmatprep.subr.mxu0 0.0
    %269 = vmatpush1.msra.mxu0 0.0
    %270 = vmatprep.subr.mxu0 0.0
    %271 = vmatpush1.msra.mxu0 0.0
    %272 = vmatprep.subr.mxu0 0.0
    %273 = vmatpush1.msra.mxu0 0.0
    %274 = vmatprep.subr.mxu0 0.0
    %275 = vmatpush1.msra.mxu0 0.0
    %276 = vmatprep.subr.mxu0 0.0
    %277 = vmatpush1.msra.mxu0 0.0
    %278 = vmatprep.subr.mxu0 0.0
    %279 = vmatpush1.msra.mxu0 0.0
    %280 = vmatprep.subr.mxu0 0.0
    %281 = vmatpush1.msra.mxu0 0.0
    %282 = vmatprep.subr.mxu0 0.0
    %283 = vmatpush1.msra.mxu0 0.0
    %284 = vmatprep.subr.mxu0 0.0
    %285 = vmatpush1.msra.mxu0 0.0
    %286 = vmatprep.subr.mxu0 0.0
    %287 = vmatpush1.msra.mxu0 0.0
    %288 = vmatprep.subr.mxu0 0.0
    %289 = vmatpush1.msra.mxu0 0.0
    %290 = vmatprep.subr.mxu0 0.0
    %291 = vmatpush1.msra.mxu0 0.0
    %292 = vmatprep.subr.mxu0 0.0
    %293 = vmatpush1.msra.mxu0 0.0
    %294 = vmatprep.subr.mxu0 0.0
    %295 = vmatpush1.msra.mxu0 0.0
    %296 = vmatprep.subr.mxu0 0.0
    %297 = vmatpush1.msra.mxu0 0.0
    %298 = vmatprep.subr.mxu0 0.0
    %299 = vmatpush1.msra.mxu0 0.0
    %300 = vmatprep.subr.mxu0 0.0
    %301 = vmatpush1.msra.mxu0 0.0
    %302 = vmatprep.subr.mxu0 0.0
    %303 = vmatpush1.msra.mxu0 0.0
    %304 = vmatprep.subr.mxu0 0.0
    %305 = vmatpush1.msra.mxu0 0.0
    %306 = vmatprep.subr.mxu0 0.0
    %307 = vmatpush1.msra.mxu0 0.0
    %308 = vmatprep.subr.mxu0 0.0
    %309 = vmatpush1.msra.mxu0 0.0
    %310 = vmatprep.subr.mxu0 0.0
    %311 = vmatpush1.msra.mxu0 0.0
    %312 = vmatprep.subr.mxu0 0.0
    %313 = vmatpush1.msra.mxu0 0.0
    %314 = vmatprep.subr.mxu0 0.0
    %315 = vmatpush1.msra.mxu0 0.0
    %316 = vmatprep.subr.mxu0 0.0
    %317 = vmatpush1.msra.mxu0 0.0
    %318 = vmatprep.subr.mxu0 0.0
    %319 = vmatpush1.msra.mxu0 0.0
    %320 = vmatprep.subr.mxu0 0.0
    %321 = vmatpush1.msra.mxu0 0.0
    %322 = vmatprep.subr.mxu0 0.0
    %323 = vmatpush1.msra.mxu0 0.0
    %324 = vmatprep.subr.mxu0 0.0
    %325 = vmatpush1.msra.mxu0 0.0
    %326 = vmatprep.mubr.f32.mxu0 0.0
    %327 = vmatmul.mubr.f32.gmra.mrb[0].mxu0 %v85
    %v328 = vpop.f32.mrb[0].mxu0
    %v329 = vadd.f32 %v258, %v328
    %v330 = vpop.f32.mrb[0].mxu0
    %331 = vmatprep.mubr.f32.mxu0 0.0
    %332 = vmatmul.mubr.f32.gmra.mrb[0].mxu0 %v88
    %v333 = vpop.f32.mrb[0].mxu0
    %v334 = vadd.f32 %v258, %v333
    %v335 = vpop.f32.mrb[0].mxu0
    %336 = vdwg.mxu0
    %v337 = vld [vmem:[#allocation3] sm:$0xff]
    %v338 = vld [vmem:[#allocation3 + $0x8] sm:$0xff]
    %v339 = vld [vmem:[#allocation3 + $0x10] sm:$0xff]
    %v340 = vld [vmem:[#allocation3 + $0x18] sm:$0xff]
    %s341 = scalar_lea.vmem [#allocation3], 32
    %v342 = vld [vmem:[%s341] sm:$0xff]
    %v343 = vld [vmem:[%s341 + $0x8] sm:$0xff]
    %v344 = vld [vmem:[%s341 + $0x10] sm:$0xff]
    %v345 = vld [vmem:[%s341 + $0x18] sm:$0xff]
    %s346 = scalar_lea.vmem [#allocation3], 64
    %v347 = vld [vmem:[%s346] sm:$0xff]
    %v348 = vld [vmem:[%s346 + $0x8] sm:$0xff]
    %v349 = vld [vmem:[%s346 + $0x10] sm:$0xff]
    %v350 = vld [vmem:[%s346 + $0x18] sm:$0xff]
    %v351 = vlaneseq
    %v352 = vshrl.u32 %v351, 7
    %v353 = vsub.s32 3, %v352
    %v354 = vrot.slane %v77, %v353
    %vm355 = vcmask 261120
    %v357 = vsel %vm355, 0.0, 0
    %359 = vmatprep.subr.mxu0 0.0
    %360 = vmatpush1.msra.mxu0 %v337
    %361 = vmatprep.subr.mxu0 0.0
    %362 = vmatpush1.msra.mxu0 %v338
    %363 = vmatprep.subr.mxu0 0.0
    %364 = vmatpush1.msra.mxu0 %v339
    %365 = vmatprep.subr.mxu0 0.0
    %366 = vmatpush1.msra.mxu0 %v340
    %367 = vmatprep.subr.mxu0 0.0
    %368 = vmatpush1.msra.mxu0 0.0
    %369 = vmatprep.subr.mxu0 0.0
    %370 = vmatpush1.msra.mxu0 0.0
    %371 = vmatprep.subr.mxu0 0.0
    %372 = vmatpush1.msra.mxu0 0.0
    %373 = vmatprep.subr.mxu0 0.0
    %374 = vmatpush1.msra.mxu0 0.0
    %375 = vmatprep.subr.mxu0 0.0
    %376 = vmatpush1.msra.mxu0 0.0
    %377 = vmatprep.subr.mxu0 0.0
    %378 = vmatpush1.msra.mxu0 0.0
    %379 = vmatprep.subr.mxu0 0.0
    %380 = vmatpush1.msra.mxu0 0.0
    %381 = vmatprep.subr.mxu0 0.0
    %382 = vmatpush1.msra.mxu0 0.0
    %383 = vmatprep.subr.mxu0 0.0
    %384 = vmatpush1.msra.mxu0 0.0
    %385 = vmatprep.subr.mxu0 0.0
    %386 = vmatpush1.msra.mxu0 0.0
    %387 = vmatprep.subr.mxu0 0.0
    %388 = vmatpush1.msra.mxu0 0.0
    %389 = vmatprep.subr.mxu0 0.0
    %390 = vmatpush1.msra.mxu0 0.0
    %391 = vmatprep.subr.mxu0 0.0
    %392 = vmatpush1.msra.mxu0 0.0
    %393 = vmatprep.subr.mxu0 0.0
    %394 = vmatpush1.msra.mxu0 0.0
    %395 = vmatprep.subr.mxu0 0.0
    %396 = vmatpush1.msra.mxu0 0.0
    %397 = vmatprep.subr.mxu0 0.0
    %398 = vmatpush1.msra.mxu0 0.0
    %399 = vmatprep.subr.mxu0 0.0
    %400 = vmatpush1.msra.mxu0 0.0
    %401 = vmatprep.subr.mxu0 0.0
    %402 = vmatpush1.msra.mxu0 0.0
    %403 = vmatprep.subr.mxu0 0.0
    %404 = vmatpush1.msra.mxu0 0.0
    %405 = vmatprep.subr.mxu0 0.0
    %406 = vmatpush1.msra.mxu0 0.0
    %407 = vmatprep.subr.mxu0 0.0
    %408 = vmatpush1.msra.mxu0 0.0
    %409 = vmatprep.subr.mxu0 0.0
    %410 = vmatpush1.msra.mxu0 0.0
    %411 = vmatprep.subr.mxu0 0.0
    %412 = vmatpush1.msra.mxu0 0.0
    %413 = vmatprep.subr.mxu0 0.0
    %414 = vmatpush1.msra.mxu0 0.0
    %415 = vmatprep.subr.mxu0 0.0
    %416 = vmatpush1.msra.mxu0 0.0
    %417 = vmatprep.subr.mxu0 0.0
    %418 = vmatpush1.msra.mxu0 0.0
    %419 = vmatprep.subr.mxu0 0.0
    %420 = vmatpush1.msra.mxu0 0.0
    %421 = vmatprep.subr.mxu0 0.0
    %422 = vmatpush1.msra.mxu0 0.0
    %423 = vmatprep.mubr.f32.mxu0 0.0
    %424 = vmatmul.mubr.f32.gmra.mrb[0].mxu0 %v357
    %v425 = vpop.f32.mrb[0].mxu0
    %v426 = vadd.f32 0.0, %v425
    %v427 = vpop.f32.mrb[0].mxu0
    %428 = vdwg.mxu0
    %429 = vmatprep.subr.mxu0 0.0
    %430 = vmatpush1.msra.mxu0 %v342
    %431 = vmatprep.subr.mxu0 0.0
    %432 = vmatpush1.msra.mxu0 %v343
    %433 = vmatprep.subr.mxu0 0.0
    %434 = vmatpush1.msra.mxu0 %v344
    %435 = vmatprep.subr.mxu0 0.0
    %436 = vmatpush1.msra.mxu0 %v345
    %437 = vmatprep.subr.mxu0 0.0
    %438 = vmatpush1.msra.mxu0 0.0
    %439 = vmatprep.subr.mxu0 0.0
    %440 = vmatpush1.msra.mxu0 0.0
    %441 = vmatprep.subr.mxu0 0.0
    %442 = vmatpush1.msra.mxu0 0.0
    %443 = vmatprep.subr.mxu0 0.0
    %444 = vmatpush1.msra.mxu0 0.0
    %445 = vmatprep.subr.mxu0 0.0
    %446 = vmatpush1.msra.mxu0 0.0
    %447 = vmatprep.subr.mxu0 0.0
    %448 = vmatpush1.msra.mxu0 0.0
    %449 = vmatprep.subr.mxu0 0.0
    %450 = vmatpush1.msra.mxu0 0.0
    %451 = vmatprep.subr.mxu0 0.0
    %452 = vmatpush1.msra.mxu0 0.0
    %453 = vmatprep.subr.mxu0 0.0
    %454 = vmatpush1.msra.mxu0 0.0
    %455 = vmatprep.subr.mxu0 0.0
    %456 = vmatpush1.msra.mxu0 0.0
    %457 = vmatprep.subr.mxu0 0.0
    %458 = vmatpush1.msra.mxu0 0.0
    %459 = vmatprep.subr.mxu0 0.0
    %460 = vmatpush1.msra.mxu0 0.0
    %461 = vmatprep.subr.mxu0 0.0
    %462 = vmatpush1.msra.mxu0 0.0
    %463 = vmatprep.subr.mxu0 0.0
    %464 = vmatpush1.msra.mxu0 0.0
    %465 = vmatprep.subr.mxu0 0.0
    %466 = vmatpush1.msra.mxu0 0.0
    %467 = vmatprep.subr.mxu0 0.0
    %468 = vmatpush1.msra.mxu0 0.0
    %469 = vmatprep.subr.mxu0 0.0
    %470 = vmatpush1.msra.mxu0 0.0
    %471 = vmatprep.subr.mxu0 0.0
    %472 = vmatpush1.msra.mxu0 0.0
    %473 = vmatprep.subr.mxu0 0.0
    %474 = vmatpush1.msra.mxu0 0.0
    %475 = vmatprep.subr.mxu0 0.0
    %476 = vmatpush1.msra.mxu0 0.0
    %477 = vmatprep.subr.mxu0 0.0
    %478 = vmatpush1.msra.mxu0 0.0
    %479 = vmatprep.subr.mxu0 0.0
    %480 = vmatpush1.msra.mxu0 0.0
    %481 = vmatprep.subr.mxu0 0.0
    %482 = vmatpush1.msra.mxu0 0.0
    %483 = vmatprep.subr.mxu0 0.0
    %484 = vmatpush1.msra.mxu0 0.0
    %485 = vmatprep.subr.mxu0 0.0
    %486 = vmatpush1.msra.mxu0 0.0
    %487 = vmatprep.subr.mxu0 0.0
    %488 = vmatpush1.msra.mxu0 0.0
    %489 = vmatprep.subr.mxu0 0.0
    %490 = vmatpush1.msra.mxu0 0.0
    %491 = vmatprep.subr.mxu0 0.0
    %492 = vmatpush1.msra.mxu0 0.0
    %493 = vmatprep.mubr.f32.mxu0 0.0
    %494 = vmatmul.mubr.f32.gmra.mrb[0].mxu0 %v357
    %v495 = vpop.f32.mrb[0].mxu0
    %v496 = vadd.f32 0.0, %v495
    %v497 = vpop.f32.mrb[0].mxu0
    %498 = vdwg.mxu0
    %v499 = vadd.f32 %v161, %v426
    %v500 = vxor.u32 %v499, 2147483648
    %v501 = vmul.f32 %v500, 1.442695
    %v502 = vpow.pop %v501
    %v503 = vadd.f32 %v502, 1.0
    %v504 = vrcp.pop %v503
    %v505 = vmul.f32 1.0, %v504
    %v506 = vadd.f32 %v245, %v496
    %v507 = vxor.u32 %v506, 2147483648
    %v508 = vmul.f32 %v507, 1.442695
    %v509 = vpow.pop %v508
    %v510 = vadd.f32 %v509, 1.0
    %v511 = vrcp.pop %v510
    %v512 = vmul.f32 1.0, %v511
    %513 = vmatprep.subr.mxu0 0.0
    %514 = vmatpush1.msra.mxu0 %v347
    %515 = vmatprep.subr.mxu0 0.0
    %516 = vmatpush1.msra.mxu0 %v348
    %517 = vmatprep.subr.mxu0 0.0
    %518 = vmatpush1.msra.mxu0 %v349
    %519 = vmatprep.subr.mxu0 0.0
    %520 = vmatpush1.msra.mxu0 %v350
    %521 = vmatprep.subr.mxu0 0.0
    %522 = vmatpush1.msra.mxu0 0.0
    %523 = vmatprep.subr.mxu0 0.0
    %524 = vmatpush1.msra.mxu0 0.0
    %525 = vmatprep.subr.mxu0 0.0
    %526 = vmatpush1.msra.mxu0 0.0
    %527 = vmatprep.subr.mxu0 0.0
    %528 = vmatpush1.msra.mxu0 0.0
    %529 = vmatprep.subr.mxu0 0.0
    %530 = vmatpush1.msra.mxu0 0.0
    %531 = vmatprep.subr.mxu0 0.0
    %532 = vmatpush1.msra.mxu0 0.0
    %533 = vmatprep.subr.mxu0 0.0
    %534 = vmatpush1.msra.mxu0 0.0
    %535 = vmatprep.subr.mxu0 0.0
    %536 = vmatpush1.msra.mxu0 0.0
    %537 = vmatprep.subr.mxu0 0.0
    %538 = vmatpush1.msra.mxu0 0.0
    %539 = vmatprep.subr.mxu0 0.0
    %540 = vmatpush1.msra.mxu0 0.0
    %541 = vmatprep.subr.mxu0 0.0
    %542 = vmatpush1.msra.mxu0 0.0
    %543 = vmatprep.subr.mxu0 0.0
    %544 = vmatpush1.msra.mxu0 0.0
    %545 = vmatprep.subr.mxu0 0.0
    %546 = vmatpush1.msra.mxu0 0.0
    %547 = vmatprep.subr.mxu0 0.0
    %548 = vmatpush1.msra.mxu0 0.0
    %549 = vmatprep.subr.mxu0 0.0
    %550 = vmatpush1.msra.mxu0 0.0
    %551 = vmatprep.subr.mxu0 0.0
    %552 = vmatpush1.msra.mxu0 0.0
    %553 = vmatprep.subr.mxu0 0.0
    %554 = vmatpush1.msra.mxu0 0.0
    %555 = vmatprep.subr.mxu0 0.0
    %556 = vmatpush1.msra.mxu0 0.0
    %557 = vmatprep.subr.mxu0 0.0
    %558 = vmatpush1.msra.mxu0 0.0
    %559 = vmatprep.subr.mxu0 0.0
    %560 = vmatpush1.msra.mxu0 0.0
    %561 = vmatprep.subr.mxu0 0.0
    %562 = vmatpush1.msra.mxu0 0.0
    %563 = vmatprep.subr.mxu0 0.0
    %564 = vmatpush1.msra.mxu0 0.0
    %565 = vmatprep.subr.mxu0 0.0
    %566 = vmatpush1.msra.mxu0 0.0
    %567 = vmatprep.subr.mxu0 0.0
    %568 = vmatpush1.msra.mxu0 0.0
    %569 = vmatprep.subr.mxu0 0.0
    %570 = vmatpush1.msra.mxu0 0.0
    %571 = vmatprep.subr.mxu0 0.0
    %572 = vmatpush1.msra.mxu0 0.0
    %573 = vmatprep.subr.mxu0 0.0
    %574 = vmatpush1.msra.mxu0 0.0
    %575 = vmatprep.subr.mxu0 0.0
    %576 = vmatpush1.msra.mxu0 0.0
    %577 = vmatprep.mubr.f32.mxu0 0.0
    %578 = vmatmul.mubr.f32.gmra.mrb[0].mxu0 %v357
    %v579 = vpop.f32.mrb[0].mxu0
    %v580 = vadd.f32 %v354, %v579
    %v581 = vpop.f32.mrb[0].mxu0
    %582 = vdwg.mxu0
    %v583 = vmul.f32 %v505, %v580
    %v584 = vadd.f32 %v329, %v583
    %v585 = vtanh.pop %v584
    %v586 = vsub.f32 1.0, %v512
    %v587 = vmul.f32 %v586, %v585
    %v588 = vmul.f32 %v512, 0.0
    %v589 = vadd.f32 %v587, %v588
    %v591 = vsel %vm355, %v589, 0
    %593 = vmatprep.subr.mxu0 0.0
    %594 = vmatpush1.msra.mxu0 %v337
    %595 = vmatprep.subr.mxu0 0.0
    %596 = vmatpush1.msra.mxu0 %v338
    %597 = vmatprep.subr.mxu0 0.0
    %598 = vmatpush1.msra.mxu0 %v339
    %599 = vmatprep.subr.mxu0 0.0
    %600 = vmatpush1.msra.mxu0 %v340
    %601 = vmatprep.subr.mxu0 0.0
    %602 = vmatpush1.msra.mxu0 0.0
    %603 = vmatprep.subr.mxu0 0.0
    %604 = vmatpush1.msra.mxu0 0.0
    %605 = vmatprep.subr.mxu0 0.0
    %606 = vmatpush1.msra.mxu0 0.0
    %607 = vmatprep.subr.mxu0 0.0
    %608 = vmatpush1.msra.mxu0 0.0
    %609 = vmatprep.subr.mxu0 0.0
    %610 = vmatpush1.msra.mxu0 0.0
    %611 = vmatprep.subr.mxu0 0.0
    %612 = vmatpush1.msra.mxu0 0.0
    %613 = vmatprep.subr.mxu0 0.0
    %614 = vmatpush1.msra.mxu0 0.0
    %615 = vmatprep.subr.mxu0 0.0
    %616 = vmatpush1.msra.mxu0 0.0
    %617 = vmatprep.subr.mxu0 0.0
    %618 = vmatpush1.msra.mxu0 0.0
    %619 = vmatprep.subr.mxu0 0.0
    %620 = vmatpush1.msra.mxu0 0.0
    %621 = vmatprep.subr.mxu0 0.0
    %622 = vmatpush1.msra.mxu0 0.0
    %623 = vmatprep.subr.mxu0 0.0
    %624 = vmatpush1.msra.mxu0 0.0
    %625 = vmatprep.subr.mxu0 0.0
    %626 = vmatpush1.msra.mxu0 0.0
    %627 = vmatprep.subr.mxu0 0.0
    %628 = vmatpush1.msra.mxu0 0.0
    %629 = vmatprep.subr.mxu0 0.0
    %630 = vmatpush1.msra.mxu0 0.0
    %631 = vmatprep.subr.mxu0 0.0
    %632 = vmatpush1.msra.mxu0 0.0
    %633 = vmatprep.subr.mxu0 0.0
    %634 = vmatpush1.msra.mxu0 0.0
    %635 = vmatprep.subr.mxu0 0.0
    %636 = vmatpush1.msra.mxu0 0.0
    %637 = vmatprep.subr.mxu0 0.0
    %638 = vmatpush1.msra.mxu0 0.0
    %639 = vmatprep.subr.mxu0 0.0
    %640 = vmatpush1.msra.mxu0 0.0
    %641 = vmatprep.subr.mxu0 0.0
    %642 = vmatpush1.msra.mxu0 0.0
    %643 = vmatprep.subr.mxu0 0.0
    %644 = vmatpush1.msra.mxu0 0.0
    %645 = vmatprep.subr.mxu0 0.0
    %646 = vmatpush1.msra.mxu0 0.0
    %647 = vmatprep.subr.mxu0 0.0
    %648 = vmatpush1.msra.mxu0 0.0
    %649 = vmatprep.subr.mxu0 0.0
    %650 = vmatpush1.msra.mxu0 0.0
    %651 = vmatprep.subr.mxu0 0.0
    %652 = vmatpush1.msra.mxu0 0.0
    %653 = vmatprep.subr.mxu0 0.0
    %654 = vmatpush1.msra.mxu0 0.0
    %655 = vmatprep.subr.mxu0 0.0
    %656 = vmatpush1.msra.mxu0 0.0
    %657 = vmatprep.mubr.f32.mxu0 0.0
    %658 = vmatmul.mubr.f32.gmra.mrb[0].mxu0 %v591
    %v659 = vpop.f32.mrb[0].mxu0
    %v660 = vadd.f32 0.0, %v659
    %v661 = vpop.f32.mrb[0].mxu0
    %662 = vdwg.mxu0
    %663 = vmatprep.subr.mxu0 0.0
    %664 = vmatpush1.msra.mxu0 %v342
    %665 = vmatprep.subr.mxu0 0.0
    %666 = vmatpush1.msra.mxu0 %v343
    %667 = vmatprep.subr.mxu0 0.0
    %668 = vmatpush1.msra.mxu0 %v344
    %669 = vmatprep.subr.mxu0 0.0
    %670 = vmatpush1.msra.mxu0 %v345
    %671 = vmatprep.subr.mxu0 0.0
    %672 = vmatpush1.msra.mxu0 0.0
    %673 = vmatprep.subr.mxu0 0.0
    %674 = vmatpush1.msra.mxu0 0.0
    %675 = vmatprep.subr.mxu0 0.0
    %676 = vmatpush1.msra.mxu0 0.0
    %677 = vmatprep.subr.mxu0 0.0
    %678 = vmatpush1.msra.mxu0 0.0
    %679 = vmatprep.subr.mxu0 0.0
    %680 = vmatpush1.msra.mxu0 0.0
    %681 = vmatprep.subr.mxu0 0.0
    %682 = vmatpush1.msra.mxu0 0.0
    %683 = vmatprep.subr.mxu0 0.0
    %684 = vmatpush1.msra.mxu0 0.0
    %685 = vmatprep.subr.mxu0 0.0
    %686 = vmatpush1.msra.mxu0 0.0
    %687 = vmatprep.subr.mxu0 0.0
    %688 = vmatpush1.msra.mxu0 0.0
    %689 = vmatprep.subr.mxu0 0.0
    %690 = vmatpush1.msra.mxu0 0.0
    %691 = vmatprep.subr.mxu0 0.0
    %692 = vmatpush1.msra.mxu0 0.0
    %693 = vmatprep.subr.mxu0 0.0
    %694 = vmatpush1.msra.mxu0 0.0
    %695 = vmatprep.subr.mxu0 0.0
    %696 = vmatpush1.msra.mxu0 0.0
    %697 = vmatprep.subr.mxu0 0.0
    %698 = vmatpush1.msra.mxu0 0.0
    %699 = vmatprep.subr.mxu0 0.0
    %700 = vmatpush1.msra.mxu0 0.0
    %701 = vmatprep.subr.mxu0 0.0
    %702 = vmatpush1.msra.mxu0 0.0
    %703 = vmatprep.subr.mxu0 0.0
    %704 = vmatpush1.msra.mxu0 0.0
    %705 = vmatprep.subr.mxu0 0.0
    %706 = vmatpush1.msra.mxu0 0.0
    %707 = vmatprep.subr.mxu0 0.0
    %708 = vmatpush1.msra.mxu0 0.0
    %709 = vmatprep.subr.mxu0 0.0
    %710 = vmatpush1.msra.mxu0 0.0
    %711 = vmatprep.subr.mxu0 0.0
    %712 = vmatpush1.msra.mxu0 0.0
    %713 = vmatprep.subr.mxu0 0.0
    %714 = vmatpush1.msra.mxu0 0.0
    %715 = vmatprep.subr.mxu0 0.0
    %716 = vmatpush1.msra.mxu0 0.0
    %717 = vmatprep.subr.mxu0 0.0
    %718 = vmatpush1.msra.mxu0 0.0
    %719 = vmatprep.subr.mxu0 0.0
    %720 = vmatpush1.msra.mxu0 0.0
    %721 = vmatprep.subr.mxu0 0.0
    %722 = vmatpush1.msra.mxu0 0.0
    %723 = vmatprep.subr.mxu0 0.0
    %724 = vmatpush1.msra.mxu0 0.0
    %725 = vmatprep.subr.mxu0 0.0
    %726 = vmatpush1.msra.mxu0 0.0
    %727 = vmatprep.mubr.f32.mxu0 0.0
    %728 = vmatmul.mubr.f32.gmra.mrb[0].mxu0 %v591
    %v729 = vpop.f32.mrb[0].mxu0
    %v730 = vadd.f32 0.0, %v729
    %v731 = vpop.f32.mrb[0].mxu0
    %732 = vdwg.mxu0
    %v734 = vrot.slane %v660, 6
    %v736 = vadd.f32 %v161, %v734
    %v737 = vxor.u32 %v736, 2147483648
    %v738 = vmul.f32 %v737, 1.442695
    %v739 = vpow.pop %v738
    %v740 = vadd.f32 %v739, 1.0
    %v741 = vrcp.pop %v740
    %v742 = vmul.f32 1.0, %v741
    %v744 = vrot.slane %v730, 6
    %v746 = vadd.f32 %v245, %v744
    %v747 = vxor.u32 %v746, 2147483648
    %v748 = vmul.f32 %v747, 1.442695
    %v749 = vpow.pop %v748
    %v750 = vadd.f32 %v749, 1.0
    %v751 = vrcp.pop %v750
    %v752 = vmul.f32 1.0, %v751
    %753 = vmatprep.subr.mxu0 0.0
    %754 = vmatpush1.msra.mxu0 %v347
    %755 = vmatprep.subr.mxu0 0.0
    %756 = vmatpush1.msra.mxu0 %v348
    %757 = vmatprep.subr.mxu0 0.0
    %758 = vmatpush1.msra.mxu0 %v349
    %759 = vmatprep.subr.mxu0 0.0
    %760 = vmatpush1.msra.mxu0 %v350
    %761 = vmatprep.subr.mxu0 0.0
    %762 = vmatpush1.msra.mxu0 0.0
    %763 = vmatprep.subr.mxu0 0.0
    %764 = vmatpush1.msra.mxu0 0.0
    %765 = vmatprep.subr.mxu0 0.0
    %766 = vmatpush1.msra.mxu0 0.0
    %767 = vmatprep.subr.mxu0 0.0
    %768 = vmatpush1.msra.mxu0 0.0
    %769 = vmatprep.subr.mxu0 0.0
    %770 = vmatpush1.msra.mxu0 0.0
    %771 = vmatprep.subr.mxu0 0.0
    %772 = vmatpush1.msra.mxu0 0.0
    %773 = vmatprep.subr.mxu0 0.0
    %774 = vmatpush1.msra.mxu0 0.0
    %775 = vmatprep.subr.mxu0 0.0
    %776 = vmatpush1.msra.mxu0 0.0
    %777 = vmatprep.subr.mxu0 0.0
    %778 = vmatpush1.msra.mxu0 0.0
    %779 = vmatprep.subr.mxu0 0.0
    %780 = vmatpush1.msra.mxu0 0.0
    %781 = vmatprep.subr.mxu0 0.0
    %782 = vmatpush1.msra.mxu0 0.0
    %783 = vmatprep.subr.mxu0 0.0
    %784 = vmatpush1.msra.mxu0 0.0
    %785 = vmatprep.subr.mxu0 0.0
    %786 = vmatpush1.msra.mxu0 0.0
    %787 = vmatprep.subr.mxu0 0.0
    %788 = vmatpush1.msra.mxu0 0.0
    %789 = vmatprep.subr.mxu0 0.0
    %790 = vmatpush1.msra.mxu0 0.0
    %791 = vmatprep.subr.mxu0 0.0
    %792 = vmatpush1.msra.mxu0 0.0
    %793 = vmatprep.subr.mxu0 0.0
    %794 = vmatpush1.msra.mxu0 0.0
    %795 = vmatprep.subr.mxu0 0.0
    %796 = vmatpush1.msra.mxu0 0.0
    %797 = vmatprep.subr.mxu0 0.0
    %798 = vmatpush1.msra.mxu0 0.0
    %799 = vmatprep.subr.mxu0 0.0
    %800 = vmatpush1.msra.mxu0 0.0
    %801 = vmatprep.subr.mxu0 0.0
    %802 = vmatpush1.msra.mxu0 0.0
    %803 = vmatprep.subr.mxu0 0.0
    %804 = vmatpush1.msra.mxu0 0.0
    %805 = vmatprep.subr.mxu0 0.0
    %806 = vmatpush1.msra.mxu0 0.0
    %807 = vmatprep.subr.mxu0 0.0
    %808 = vmatpush1.msra.mxu0 0.0
    %809 = vmatprep.subr.mxu0 0.0
    %810 = vmatpush1.msra.mxu0 0.0
    %811 = vmatprep.subr.mxu0 0.0
    %812 = vmatpush1.msra.mxu0 0.0
    %813 = vmatprep.subr.mxu0 0.0
    %814 = vmatpush1.msra.mxu0 0.0
    %815 = vmatprep.subr.mxu0 0.0
    %816 = vmatpush1.msra.mxu0 0.0
    %817 = vmatprep.mubr.f32.mxu0 0.0
    %818 = vmatmul.mubr.f32.gmra.mrb[0].mxu0 %v591
    %v819 = vpop.f32.mrb[0].mxu0
    %v820 = vadd.f32 %v354, %v819
    %v821 = vpop.f32.mrb[0].mxu0
    %822 = vdwg.mxu0
    %v824 = vrot.slane %v820, 6
    %v826 = vmul.f32 %v742, %v824
    %v827 = vadd.f32 %v329, %v826
    %v828 = vtanh.pop %v827
    %v829 = vsub.f32 1.0, %v752
    %v830 = vmul.f32 %v829, %v828
    %v831 = vrot.slane %v589, 6
    %v833 = vmul.f32 %v752, %v831
    %v834 = vadd.f32 %v830, %v833
    %v836 = vrot.slane %v834, 2
    %v837 = vsel %vm355, %v836, 0
    %839 = vmatprep.subr.mxu0 0.0
    %840 = vmatpush1.msra.mxu0 %v337
    %841 = vmatprep.subr.mxu0 0.0
    %842 = vmatpush1.msra.mxu0 %v338
    %843 = vmatprep.subr.mxu0 0.0
    %844 = vmatpush1.msra.mxu0 %v339
    %845 = vmatprep.subr.mxu0 0.0
    %846 = vmatpush1.msra.mxu0 %v340
    %847 = vmatprep.subr.mxu0 0.0
    %848 = vmatpush1.msra.mxu0 0.0
    %849 = vmatprep.subr.mxu0 0.0
    %850 = vmatpush1.msra.mxu0 0.0
    %851 = vmatprep.subr.mxu0 0.0
    %852 = vmatpush1.msra.mxu0 0.0
    %853 = vmatprep.subr.mxu0 0.0
    %854 = vmatpush1.msra.mxu0 0.0
    %855 = vmatprep.subr.mxu0 0.0
    %856 = vmatpush1.msra.mxu0 0.0
    %857 = vmatprep.subr.mxu0 0.0
    %858 = vmatpush1.msra.mxu0 0.0
    %859 = vmatprep.subr.mxu0 0.0
    %860 = vmatpush1.msra.mxu0 0.0
    %861 = vmatprep.subr.mxu0 0.0
    %862 = vmatpush1.msra.mxu0 0.0
    %863 = vmatprep.subr.mxu0 0.0
    %864 = vmatpush1.msra.mxu0 0.0
    %865 = vmatprep.subr.mxu0 0.0
    %866 = vmatpush1.msra.mxu0 0.0
    %867 = vmatprep.subr.mxu0 0.0
    %868 = vmatpush1.msra.mxu0 0.0
    %869 = vmatprep.subr.mxu0 0.0
    %870 = vmatpush1.msra.mxu0 0.0
    %871 = vmatprep.subr.mxu0 0.0
    %872 = vmatpush1.msra.mxu0 0.0
    %873 = vmatprep.subr.mxu0 0.0
    %874 = vmatpush1.msra.mxu0 0.0
    %875 = vmatprep.subr.mxu0 0.0
    %876 = vmatpush1.msra.mxu0 0.0
    %877 = vmatprep.subr.mxu0 0.0
    %878 = vmatpush1.msra.mxu0 0.0
    %879 = vmatprep.subr.mxu0 0.0
    %880 = vmatpush1.msra.mxu0 0.0
    %881 = vmatprep.subr.mxu0 0.0
    %882 = vmatpush1.msra.mxu0 0.0
    %883 = vmatprep.subr.mxu0 0.0
    %884 = vmatpush1.msra.mxu0 0.0
    %885 = vmatprep.subr.mxu0 0.0
    %886 = vmatpush1.msra.mxu0 0.0
    %887 = vmatprep.subr.mxu0 0.0
    %888 = vmatpush1.msra.mxu0 0.0
    %889 = vmatprep.subr.mxu0 0.0
    %890 = vmatpush1.msra.mxu0 0.0
    %891 = vmatprep.subr.mxu0 0.0
    %892 = vmatpush1.msra.mxu0 0.0
    %893 = vmatprep.subr.mxu0 0.0
    %894 = vmatpush1.msra.mxu0 0.0
    %895 = vmatprep.subr.mxu0 0.0
    %896 = vmatpush1.msra.mxu0 0.0
    %897 = vmatprep.subr.mxu0 0.0
    %898 = vmatpush1.msra.mxu0 0.0
    %899 = vmatprep.subr.mxu0 0.0
    %900 = vmatpush1.msra.mxu0 0.0
    %901 = vmatprep.subr.mxu0 0.0
    %902 = vmatpush1.msra.mxu0 0.0
    %903 = vmatprep.mubr.f32.mxu0 0.0
    %904 = vmatmul.mubr.f32.gmra.mrb[0].mxu0 %v837
    %v905 = vpop.f32.mrb[0].mxu0
    %v906 = vadd.f32 0.0, %v905
    %v907 = vpop.f32.mrb[0].mxu0
    %908 = vdwg.mxu0
    %909 = vmatprep.subr.mxu0 0.0
    %910 = vmatpush1.msra.mxu0 %v342
    %911 = vmatprep.subr.mxu0 0.0
    %912 = vmatpush1.msra.mxu0 %v343
    %913 = vmatprep.subr.mxu0 0.0
    %914 = vmatpush1.msra.mxu0 %v344
    %915 = vmatprep.subr.mxu0 0.0
    %916 = vmatpush1.msra.mxu0 %v345
    %917 = vmatprep.subr.mxu0 0.0
    %918 = vmatpush1.msra.mxu0 0.0
    %919 = vmatprep.subr.mxu0 0.0
    %920 = vmatpush1.msra.mxu0 0.0
    %921 = vmatprep.subr.mxu0 0.0
    %922 = vmatpush1.msra.mxu0 0.0
    %923 = vmatprep.subr.mxu0 0.0
    %924 = vmatpush1.msra.mxu0 0.0
    %925 = vmatprep.subr.mxu0 0.0
    %926 = vmatpush1.msra.mxu0 0.0
    %927 = vmatprep.subr.mxu0 0.0
    %928 = vmatpush1.msra.mxu0 0.0
    %929 = vmatprep.subr.mxu0 0.0
    %930 = vmatpush1.msra.mxu0 0.0
    %931 = vmatprep.subr.mxu0 0.0
    %932 = vmatpush1.msra.mxu0 0.0
    %933 = vmatprep.subr.mxu0 0.0
    %934 = vmatpush1.msra.mxu0 0.0
    %935 = vmatprep.subr.mxu0 0.0
    %936 = vmatpush1.msra.mxu0 0.0
    %937 = vmatprep.subr.mxu0 0.0
    %938 = vmatpush1.msra.mxu0 0.0
    %939 = vmatprep.subr.mxu0 0.0
    %940 = vmatpush1.msra.mxu0 0.0
    %941 = vmatprep.subr.mxu0 0.0
    %942 = vmatpush1.msra.mxu0 0.0
    %943 = vmatprep.subr.mxu0 0.0
    %944 = vmatpush1.msra.mxu0 0.0
    %945 = vmatprep.subr.mxu0 0.0
    %946 = vmatpush1.msra.mxu0 0.0
    %947 = vmatprep.subr.mxu0 0.0
    %948 = vmatpush1.msra.mxu0 0.0
    %949 = vmatprep.subr.mxu0 0.0
    %950 = vmatpush1.msra.mxu0 0.0
    %951 = vmatprep.subr.mxu0 0.0
    %952 = vmatpush1.msra.mxu0 0.0
    %953 = vmatprep.subr.mxu0 0.0
    %954 = vmatpush1.msra.mxu0 0.0
    %955 = vmatprep.subr.mxu0 0.0
    %956 = vmatpush1.msra.mxu0 0.0
    %957 = vmatprep.subr.mxu0 0.0
    %958 = vmatpush1.msra.mxu0 0.0
    %959 = vmatprep.subr.mxu0 0.0
    %960 = vmatpush1.msra.mxu0 0.0
    %961 = vmatprep.subr.mxu0 0.0
    %962 = vmatpush1.msra.mxu0 0.0
    %963 = vmatprep.subr.mxu0 0.0
    %964 = vmatpush1.msra.mxu0 0.0
    %965 = vmatprep.subr.mxu0 0.0
    %966 = vmatpush1.msra.mxu0 0.0
    %967 = vmatprep.subr.mxu0 0.0
    %968 = vmatpush1.msra.mxu0 0.0
    %969 = vmatprep.subr.mxu0 0.0
    %970 = vmatpush1.msra.mxu0 0.0
    %971 = vmatprep.subr.mxu0 0.0
    %972 = vmatpush1.msra.mxu0 0.0
    %973 = vmatprep.mubr.f32.mxu0 0.0
    %974 = vmatmul.mubr.f32.gmra.mrb[0].mxu0 %v837
    %v975 = vpop.f32.mrb[0].mxu0
    %v976 = vadd.f32 0.0, %v975
    %v977 = vpop.f32.mrb[0].mxu0
    %978 = vdwg.mxu0
    %v980 = vrot.slane %v906, 4
    %v982 = vadd.f32 %v161, %v980
    %v983 = vxor.u32 %v982, 2147483648
    %v984 = vmul.f32 %v983, 1.442695
    %v985 = vpow.pop %v984
    %v986 = vadd.f32 %v985, 1.0
    %v987 = vrcp.pop %v986
    %v988 = vmul.f32 1.0, %v987
    %v990 = vrot.slane %v976, 4
    %v992 = vadd.f32 %v245, %v990
    %v993 = vxor.u32 %v992, 2147483648
    %v994 = vmul.f32 %v993, 1.442695
    %v995 = vpow.pop %v994
    %v996 = vadd.f32 %v995, 1.0
    %v997 = vrcp.pop %v996
    %v998 = vmul.f32 1.0, %v997
    %999 = vmatprep.subr.mxu0 0.0
    %1000 = vmatpush1.msra.mxu0 %v347
    %1001 = vmatprep.subr.mxu0 0.0
    %1002 = vmatpush1.msra.mxu0 %v348
    %1003 = vmatprep.subr.mxu0 0.0
    %1004 = vmatpush1.msra.mxu0 %v349
    %1005 = vmatprep.subr.mxu0 0.0
    %1006 = vmatpush1.msra.mxu0 %v350
    %1007 = vmatprep.subr.mxu0 0.0
    %1008 = vmatpush1.msra.mxu0 0.0
    %1009 = vmatprep.subr.mxu0 0.0
    %1010 = vmatpush1.msra.mxu0 0.0
    %1011 = vmatprep.subr.mxu0 0.0
    %1012 = vmatpush1.msra.mxu0 0.0
    %1013 = vmatprep.subr.mxu0 0.0
    %1014 = vmatpush1.msra.mxu0 0.0
    %1015 = vmatprep.subr.mxu0 0.0
    %1016 = vmatpush1.msra.mxu0 0.0
    %1017 = vmatprep.subr.mxu0 0.0
    %1018 = vmatpush1.msra.mxu0 0.0
    %1019 = vmatprep.subr.mxu0 0.0
    %1020 = vmatpush1.msra.mxu0 0.0
    %1021 = vmatprep.subr.mxu0 0.0
    %1022 = vmatpush1.msra.mxu0 0.0
    %1023 = vmatprep.subr.mxu0 0.0
    %1024 = vmatpush1.msra.mxu0 0.0
    %1025 = vmatprep.subr.mxu0 0.0
    %1026 = vmatpush1.msra.mxu0 0.0
    %1027 = vmatprep.subr.mxu0 0.0
    %1028 = vmatpush1.msra.mxu0 0.0
    %1029 = vmatprep.subr.mxu0 0.0
    %1030 = vmatpush1.msra.mxu0 0.0
    %1031 = vmatprep.subr.mxu0 0.0
    %1032 = vmatpush1.msra.mxu0 0.0
    %1033 = vmatprep.subr.mxu0 0.0
    %1034 = vmatpush1.msra.mxu0 0.0
    %1035 = vmatprep.subr.mxu0 0.0
    %1036 = vmatpush1.msra.mxu0 0.0
    %1037 = vmatprep.subr.mxu0 0.0
    %1038 = vmatpush1.msra.mxu0 0.0
    %1039 = vmatprep.subr.mxu0 0.0
    %1040 = vmatpush1.msra.mxu0 0.0
    %1041 = vmatprep.subr.mxu0 0.0
    %1042 = vmatpush1.msra.mxu0 0.0
    %1043 = vmatprep.subr.mxu0 0.0
    %1044 = vmatpush1.msra.mxu0 0.0
    %1045 = vmatprep.subr.mxu0 0.0
    %1046 = vmatpush1.msra.mxu0 0.0
    %1047 = vmatprep.subr.mxu0 0.0
    %1048 = vmatpush1.msra.mxu0 0.0
    %1049 = vmatprep.subr.mxu0 0.0
    %1050 = vmatpush1.msra.mxu0 0.0
    %1051 = vmatprep.subr.mxu0 0.0
    %1052 = vmatpush1.msra.mxu0 0.0
    %1053 = vmatprep.subr.mxu0 0.0
    %1054 = vmatpush1.msra.mxu0 0.0
    %1055 = vmatprep.subr.mxu0 0.0
    %1056 = vmatpush1.msra.mxu0 0.0
    %1057 = vmatprep.subr.mxu0 0.0
    %1058 = vmatpush1.msra.mxu0 0.0
    %1059 = vmatprep.subr.mxu0 0.0
    %1060 = vmatpush1.msra.mxu0 0.0
    %1061 = vmatprep.subr.mxu0 0.0
    %1062 = vmatpush1.msra.mxu0 0.0
    %1063 = vmatprep.mubr.f32.mxu0 0.0
    %1064 = vmatmul.mubr.f32.gmra.mrb[0].mxu0 %v837
    %v1065 = vpop.f32.mrb[0].mxu0
    %v1066 = vadd.f32 %v354, %v1065
    %v1067 = vpop.f32.mrb[0].mxu0
    %1068 = vdwg.mxu0
    %v1070 = vrot.slane %v1066, 4
    %v1072 = vmul.f32 %v988, %v1070
    %v1073 = vadd.f32 %v329, %v1072
    %v1074 = vtanh.pop %v1073
    %v1075 = vsub.f32 1.0, %v998
    %v1076 = vmul.f32 %v1075, %v1074
    %v1077 = vrot.slane %v834, 6
    %v1079 = vmul.f32 %v998, %v1077
    %v1080 = vadd.f32 %v1076, %v1079
    %v1082 = vrot.slane %v1080, 4
    %v1083 = vsel %vm355, %v1082, 0
    %1085 = vmatprep.subr.mxu0 0.0
    %1086 = vmatpush1.msra.mxu0 %v337
    %1087 = vmatprep.subr.mxu0 0.0
    %1088 = vmatpush1.msra.mxu0 %v338
    %1089 = vmatprep.subr.mxu0 0.0
    %1090 = vmatpush1.msra.mxu0 %v339
    %1091 = vmatprep.subr.mxu0 0.0
    %1092 = vmatpush1.msra.mxu0 %v340
    %1093 = vmatprep.subr.mxu0 0.0
    %1094 = vmatpush1.msra.mxu0 0.0
    %1095 = vmatprep.subr.mxu0 0.0
    %1096 = vmatpush1.msra.mxu0 0.0
    %1097 = vmatprep.subr.mxu0 0.0
    %1098 = vmatpush1.msra.mxu0 0.0
    %1099 = vmatprep.subr.mxu0 0.0
    %1100 = vmatpush1.msra.mxu0 0.0
    %1101 = vmatprep.subr.mxu0 0.0
    %1102 = vmatpush1.msra.mxu0 0.0
    %1103 = vmatprep.subr.mxu0 0.0
    %1104 = vmatpush1.msra.mxu0 0.0
    %1105 = vmatprep.subr.mxu0 0.0
    %1106 = vmatpush1.msra.mxu0 0.0
    %1107 = vmatprep.subr.mxu0 0.0
    %1108 = vmatpush1.msra.mxu0 0.0
    %1109 = vmatprep.subr.mxu0 0.0
    %1110 = vmatpush1.msra.mxu0 0.0
    %1111 = vmatprep.subr.mxu0 0.0
    %1112 = vmatpush1.msra.mxu0 0.0
    %1113 = vmatprep.subr.mxu0 0.0
    %1114 = vmatpush1.msra.mxu0 0.0
    %1115 = vmatprep.subr.mxu0 0.0
    %1116 = vmatpush1.msra.mxu0 0.0
    %1117 = vmatprep.subr.mxu0 0.0
    %1118 = vmatpush1.msra.mxu0 0.0
    %1119 = vmatprep.subr.mxu0 0.0
    %1120 = vmatpush1.msra.mxu0 0.0
    %1121 = vmatprep.subr.mxu0 0.0
    %1122 = vmatpush1.msra.mxu0 0.0
    %1123 = vmatprep.subr.mxu0 0.0
    %1124 = vmatpush1.msra.mxu0 0.0
    %1125 = vmatprep.subr.mxu0 0.0
    %1126 = vmatpush1.msra.mxu0 0.0
    %1127 = vmatprep.subr.mxu0 0.0
    %1128 = vmatpush1.msra.mxu0 0.0
    %1129 = vmatprep.subr.mxu0 0.0
    %1130 = vmatpush1.msra.mxu0 0.0
    %1131 = vmatprep.subr.mxu0 0.0
    %1132 = vmatpush1.msra.mxu0 0.0
    %1133 = vmatprep.subr.mxu0 0.0
    %1134 = vmatpush1.msra.mxu0 0.0
    %1135 = vmatprep.subr.mxu0 0.0
    %1136 = vmatpush1.msra.mxu0 0.0
    %1137 = vmatprep.subr.mxu0 0.0
    %1138 = vmatpush1.msra.mxu0 0.0
    %1139 = vmatprep.subr.mxu0 0.0
    %1140 = vmatpush1.msra.mxu0 0.0
    %1141 = vmatprep.subr.mxu0 0.0
    %1142 = vmatpush1.msra.mxu0 0.0
    %1143 = vmatprep.subr.mxu0 0.0
    %1144 = vmatpush1.msra.mxu0 0.0
    %1145 = vmatprep.subr.mxu0 0.0
    %1146 = vmatpush1.msra.mxu0 0.0
    %1147 = vmatprep.subr.mxu0 0.0
    %1148 = vmatpush1.msra.mxu0 0.0
    %1149 = vmatprep.mubr.f32.mxu0 0.0
    %1150 = vmatmul.mubr.f32.gmra.mrb[0].mxu0 %v1083
    %v1151 = vpop.f32.mrb[0].mxu0
    %v1152 = vadd.f32 0.0, %v1151
    %v1153 = vpop.f32.mrb[0].mxu0
    %1154 = vdwg.mxu0
    %1155 = vmatprep.subr.mxu0 0.0
    %1156 = vmatpush1.msra.mxu0 %v342
    %1157 = vmatprep.subr.mxu0 0.0
    %1158 = vmatpush1.msra.mxu0 %v343
    %1159 = vmatprep.subr.mxu0 0.0
    %1160 = vmatpush1.msra.mxu0 %v344
    %1161 = vmatprep.subr.mxu0 0.0
    %1162 = vmatpush1.msra.mxu0 %v345
    %1163 = vmatprep.subr.mxu0 0.0
    %1164 = vmatpush1.msra.mxu0 0.0
    %1165 = vmatprep.subr.mxu0 0.0
    %1166 = vmatpush1.msra.mxu0 0.0
    %1167 = vmatprep.subr.mxu0 0.0
    %1168 = vmatpush1.msra.mxu0 0.0
    %1169 = vmatprep.subr.mxu0 0.0
    %1170 = vmatpush1.msra.mxu0 0.0
    %1171 = vmatprep.subr.mxu0 0.0
    %1172 = vmatpush1.msra.mxu0 0.0
    %1173 = vmatprep.subr.mxu0 0.0
    %1174 = vmatpush1.msra.mxu0 0.0
    %1175 = vmatprep.subr.mxu0 0.0
    %1176 = vmatpush1.msra.mxu0 0.0
    %1177 = vmatprep.subr.mxu0 0.0
    %1178 = vmatpush1.msra.mxu0 0.0
    %1179 = vmatprep.subr.mxu0 0.0
    %1180 = vmatpush1.msra.mxu0 0.0
    %1181 = vmatprep.subr.mxu0 0.0
    %1182 = vmatpush1.msra.mxu0 0.0
    %1183 = vmatprep.subr.mxu0 0.0
    %1184 = vmatpush1.msra.mxu0 0.0
    %1185 = vmatprep.subr.mxu0 0.0
    %1186 = vmatpush1.msra.mxu0 0.0
    %1187 = vmatprep.subr.mxu0 0.0
    %1188 = vmatpush1.msra.mxu0 0.0
    %1189 = vmatprep.subr.mxu0 0.0
    %1190 = vmatpush1.msra.mxu0 0.0
    %1191 = vmatprep.subr.mxu0 0.0
    %1192 = vmatpush1.msra.mxu0 0.0
    %1193 = vmatprep.subr.mxu0 0.0
    %1194 = vmatpush1.msra.mxu0 0.0
    %1195 = vmatprep.subr.mxu0 0.0
    %1196 = vmatpush1.msra.mxu0 0.0
    %1197 = vmatprep.subr.mxu0 0.0
    %1198 = vmatpush1.msra.mxu0 0.0
    %1199 = vmatprep.subr.mxu0 0.0
    %1200 = vmatpush1.msra.mxu0 0.0
    %1201 = vmatprep.subr.mxu0 0.0
    %1202 = vmatpush1.msra.mxu0 0.0
    %1203 = vmatprep.subr.mxu0 0.0
    %1204 = vmatpush1.msra.mxu0 0.0
    %1205 = vmatprep.subr.mxu0 0.0
    %1206 = vmatpush1.msra.mxu0 0.0
    %1207 = vmatprep.subr.mxu0 0.0
    %1208 = vmatpush1.msra.mxu0 0.0
    %1209 = vmatprep.subr.mxu0 0.0
    %1210 = vmatpush1.msra.mxu0 0.0
    %1211 = vmatprep.subr.mxu0 0.0
    %1212 = vmatpush1.msra.mxu0 0.0
    %1213 = vmatprep.subr.mxu0 0.0
    %1214 = vmatpush1.msra.mxu0 0.0
    %1215 = vmatprep.subr.mxu0 0.0
    %1216 = vmatpush1.msra.mxu0 0.0
    %1217 = vmatprep.subr.mxu0 0.0
    %1218 = vmatpush1.msra.mxu0 0.0
    %1219 = vmatprep.mubr.f32.mxu0 0.0
    %1220 = vmatmul.mubr.f32.gmra.mrb[0].mxu0 %v1083
    %v1221 = vpop.f32.mrb[0].mxu0
    %v1222 = vadd.f32 0.0, %v1221
    %v1223 = vpop.f32.mrb[0].mxu0
    %1224 = vdwg.mxu0
    %v1226 = vrot.slane %v1152, 2
    %v1228 = vadd.f32 %v161, %v1226
    %v1229 = vxor.u32 %v1228, 2147483648
    %v1230 = vmul.f32 %v1229, 1.442695
    %v1231 = vpow.pop %v1230
    %v1232 = vadd.f32 %v1231, 1.0
    %v1233 = vrcp.pop %v1232
    %v1234 = vmul.f32 1.0, %v1233
    %v1236 = vrot.slane %v1222, 2
    %v1238 = vadd.f32 %v245, %v1236
    %v1239 = vxor.u32 %v1238, 2147483648
    %v1240 = vmul.f32 %v1239, 1.442695
    %v1241 = vpow.pop %v1240
    %v1242 = vadd.f32 %v1241, 1.0
    %v1243 = vrcp.pop %v1242
    %v1244 = vmul.f32 1.0, %v1243
    %1245 = vmatprep.subr.mxu0 0.0
    %1246 = vmatpush1.msra.mxu0 %v347
    %1247 = vmatprep.subr.mxu0 0.0
    %1248 = vmatpush1.msra.mxu0 %v348
    %1249 = vmatprep.subr.mxu0 0.0
    %1250 = vmatpush1.msra.mxu0 %v349
    %1251 = vmatprep.subr.mxu0 0.0
    %1252 = vmatpush1.msra.mxu0 %v350
    %1253 = vmatprep.subr.mxu0 0.0
    %1254 = vmatpush1.msra.mxu0 0.0
    %1255 = vmatprep.subr.mxu0 0.0
    %1256 = vmatpush1.msra.mxu0 0.0
    %1257 = vmatprep.subr.mxu0 0.0
    %1258 = vmatpush1.msra.mxu0 0.0
    %1259 = vmatprep.subr.mxu0 0.0
    %1260 = vmatpush1.msra.mxu0 0.0
    %1261 = vmatprep.subr.mxu0 0.0
    %1262 = vmatpush1.msra.mxu0 0.0
    %1263 = vmatprep.subr.mxu0 0.0
    %1264 = vmatpush1.msra.mxu0 0.0
    %1265 = vmatprep.subr.mxu0 0.0
    %1266 = vmatpush1.msra.mxu0 0.0
    %1267 = vmatprep.subr.mxu0 0.0
    %1268 = vmatpush1.msra.mxu0 0.0
    %1269 = vmatprep.subr.mxu0 0.0
    %1270 = vmatpush1.msra.mxu0 0.0
    %1271 = vmatprep.subr.mxu0 0.0
    %1272 = vmatpush1.msra.mxu0 0.0
    %1273 = vmatprep.subr.mxu0 0.0
    %1274 = vmatpush1.msra.mxu0 0.0
    %1275 = vmatprep.subr.mxu0 0.0
    %1276 = vmatpush1.msra.mxu0 0.0
    %1277 = vmatprep.subr.mxu0 0.0
    %1278 = vmatpush1.msra.mxu0 0.0
    %1279 = vmatprep.subr.mxu0 0.0
    %1280 = vmatpush1.msra.mxu0 0.0
    %1281 = vmatprep.subr.mxu0 0.0
    %1282 = vmatpush1.msra.mxu0 0.0
    %1283 = vmatprep.subr.mxu0 0.0
    %1284 = vmatpush1.msra.mxu0 0.0
    %1285 = vmatprep.subr.mxu0 0.0
    %1286 = vmatpush1.msra.mxu0 0.0
    %1287 = vmatprep.subr.mxu0 0.0
    %1288 = vmatpush1.msra.mxu0 0.0
    %1289 = vmatprep.subr.mxu0 0.0
    %1290 = vmatpush1.msra.mxu0 0.0
    %1291 = vmatprep.subr.mxu0 0.0
    %1292 = vmatpush1.msra.mxu0 0.0
    %1293 = vmatprep.subr.mxu0 0.0
    %1294 = vmatpush1.msra.mxu0 0.0
    %1295 = vmatprep.subr.mxu0 0.0
    %1296 = vmatpush1.msra.mxu0 0.0
    %1297 = vmatprep.subr.mxu0 0.0
    %1298 = vmatpush1.msra.mxu0 0.0
    %1299 = vmatprep.subr.mxu0 0.0
    %1300 = vmatpush1.msra.mxu0 0.0
    %1301 = vmatprep.subr.mxu0 0.0
    %1302 = vmatpush1.msra.mxu0 0.0
    %1303 = vmatprep.subr.mxu0 0.0
    %1304 = vmatpush1.msra.mxu0 0.0
    %1305 = vmatprep.subr.mxu0 0.0
    %1306 = vmatpush1.msra.mxu0 0.0
    %1307 = vmatprep.subr.mxu0 0.0
    %1308 = vmatpush1.msra.mxu0 0.0
    %1309 = vmatprep.mubr.f32.mxu0 0.0
    %1310 = vmatmul.mubr.f32.gmra.mrb[0].mxu0 %v1083
    %v1311 = vpop.f32.mrb[0].mxu0
    %v1312 = vadd.f32 %v354, %v1311
    %v1313 = vpop.f32.mrb[0].mxu0
    %1314 = vdwg.mxu0
    %v1316 = vrot.slane %v1312, 2
    %v1318 = vmul.f32 %v1234, %v1316
    %v1319 = vadd.f32 %v329, %v1318
    %v1320 = vtanh.pop %v1319
    %v1321 = vsub.f32 1.0, %v1244
    %v1322 = vmul.f32 %v1321, %v1320
    %v1323 = vrot.slane %v1080, 6
    %v1325 = vmul.f32 %v1244, %v1323
    %v1326 = vadd.f32 %v1322, %v1325
    %v1328 = vrot.slane %v1326, 6
    %v1329 = vsel %vm355, %v1328, 0
    %1331 = vmatprep.subr.mxu0 0.0
    %1332 = vmatpush1.msra.mxu0 %v337
    %1333 = vmatprep.subr.mxu0 0.0
    %1334 = vmatpush1.msra.mxu0 %v338
    %1335 = vmatprep.subr.mxu0 0.0
    %1336 = vmatpush1.msra.mxu0 %v339
    %1337 = vmatprep.subr.mxu0 0.0
    %1338 = vmatpush1.msra.mxu0 %v340
    %1339 = vmatprep.subr.mxu0 0.0
    %1340 = vmatpush1.msra.mxu0 0.0
    %1341 = vmatprep.subr.mxu0 0.0
    %1342 = vmatpush1.msra.mxu0 0.0
    %1343 = vmatprep.subr.mxu0 0.0
    %1344 = vmatpush1.msra.mxu0 0.0
    %1345 = vmatprep.subr.mxu0 0.0
    %1346 = vmatpush1.msra.mxu0 0.0
    %1347 = vmatprep.subr.mxu0 0.0
    %1348 = vmatpush1.msra.mxu0 0.0
    %1349 = vmatprep.subr.mxu0 0.0
    %1350 = vmatpush1.msra.mxu0 0.0
    %1351 = vmatprep.subr.mxu0 0.0
    %1352 = vmatpush1.msra.mxu0 0.0
    %1353 = vmatprep.subr.mxu0 0.0
    %1354 = vmatpush1.msra.mxu0 0.0
    %1355 = vmatprep.subr.mxu0 0.0
    %1356 = vmatpush1.msra.mxu0 0.0
    %1357 = vmatprep.subr.mxu0 0.0
    %1358 = vmatpush1.msra.mxu0 0.0
    %1359 = vmatprep.subr.mxu0 0.0
    %1360 = vmatpush1.msra.mxu0 0.0
    %1361 = vmatprep.subr.mxu0 0.0
    %1362 = vmatpush1.msra.mxu0 0.0
    %1363 = vmatprep.subr.mxu0 0.0
    %1364 = vmatpush1.msra.mxu0 0.0
    %1365 = vmatprep.subr.mxu0 0.0
    %1366 = vmatpush1.msra.mxu0 0.0
    %1367 = vmatprep.subr.mxu0 0.0
    %1368 = vmatpush1.msra.mxu0 0.0
    %1369 = vmatprep.subr.mxu0 0.0
    %1370 = vmatpush1.msra.mxu0 0.0
    %1371 = vmatprep.subr.mxu0 0.0
    %1372 = vmatpush1.msra.mxu0 0.0
    %1373 = vmatprep.subr.mxu0 0.0
    %1374 = vmatpush1.msra.mxu0 0.0
    %1375 = vmatprep.subr.mxu0 0.0
    %1376 = vmatpush1.msra.mxu0 0.0
    %1377 = vmatprep.subr.mxu0 0.0
    %1378 = vmatpush1.msra.mxu0 0.0
    %1379 = vmatprep.subr.mxu0 0.0
    %1380 = vmatpush1.msra.mxu0 0.0
    %1381 = vmatprep.subr.mxu0 0.0
    %1382 = vmatpush1.msra.mxu0 0.0
    %1383 = vmatprep.subr.mxu0 0.0
    %1384 = vmatpush1.msra.mxu0 0.0
    %1385 = vmatprep.subr.mxu0 0.0
    %1386 = vmatpush1.msra.mxu0 0.0
    %1387 = vmatprep.subr.mxu0 0.0
    %1388 = vmatpush1.msra.mxu0 0.0
    %1389 = vmatprep.subr.mxu0 0.0
    %1390 = vmatpush1.msra.mxu0 0.0
    %1391 = vmatprep.subr.mxu0 0.0
    %1392 = vmatpush1.msra.mxu0 0.0
    %1393 = vmatprep.subr.mxu0 0.0
    %1394 = vmatpush1.msra.mxu0 0.0
    %1395 = vmatprep.mubr.f32.mxu0 0.0
    %1396 = vmatmul.mubr.f32.gmra.mrb[0].mxu0 %v1329
    %v1397 = vpop.f32.mrb[0].mxu0
    %v1398 = vadd.f32 0.0, %v1397
    %v1399 = vpop.f32.mrb[0].mxu0
    %1400 = vdwg.mxu0
    %1401 = vmatprep.subr.mxu0 0.0
    %1402 = vmatpush1.msra.mxu0 %v342
    %1403 = vmatprep.subr.mxu0 0.0
    %1404 = vmatpush1.msra.mxu0 %v343
    %1405 = vmatprep.subr.mxu0 0.0
    %1406 = vmatpush1.msra.mxu0 %v344
    %1407 = vmatprep.subr.mxu0 0.0
    %1408 = vmatpush1.msra.mxu0 %v345
    %1409 = vmatprep.subr.mxu0 0.0
    %1410 = vmatpush1.msra.mxu0 0.0
    %1411 = vmatprep.subr.mxu0 0.0
    %1412 = vmatpush1.msra.mxu0 0.0
    %1413 = vmatprep.subr.mxu0 0.0
    %1414 = vmatpush1.msra.mxu0 0.0
    %1415 = vmatprep.subr.mxu0 0.0
    %1416 = vmatpush1.msra.mxu0 0.0
    %1417 = vmatprep.subr.mxu0 0.0
    %1418 = vmatpush1.msra.mxu0 0.0
    %1419 = vmatprep.subr.mxu0 0.0
    %1420 = vmatpush1.msra.mxu0 0.0
    %1421 = vmatprep.subr.mxu0 0.0
    %1422 = vmatpush1.msra.mxu0 0.0
    %1423 = vmatprep.subr.mxu0 0.0
    %1424 = vmatpush1.msra.mxu0 0.0
    %1425 = vmatprep.subr.mxu0 0.0
    %1426 = vmatpush1.msra.mxu0 0.0
    %1427 = vmatprep.subr.mxu0 0.0
    %1428 = vmatpush1.msra.mxu0 0.0
    %1429 = vmatprep.subr.mxu0 0.0
    %1430 = vmatpush1.msra.mxu0 0.0
    %1431 = vmatprep.subr.mxu0 0.0
    %1432 = vmatpush1.msra.mxu0 0.0
    %1433 = vmatprep.subr.mxu0 0.0
    %1434 = vmatpush1.msra.mxu0 0.0
    %1435 = vmatprep.subr.mxu0 0.0
    %1436 = vmatpush1.msra.mxu0 0.0
    %1437 = vmatprep.subr.mxu0 0.0
    %1438 = vmatpush1.msra.mxu0 0.0
    %1439 = vmatprep.subr.mxu0 0.0
    %1440 = vmatpush1.msra.mxu0 0.0
    %1441 = vmatprep.subr.mxu0 0.0
    %1442 = vmatpush1.msra.mxu0 0.0
    %1443 = vmatprep.subr.mxu0 0.0
    %1444 = vmatpush1.msra.mxu0 0.0
    %1445 = vmatprep.subr.mxu0 0.0
    %1446 = vmatpush1.msra.mxu0 0.0
    %1447 = vmatprep.subr.mxu0 0.0
    %1448 = vmatpush1.msra.mxu0 0.0
    %1449 = vmatprep.subr.mxu0 0.0
    %1450 = vmatpush1.msra.mxu0 0.0
    %1451 = vmatprep.subr.mxu0 0.0
    %1452 = vmatpush1.msra.mxu0 0.0
    %1453 = vmatprep.subr.mxu0 0.0
    %1454 = vmatpush1.msra.mxu0 0.0
    %1455 = vmatprep.subr.mxu0 0.0
    %1456 = vmatpush1.msra.mxu0 0.0
    %1457 = vmatprep.subr.mxu0 0.0
    %1458 = vmatpush1.msra.mxu0 0.0
    %1459 = vmatprep.subr.mxu0 0.0
    %1460 = vmatpush1.msra.mxu0 0.0
    %1461 = vmatprep.subr.mxu0 0.0
    %1462 = vmatpush1.msra.mxu0 0.0
    %1463 = vmatprep.subr.mxu0 0.0
    %1464 = vmatpush1.msra.mxu0 0.0
    %1465 = vmatprep.mubr.f32.mxu0 0.0
    %1466 = vmatmul.mubr.f32.gmra.mrb[0].mxu0 %v1329
    %v1467 = vpop.f32.mrb[0].mxu0
    %v1468 = vadd.f32 0.0, %v1467
    %v1469 = vpop.f32.mrb[0].mxu0
    %1470 = vdwg.mxu0
    %v1471 = vadd.f32 %v166, %v1398
    %v1472 = vxor.u32 %v1471, 2147483648
    %v1473 = vmul.f32 %v1472, 1.442695
    %v1474 = vpow.pop %v1473
    %v1475 = vadd.f32 %v1474, 1.0
    %v1476 = vrcp.pop %v1475
    %v1477 = vmul.f32 1.0, %v1476
    %v1478 = vadd.f32 %v250, %v1468
    %v1479 = vxor.u32 %v1478, 2147483648
    %v1480 = vmul.f32 %v1479, 1.442695
    %v1481 = vpow.pop %v1480
    %v1482 = vadd.f32 %v1481, 1.0
    %v1483 = vrcp.pop %v1482
    %v1484 = vmul.f32 1.0, %v1483
    %1485 = vmatprep.subr.mxu0 0.0
    %1486 = vmatpush1.msra.mxu0 %v347
    %1487 = vmatprep.subr.mxu0 0.0
    %1488 = vmatpush1.msra.mxu0 %v348
    %1489 = vmatprep.subr.mxu0 0.0
    %1490 = vmatpush1.msra.mxu0 %v349
    %1491 = vmatprep.subr.mxu0 0.0
    %1492 = vmatpush1.msra.mxu0 %v350
    %1493 = vmatprep.subr.mxu0 0.0
    %1494 = vmatpush1.msra.mxu0 0.0
    %1495 = vmatprep.subr.mxu0 0.0
    %1496 = vmatpush1.msra.mxu0 0.0
    %1497 = vmatprep.subr.mxu0 0.0
    %1498 = vmatpush1.msra.mxu0 0.0
    %1499 = vmatprep.subr.mxu0 0.0
    %1500 = vmatpush1.msra.mxu0 0.0
    %1501 = vmatprep.subr.mxu0 0.0
    %1502 = vmatpush1.msra.mxu0 0.0
    %1503 = vmatprep.subr.mxu0 0.0
    %1504 = vmatpush1.msra.mxu0 0.0
    %1505 = vmatprep.subr.mxu0 0.0
    %1506 = vmatpush1.msra.mxu0 0.0
    %1507 = vmatprep.subr.mxu0 0.0
    %1508 = vmatpush1.msra.mxu0 0.0
    %1509 = vmatprep.subr.mxu0 0.0
    %1510 = vmatpush1.msra.mxu0 0.0
    %1511 = vmatprep.subr.mxu0 0.0
    %1512 = vmatpush1.msra.mxu0 0.0
    %1513 = vmatprep.subr.mxu0 0.0
    %1514 = vmatpush1.msra.mxu0 0.0
    %1515 = vmatprep.subr.mxu0 0.0
    %1516 = vmatpush1.msra.mxu0 0.0
    %1517 = vmatprep.subr.mxu0 0.0
    %1518 = vmatpush1.msra.mxu0 0.0
    %1519 = vmatprep.subr.mxu0 0.0
    %1520 = vmatpush1.msra.mxu0 0.0
    %1521 = vmatprep.subr.mxu0 0.0
    %1522 = vmatpush1.msra.mxu0 0.0
    %1523 = vmatprep.subr.mxu0 0.0
    %1524 = vmatpush1.msra.mxu0 0.0
    %1525 = vmatprep.subr.mxu0 0.0
    %1526 = vmatpush1.msra.mxu0 0.0
    %1527 = vmatprep.subr.mxu0 0.0
    %1528 = vmatpush1.msra.mxu0 0.0
    %1529 = vmatprep.subr.mxu0 0.0
    %1530 = vmatpush1.msra.mxu0 0.0
    %1531 = vmatprep.subr.mxu0 0.0
    %1532 = vmatpush1.msra.mxu0 0.0
    %1533 = vmatprep.subr.mxu0 0.0
    %1534 = vmatpush1.msra.mxu0 0.0
    %1535 = vmatprep.subr.mxu0 0.0
    %1536 = vmatpush1.msra.mxu0 0.0
    %1537 = vmatprep.subr.mxu0 0.0
    %1538 = vmatpush1.msra.mxu0 0.0
    %1539 = vmatprep.subr.mxu0 0.0
    %1540 = vmatpush1.msra.mxu0 0.0
    %1541 = vmatprep.subr.mxu0 0.0
    %1542 = vmatpush1.msra.mxu0 0.0
    %1543 = vmatprep.subr.mxu0 0.0
    %1544 = vmatpush1.msra.mxu0 0.0
    %1545 = vmatprep.subr.mxu0 0.0
    %1546 = vmatpush1.msra.mxu0 0.0
    %1547 = vmatprep.subr.mxu0 0.0
    %1548 = vmatpush1.msra.mxu0 0.0
    %1549 = vmatprep.mubr.f32.mxu0 0.0
    %1550 = vmatmul.mubr.f32.gmra.mrb[0].mxu0 %v1329
    %v1551 = vpop.f32.mrb[0].mxu0
    %v1552 = vadd.f32 %v354, %v1551
    %v1553 = vpop.f32.mrb[0].mxu0
    %1554 = vdwg.mxu0
    %v1555 = vmul.f32 %v1477, %v1552
    %v1556 = vadd.f32 %v334, %v1555
    %v1557 = vtanh.pop %v1556
    %v1558 = vsub.f32 1.0, %v1484
    %v1559 = vmul.f32 %v1558, %v1557
    %v1561 = vmul.f32 %v1484, %v1328
    %v1562 = vadd.f32 %v1559, %v1561
    %v1564 = vsel %vm355, %v1562, 0
    %1566 = vmatprep.subr.mxu0 0.0
    %1567 = vmatpush1.msra.mxu0 %v337
    %1568 = vmatprep.subr.mxu0 0.0
    %1569 = vmatpush1.msra.mxu0 %v338
    %1570 = vmatprep.subr.mxu0 0.0
    %1571 = vmatpush1.msra.mxu0 %v339
    %1572 = vmatprep.subr.mxu0 0.0
    %1573 = vmatpush1.msra.mxu0 %v340
    %1574 = vmatprep.subr.mxu0 0.0
    %1575 = vmatpush1.msra.mxu0 0.0
    %1576 = vmatprep.subr.mxu0 0.0
    %1577 = vmatpush1.msra.mxu0 0.0
    %1578 = vmatprep.subr.mxu0 0.0
    %1579 = vmatpush1.msra.mxu0 0.0
    %1580 = vmatprep.subr.mxu0 0.0
    %1581 = vmatpush1.msra.mxu0 0.0
    %1582 = vmatprep.subr.mxu0 0.0
    %1583 = vmatpush1.msra.mxu0 0.0
    %1584 = vmatprep.subr.mxu0 0.0
    %1585 = vmatpush1.msra.mxu0 0.0
    %1586 = vmatprep.subr.mxu0 0.0
    %1587 = vmatpush1.msra.mxu0 0.0
    %1588 = vmatprep.subr.mxu0 0.0
    %1589 = vmatpush1.msra.mxu0 0.0
    %1590 = vmatprep.subr.mxu0 0.0
    %1591 = vmatpush1.msra.mxu0 0.0
    %1592 = vmatprep.subr.mxu0 0.0
    %1593 = vmatpush1.msra.mxu0 0.0
    %1594 = vmatprep.subr.mxu0 0.0
    %1595 = vmatpush1.msra.mxu0 0.0
    %1596 = vmatprep.subr.mxu0 0.0
    %1597 = vmatpush1.msra.mxu0 0.0
    %1598 = vmatprep.subr.mxu0 0.0
    %1599 = vmatpush1.msra.mxu0 0.0
    %1600 = vmatprep.subr.mxu0 0.0
    %1601 = vmatpush1.msra.mxu0 0.0
    %1602 = vmatprep.subr.mxu0 0.0
    %1603 = vmatpush1.msra.mxu0 0.0
    %1604 = vmatprep.subr.mxu0 0.0
    %1605 = vmatpush1.msra.mxu0 0.0
    %1606 = vmatprep.subr.mxu0 0.0
    %1607 = vmatpush1.msra.mxu0 0.0
    %1608 = vmatprep.subr.mxu0 0.0
    %1609 = vmatpush1.msra.mxu0 0.0
    %1610 = vmatprep.subr.mxu0 0.0
    %1611 = vmatpush1.msra.mxu0 0.0
    %1612 = vmatprep.subr.mxu0 0.0
    %1613 = vmatpush1.msra.mxu0 0.0
    %1614 = vmatprep.subr.mxu0 0.0
    %1615 = vmatpush1.msra.mxu0 0.0
    %1616 = vmatprep.subr.mxu0 0.0
    %1617 = vmatpush1.msra.mxu0 0.0
    %1618 = vmatprep.subr.mxu0 0.0
    %1619 = vmatpush1.msra.mxu0 0.0
    %1620 = vmatprep.subr.mxu0 0.0
    %1621 = vmatpush1.msra.mxu0 0.0
    %1622 = vmatprep.subr.mxu0 0.0
    %1623 = vmatpush1.msra.mxu0 0.0
    %1624 = vmatprep.subr.mxu0 0.0
    %1625 = vmatpush1.msra.mxu0 0.0
    %1626 = vmatprep.subr.mxu0 0.0
    %1627 = vmatpush1.msra.mxu0 0.0
    %1628 = vmatprep.subr.mxu0 0.0
    %1629 = vmatpush1.msra.mxu0 0.0
    %1630 = vmatprep.mubr.f32.mxu0 0.0
    %1631 = vmatmul.mubr.f32.gmra.mrb[0].mxu0 %v1564
    %v1632 = vpop.f32.mrb[0].mxu0
    %v1633 = vadd.f32 0.0, %v1632
    %v1634 = vpop.f32.mrb[0].mxu0
    %1635 = vdwg.mxu0
    %1636 = vmatprep.subr.mxu0 0.0
    %1637 = vmatpush1.msra.mxu0 %v342
    %1638 = vmatprep.subr.mxu0 0.0
    %1639 = vmatpush1.msra.mxu0 %v343
    %1640 = vmatprep.subr.mxu0 0.0
    %1641 = vmatpush1.msra.mxu0 %v344
    %1642 = vmatprep.subr.mxu0 0.0
    %1643 = vmatpush1.msra.mxu0 %v345
    %1644 = vmatprep.subr.mxu0 0.0
    %1645 = vmatpush1.msra.mxu0 0.0
    %1646 = vmatprep.subr.mxu0 0.0
    %1647 = vmatpush1.msra.mxu0 0.0
    %1648 = vmatprep.subr.mxu0 0.0
    %1649 = vmatpush1.msra.mxu0 0.0
    %1650 = vmatprep.subr.mxu0 0.0
    %1651 = vmatpush1.msra.mxu0 0.0
    %1652 = vmatprep.subr.mxu0 0.0
    %1653 = vmatpush1.msra.mxu0 0.0
    %1654 = vmatprep.subr.mxu0 0.0
    %1655 = vmatpush1.msra.mxu0 0.0
    %1656 = vmatprep.subr.mxu0 0.0
    %1657 = vmatpush1.msra.mxu0 0.0
    %1658 = vmatprep.subr.mxu0 0.0
    %1659 = vmatpush1.msra.mxu0 0.0
    %1660 = vmatprep.subr.mxu0 0.0
    %1661 = vmatpush1.msra.mxu0 0.0
    %1662 = vmatprep.subr.mxu0 0.0
    %1663 = vmatpush1.msra.mxu0 0.0
    %1664 = vmatprep.subr.mxu0 0.0
    %1665 = vmatpush1.msra.mxu0 0.0
    %1666 = vmatprep.subr.mxu0 0.0
    %1667 = vmatpush1.msra.mxu0 0.0
    %1668 = vmatprep.subr.mxu0 0.0
    %1669 = vmatpush1.msra.mxu0 0.0
    %1670 = vmatprep.subr.mxu0 0.0
    %1671 = vmatpush1.msra.mxu0 0.0
    %1672 = vmatprep.subr.mxu0 0.0
    %1673 = vmatpush1.msra.mxu0 0.0
    %1674 = vmatprep.subr.mxu0 0.0
    %1675 = vmatpush1.msra.mxu0 0.0
    %1676 = vmatprep.subr.mxu0 0.0
    %1677 = vmatpush1.msra.mxu0 0.0
    %1678 = vmatprep.subr.mxu0 0.0
    %1679 = vmatpush1.msra.mxu0 0.0
    %1680 = vmatprep.subr.mxu0 0.0
    %1681 = vmatpush1.msra.mxu0 0.0
    %1682 = vmatprep.subr.mxu0 0.0
    %1683 = vmatpush1.msra.mxu0 0.0
    %1684 = vmatprep.subr.mxu0 0.0
    %1685 = vmatpush1.msra.mxu0 0.0
    %1686 = vmatprep.subr.mxu0 0.0
    %1687 = vmatpush1.msra.mxu0 0.0
    %1688 = vmatprep.subr.mxu0 0.0
    %1689 = vmatpush1.msra.mxu0 0.0
    %1690 = vmatprep.subr.mxu0 0.0
    %1691 = vmatpush1.msra.mxu0 0.0
    %1692 = vmatprep.subr.mxu0 0.0
    %1693 = vmatpush1.msra.mxu0 0.0
    %1694 = vmatprep.subr.mxu0 0.0
    %1695 = vmatpush1.msra.mxu0 0.0
    %1696 = vmatprep.subr.mxu0 0.0
    %1697 = vmatpush1.msra.mxu0 0.0
    %1698 = vmatprep.subr.mxu0 0.0
    %1699 = vmatpush1.msra.mxu0 0.0
    %1700 = vmatprep.mubr.f32.mxu0 0.0
    %1701 = vmatmul.mubr.f32.gmra.mrb[0].mxu0 %v1564
    %v1702 = vpop.f32.mrb[0].mxu0
    %v1703 = vadd.f32 0.0, %v1702
    %v1704 = vpop.f32.mrb[0].mxu0
    %1705 = vdwg.mxu0
    %v1707 = vrot.slane %v1633, 6
    %v1709 = vadd.f32 %v166, %v1707
    %v1710 = vxor.u32 %v1709, 2147483648
    %v1711 = vmul.f32 %v1710, 1.442695
    %v1712 = vpow.pop %v1711
    %v1713 = vadd.f32 %v1712, 1.0
    %v1714 = vrcp.pop %v1713
    %v1715 = vmul.f32 1.0, %v1714
    %v1717 = vrot.slane %v1703, 6
    %v1719 = vadd.f32 %v250, %v1717
    %v1720 = vxor.u32 %v1719, 2147483648
    %v1721 = vmul.f32 %v1720, 1.442695
    %v1722 = vpow.pop %v1721
    %v1723 = vadd.f32 %v1722, 1.0
    %v1724 = vrcp.pop %v1723
    %v1725 = vmul.f32 1.0, %v1724
    %1726 = vmatprep.subr.mxu0 0.0
    %1727 = vmatpush1.msra.mxu0 %v347
    %1728 = vmatprep.subr.mxu0 0.0
    %1729 = vmatpush1.msra.mxu0 %v348
    %1730 = vmatprep.subr.mxu0 0.0
    %1731 = vmatpush1.msra.mxu0 %v349
    %1732 = vmatprep.subr.mxu0 0.0
    %1733 = vmatpush1.msra.mxu0 %v350
    %1734 = vmatprep.subr.mxu0 0.0
    %1735 = vmatpush1.msra.mxu0 0.0
    %1736 = vmatprep.subr.mxu0 0.0
    %1737 = vmatpush1.msra.mxu0 0.0
    %1738 = vmatprep.subr.mxu0 0.0
    %1739 = vmatpush1.msra.mxu0 0.0
    %1740 = vmatprep.subr.mxu0 0.0
    %1741 = vmatpush1.msra.mxu0 0.0
    %1742 = vmatprep.subr.mxu0 0.0
    %1743 = vmatpush1.msra.mxu0 0.0
    %1744 = vmatprep.subr.mxu0 0.0
    %1745 = vmatpush1.msra.mxu0 0.0
    %1746 = vmatprep.subr.mxu0 0.0
    %1747 = vmatpush1.msra.mxu0 0.0
    %1748 = vmatprep.subr.mxu0 0.0
    %1749 = vmatpush1.msra.mxu0 0.0
    %1750 = vmatprep.subr.mxu0 0.0
    %1751 = vmatpush1.msra.mxu0 0.0
    %1752 = vmatprep.subr.mxu0 0.0
    %1753 = vmatpush1.msra.mxu0 0.0
    %1754 = vmatprep.subr.mxu0 0.0
    %1755 = vmatpush1.msra.mxu0 0.0
    %1756 = vmatprep.subr.mxu0 0.0
    %1757 = vmatpush1.msra.mxu0 0.0
    %1758 = vmatprep.subr.mxu0 0.0
    %1759 = vmatpush1.msra.mxu0 0.0
    %1760 = vmatprep.subr.mxu0 0.0
    %1761 = vmatpush1.msra.mxu0 0.0
    %1762 = vmatprep.subr.mxu0 0.0
    %1763 = vmatpush1.msra.mxu0 0.0
    %1764 = vmatprep.subr.mxu0 0.0
    %1765 = vmatpush1.msra.mxu0 0.0
    %1766 = vmatprep.subr.mxu0 0.0
    %1767 = vmatpush1.msra.mxu0 0.0
    %1768 = vmatprep.subr.mxu0 0.0
    %1769 = vmatpush1.msra.mxu0 0.0
    %1770 = vmatprep.subr.mxu0 0.0
    %1771 = vmatpush1.msra.mxu0 0.0
    %1772 = vmatprep.subr.mxu0 0.0
    %1773 = vmatpush1.msra.mxu0 0.0
    %1774 = vmatprep.subr.mxu0 0.0
    %1775 = vmatpush1.msra.mxu0 0.0
    %1776 = vmatprep.subr.mxu0 0.0
    %1777 = vmatpush1.msra.mxu0 0.0
    %1778 = vmatprep.subr.mxu0 0.0
    %1779 = vmatpush1.msra.mxu0 0.0
    %1780 = vmatprep.subr.mxu0 0.0
    %1781 = vmatpush1.msra.mxu0 0.0
    %1782 = vmatprep.subr.mxu0 0.0
    %1783 = vmatpush1.msra.mxu0 0.0
    %1784 = vmatprep.subr.mxu0 0.0
    %1785 = vmatpush1.msra.mxu0 0.0
    %1786 = vmatprep.subr.mxu0 0.0
    %1787 = vmatpush1.msra.mxu0 0.0
    %1788 = vmatprep.subr.mxu0 0.0
    %1789 = vmatpush1.msra.mxu0 0.0
    %1790 = vmatprep.mubr.f32.mxu0 0.0
    %1791 = vmatmul.mubr.f32.gmra.mrb[0].mxu0 %v1564
    %v1792 = vpop.f32.mrb[0].mxu0
    %v1793 = vadd.f32 %v354, %v1792
    %v1794 = vpop.f32.mrb[0].mxu0
    %1795 = vdwg.mxu0
    %v1797 = vrot.slane %v1793, 6
    %v1799 = vmul.f32 %v1715, %v1797
    %v1800 = vadd.f32 %v334, %v1799
    %v1801 = vtanh.pop %v1800
    %v1802 = vsub.f32 1.0, %v1725
    %v1803 = vmul.f32 %v1802, %v1801
    %v1804 = vrot.slane %v1562, 6
    %v1806 = vmul.f32 %v1725, %v1804
    %v1807 = vadd.f32 %v1803, %v1806
    %v1809 = vrot.slane %v1807, 2
    %v1810 = vsel %vm355, %v1809, 0
    %1812 = vmatprep.subr.mxu0 0.0
    %1813 = vmatpush1.msra.mxu0 %v337
    %1814 = vmatprep.subr.mxu0 0.0
    %1815 = vmatpush1.msra.mxu0 %v338
    %1816 = vmatprep.subr.mxu0 0.0
    %1817 = vmatpush1.msra.mxu0 %v339
    %1818 = vmatprep.subr.mxu0 0.0
    %1819 = vmatpush1.msra.mxu0 %v340
    %1820 = vmatprep.subr.mxu0 0.0
    %1821 = vmatpush1.msra.mxu0 0.0
    %1822 = vmatprep.subr.mxu0 0.0
    %1823 = vmatpush1.msra.mxu0 0.0
    %1824 = vmatprep.subr.mxu0 0.0
    %1825 = vmatpush1.msra.mxu0 0.0
    %1826 = vmatprep.subr.mxu0 0.0
    %1827 = vmatpush1.msra.mxu0 0.0
    %1828 = vmatprep.subr.mxu0 0.0
    %1829 = vmatpush1.msra.mxu0 0.0
    %1830 = vmatprep.subr.mxu0 0.0
    %1831 = vmatpush1.msra.mxu0 0.0
    %1832 = vmatprep.subr.mxu0 0.0
    %1833 = vmatpush1.msra.mxu0 0.0
    %1834 = vmatprep.subr.mxu0 0.0
    %1835 = vmatpush1.msra.mxu0 0.0
    %1836 = vmatprep.subr.mxu0 0.0
    %1837 = vmatpush1.msra.mxu0 0.0
    %1838 = vmatprep.subr.mxu0 0.0
    %1839 = vmatpush1.msra.mxu0 0.0
    %1840 = vmatprep.subr.mxu0 0.0
    %1841 = vmatpush1.msra.mxu0 0.0
    %1842 = vmatprep.subr.mxu0 0.0
    %1843 = vmatpush1.msra.mxu0 0.0
    %1844 = vmatprep.subr.mxu0 0.0
    %1845 = vmatpush1.msra.mxu0 0.0
    %1846 = vmatprep.subr.mxu0 0.0
    %1847 = vmatpush1.msra.mxu0 0.0
    %1848 = vmatprep.subr.mxu0 0.0
    %1849 = vmatpush1.msra.mxu0 0.0
    %1850 = vmatprep.subr.mxu0 0.0
    %1851 = vmatpush1.msra.mxu0 0.0
    %1852 = vmatprep.subr.mxu0 0.0
    %1853 = vmatpush1.msra.mxu0 0.0
    %1854 = vmatprep.subr.mxu0 0.0
    %1855 = vmatpush1.msra.mxu0 0.0
    %1856 = vmatprep.subr.mxu0 0.0
    %1857 = vmatpush1.msra.mxu0 0.0
    %1858 = vmatprep.subr.mxu0 0.0
    %1859 = vmatpush1.msra.mxu0 0.0
    %1860 = vmatprep.subr.mxu0 0.0
    %1861 = vmatpush1.msra.mxu0 0.0
    %1862 = vmatprep.subr.mxu0 0.0
    %1863 = vmatpush1.msra.mxu0 0.0
    %1864 = vmatprep.subr.mxu0 0.0
    %1865 = vmatpush1.msra.mxu0 0.0
    %1866 = vmatprep.subr.mxu0 0.0
    %1867 = vmatpush1.msra.mxu0 0.0
    %1868 = vmatprep.subr.mxu0 0.0
    %1869 = vmatpush1.msra.mxu0 0.0
    %1870 = vmatprep.subr.mxu0 0.0
    %1871 = vmatpush1.msra.mxu0 0.0
    %1872 = vmatprep.subr.mxu0 0.0
    %1873 = vmatpush1.msra.mxu0 0.0
    %1874 = vmatprep.subr.mxu0 0.0
    %1875 = vmatpush1.msra.mxu0 0.0
    %1876 = vmatprep.mubr.f32.mxu0 0.0
    %1877 = vmatmul.mubr.f32.gmra.mrb[0].mxu0 %v1810
    %v1878 = vpop.f32.mrb[0].mxu0
    %v1879 = vadd.f32 0.0, %v1878
    %v1880 = vpop.f32.mrb[0].mxu0
    %1881 = vdwg.mxu0
    %1882 = vmatprep.subr.mxu0 0.0
    %1883 = vmatpush1.msra.mxu0 %v342
    %1884 = vmatprep.subr.mxu0 0.0
    %1885 = vmatpush1.msra.mxu0 %v343
    %1886 = vmatprep.subr.mxu0 0.0
    %1887 = vmatpush1.msra.mxu0 %v344
    %1888 = vmatprep.subr.mxu0 0.0
    %1889 = vmatpush1.msra.mxu0 %v345
    %1890 = vmatprep.subr.mxu0 0.0
    %1891 = vmatpush1.msra.mxu0 0.0
    %1892 = vmatprep.subr.mxu0 0.0
    %1893 = vmatpush1.msra.mxu0 0.0
    %1894 = vmatprep.subr.mxu0 0.0
    %1895 = vmatpush1.msra.mxu0 0.0
    %1896 = vmatprep.subr.mxu0 0.0
    %1897 = vmatpush1.msra.mxu0 0.0
    %1898 = vmatprep.subr.mxu0 0.0
    %1899 = vmatpush1.msra.mxu0 0.0
    %1900 = vmatprep.subr.mxu0 0.0
    %1901 = vmatpush1.msra.mxu0 0.0
    %1902 = vmatprep.subr.mxu0 0.0
    %1903 = vmatpush1.msra.mxu0 0.0
    %1904 = vmatprep.subr.mxu0 0.0
    %1905 = vmatpush1.msra.mxu0 0.0
    %1906 = vmatprep.subr.mxu0 0.0
    %1907 = vmatpush1.msra.mxu0 0.0
    %1908 = vmatprep.subr.mxu0 0.0
    %1909 = vmatpush1.msra.mxu0 0.0
    %1910 = vmatprep.subr.mxu0 0.0
    %1911 = vmatpush1.msra.mxu0 0.0
    %1912 = vmatprep.subr.mxu0 0.0
    %1913 = vmatpush1.msra.mxu0 0.0
    %1914 = vmatprep.subr.mxu0 0.0
    %1915 = vmatpush1.msra.mxu0 0.0
    %1916 = vmatprep.subr.mxu0 0.0
    %1917 = vmatpush1.msra.mxu0 0.0
    %1918 = vmatprep.subr.mxu0 0.0
    %1919 = vmatpush1.msra.mxu0 0.0
    %1920 = vmatprep.subr.mxu0 0.0
    %1921 = vmatpush1.msra.mxu0 0.0
    %1922 = vmatprep.subr.mxu0 0.0
    %1923 = vmatpush1.msra.mxu0 0.0
    %1924 = vmatprep.subr.mxu0 0.0
    %1925 = vmatpush1.msra.mxu0 0.0
    %1926 = vmatprep.subr.mxu0 0.0
    %1927 = vmatpush1.msra.mxu0 0.0
    %1928 = vmatprep.subr.mxu0 0.0
    %1929 = vmatpush1.msra.mxu0 0.0
    %1930 = vmatprep.subr.mxu0 0.0
    %1931 = vmatpush1.msra.mxu0 0.0
    %1932 = vmatprep.subr.mxu0 0.0
    %1933 = vmatpush1.msra.mxu0 0.0
    %1934 = vmatprep.subr.mxu0 0.0
    %1935 = vmatpush1.msra.mxu0 0.0
    %1936 = vmatprep.subr.mxu0 0.0
    %1937 = vmatpush1.msra.mxu0 0.0
    %1938 = vmatprep.subr.mxu0 0.0
    %1939 = vmatpush1.msra.mxu0 0.0
    %1940 = vmatprep.subr.mxu0 0.0
    %1941 = vmatpush1.msra.mxu0 0.0
    %1942 = vmatprep.subr.mxu0 0.0
    %1943 = vmatpush1.msra.mxu0 0.0
    %1944 = vmatprep.subr.mxu0 0.0
    %1945 = vmatpush1.msra.mxu0 0.0
    %1946 = vmatprep.mubr.f32.mxu0 0.0
    %1947 = vmatmul.mubr.f32.gmra.mrb[0].mxu0 %v1810
    %v1948 = vpop.f32.mrb[0].mxu0
    %v1949 = vadd.f32 0.0, %v1948
    %v1950 = vpop.f32.mrb[0].mxu0
    %1951 = vdwg.mxu0
    %v1953 = vrot.slane %v1879, 4
    %v1955 = vadd.f32 %v166, %v1953
    %v1956 = vxor.u32 %v1955, 2147483648
    %v1957 = vmul.f32 %v1956, 1.442695
    %v1958 = vpow.pop %v1957
    %v1959 = vadd.f32 %v1958, 1.0
    %v1960 = vrcp.pop %v1959
    %v1961 = vmul.f32 1.0, %v1960
    %v1963 = vrot.slane %v1949, 4
    %v1965 = vadd.f32 %v250, %v1963
    %v1966 = vxor.u32 %v1965, 2147483648
    %v1967 = vmul.f32 %v1966, 1.442695
    %v1968 = vpow.pop %v1967
    %v1969 = vadd.f32 %v1968, 1.0
    %v1970 = vrcp.pop %v1969
    %v1971 = vmul.f32 1.0, %v1970
    %1972 = vmatprep.subr.mxu0 0.0
    %1973 = vmatpush1.msra.mxu0 %v347
    %1974 = vmatprep.subr.mxu0 0.0
    %1975 = vmatpush1.msra.mxu0 %v348
    %1976 = vmatprep.subr.mxu0 0.0
    %1977 = vmatpush1.msra.mxu0 %v349
    %1978 = vmatprep.subr.mxu0 0.0
    %1979 = vmatpush1.msra.mxu0 %v350
    %1980 = vmatprep.subr.mxu0 0.0
    %1981 = vmatpush1.msra.mxu0 0.0
    %1982 = vmatprep.subr.mxu0 0.0
    %1983 = vmatpush1.msra.mxu0 0.0
    %1984 = vmatprep.subr.mxu0 0.0
    %1985 = vmatpush1.msra.mxu0 0.0
    %1986 = vmatprep.subr.mxu0 0.0
    %1987 = vmatpush1.msra.mxu0 0.0
    %1988 = vmatprep.subr.mxu0 0.0
    %1989 = vmatpush1.msra.mxu0 0.0
    %1990 = vmatprep.subr.mxu0 0.0
    %1991 = vmatpush1.msra.mxu0 0.0
    %1992 = vmatprep.subr.mxu0 0.0
    %1993 = vmatpush1.msra.mxu0 0.0
    %1994 = vmatprep.subr.mxu0 0.0
    %1995 = vmatpush1.msra.mxu0 0.0
    %1996 = vmatprep.subr.mxu0 0.0
    %1997 = vmatpush1.msra.mxu0 0.0
    %1998 = vmatprep.subr.mxu0 0.0
    %1999 = vmatpush1.msra.mxu0 0.0
    %2000 = vmatprep.subr.mxu0 0.0
    %2001 = vmatpush1.msra.mxu0 0.0
    %2002 = vmatprep.subr.mxu0 0.0
    %2003 = vmatpush1.msra.mxu0 0.0
    %2004 = vmatprep.subr.mxu0 0.0
    %2005 = vmatpush1.msra.mxu0 0.0
    %2006 = vmatprep.subr.mxu0 0.0
    %2007 = vmatpush1.msra.mxu0 0.0
    %2008 = vmatprep.subr.mxu0 0.0
    %2009 = vmatpush1.msra.mxu0 0.0
    %2010 = vmatprep.subr.mxu0 0.0
    %2011 = vmatpush1.msra.mxu0 0.0
    %2012 = vmatprep.subr.mxu0 0.0
    %2013 = vmatpush1.msra.mxu0 0.0
    %2014 = vmatprep.subr.mxu0 0.0
    %2015 = vmatpush1.msra.mxu0 0.0
    %2016 = vmatprep.subr.mxu0 0.0
    %2017 = vmatpush1.msra.mxu0 0.0
    %2018 = vmatprep.subr.mxu0 0.0
    %2019 = vmatpush1.msra.mxu0 0.0
    %2020 = vmatprep.subr.mxu0 0.0
    %2021 = vmatpush1.msra.mxu0 0.0
    %2022 = vmatprep.subr.mxu0 0.0
    %2023 = vmatpush1.msra.mxu0 0.0
    %2024 = vmatprep.subr.mxu0 0.0
    %2025 = vmatpush1.msra.mxu0 0.0
    %2026 = vmatprep.subr.mxu0 0.0
    %2027 = vmatpush1.msra.mxu0 0.0
    %2028 = vmatprep.subr.mxu0 0.0
    %2029 = vmatpush1.msra.mxu0 0.0
    %2030 = vmatprep.subr.mxu0 0.0
    %2031 = vmatpush1.msra.mxu0 0.0
    %2032 = vmatprep.subr.mxu0 0.0
    %2033 = vmatpush1.msra.mxu0 0.0
    %2034 = vmatprep.subr.mxu0 0.0
    %2035 = vmatpush1.msra.mxu0 0.0
    %2036 = vmatprep.mubr.f32.mxu0 0.0
    %2037 = vmatmul.mubr.f32.gmra.mrb[0].mxu0 %v1810
    %v2038 = vpop.f32.mrb[0].mxu0
    %v2039 = vadd.f32 %v354, %v2038
    %v2040 = vpop.f32.mrb[0].mxu0
    %2041 = vdwg.mxu0
    %v2043 = vrot.slane %v2039, 4
    %v2045 = vmul.f32 %v1961, %v2043
    %v2046 = vadd.f32 %v334, %v2045
    %v2047 = vtanh.pop %v2046
    %v2048 = vsub.f32 1.0, %v1971
    %v2049 = vmul.f32 %v2048, %v2047
    %v2050 = vrot.slane %v1807, 6
    %v2052 = vmul.f32 %v1971, %v2050
    %v2053 = vadd.f32 %v2049, %v2052
    %v2055 = vrot.slane %v2053, 4
    %v2056 = vsel %vm355, %v2055, 0
    %2058 = vmatprep.subr.mxu0 0.0
    %2059 = vmatpush1.msra.mxu0 %v337
    %2060 = vmatprep.subr.mxu0 0.0
    %2061 = vmatpush1.msra.mxu0 %v338
    %2062 = vmatprep.subr.mxu0 0.0
    %2063 = vmatpush1.msra.mxu0 %v339
    %2064 = vmatprep.subr.mxu0 0.0
    %2065 = vmatpush1.msra.mxu0 %v340
    %2066 = vmatprep.subr.mxu0 0.0
    %2067 = vmatpush1.msra.mxu0 0.0
    %2068 = vmatprep.subr.mxu0 0.0
    %2069 = vmatpush1.msra.mxu0 0.0
    %2070 = vmatprep.subr.mxu0 0.0
    %2071 = vmatpush1.msra.mxu0 0.0
    %2072 = vmatprep.subr.mxu0 0.0
    %2073 = vmatpush1.msra.mxu0 0.0
    %2074 = vmatprep.subr.mxu0 0.0
    %2075 = vmatpush1.msra.mxu0 0.0
    %2076 = vmatprep.subr.mxu0 0.0
    %2077 = vmatpush1.msra.mxu0 0.0
    %2078 = vmatprep.subr.mxu0 0.0
    %2079 = vmatpush1.msra.mxu0 0.0
    %2080 = vmatprep.subr.mxu0 0.0
    %2081 = vmatpush1.msra.mxu0 0.0
    %2082 = vmatprep.subr.mxu0 0.0
    %2083 = vmatpush1.msra.mxu0 0.0
    %2084 = vmatprep.subr.mxu0 0.0
    %2085 = vmatpush1.msra.mxu0 0.0
    %2086 = vmatprep.subr.mxu0 0.0
    %2087 = vmatpush1.msra.mxu0 0.0
    %2088 = vmatprep.subr.mxu0 0.0
    %2089 = vmatpush1.msra.mxu0 0.0
    %2090 = vmatprep.subr.mxu0 0.0
    %2091 = vmatpush1.msra.mxu0 0.0
    %2092 = vmatprep.subr.mxu0 0.0
    %2093 = vmatpush1.msra.mxu0 0.0
    %2094 = vmatprep.subr.mxu0 0.0
    %2095 = vmatpush1.msra.mxu0 0.0
    %2096 = vmatprep.subr.mxu0 0.0
    %2097 = vmatpush1.msra.mxu0 0.0
    %2098 = vmatprep.subr.mxu0 0.0
    %2099 = vmatpush1.msra.mxu0 0.0
    %2100 = vmatprep.subr.mxu0 0.0
    %2101 = vmatpush1.msra.mxu0 0.0
    %2102 = vmatprep.subr.mxu0 0.0
    %2103 = vmatpush1.msra.mxu0 0.0
    %2104 = vmatprep.subr.mxu0 0.0
    %2105 = vmatpush1.msra.mxu0 0.0
    %2106 = vmatprep.subr.mxu0 0.0
    %2107 = vmatpush1.msra.mxu0 0.0
    %2108 = vmatprep.subr.mxu0 0.0
    %2109 = vmatpush1.msra.mxu0 0.0
    %2110 = vmatprep.subr.mxu0 0.0
    %2111 = vmatpush1.msra.mxu0 0.0
    %2112 = vmatprep.subr.mxu0 0.0
    %2113 = vmatpush1.msra.mxu0 0.0
    %2114 = vmatprep.subr.mxu0 0.0
    %2115 = vmatpush1.msra.mxu0 0.0
    %2116 = vmatprep.subr.mxu0 0.0
    %2117 = vmatpush1.msra.mxu0 0.0
    %2118 = vmatprep.subr.mxu0 0.0
    %2119 = vmatpush1.msra.mxu0 0.0
    %2120 = vmatprep.subr.mxu0 0.0
    %2121 = vmatpush1.msra.mxu0 0.0
    %2122 = vmatprep.mubr.f32.mxu0 0.0
    %2123 = vmatmul.mubr.f32.gmra.mrb[0].mxu0 %v2056
    %v2124 = vpop.f32.mrb[0].mxu0
    %v2125 = vadd.f32 0.0, %v2124
    %v2126 = vpop.f32.mrb[0].mxu0
    %2127 = vdwg.mxu0
    %2128 = vmatprep.subr.mxu0 0.0
    %2129 = vmatpush1.msra.mxu0 %v342
    %2130 = vmatprep.subr.mxu0 0.0
    %2131 = vmatpush1.msra.mxu0 %v343
    %2132 = vmatprep.subr.mxu0 0.0
    %2133 = vmatpush1.msra.mxu0 %v344
    %2134 = vmatprep.subr.mxu0 0.0
    %2135 = vmatpush1.msra.mxu0 %v345
    %2136 = vmatprep.subr.mxu0 0.0
    %2137 = vmatpush1.msra.mxu0 0.0
    %2138 = vmatprep.subr.mxu0 0.0
    %2139 = vmatpush1.msra.mxu0 0.0
    %2140 = vmatprep.subr.mxu0 0.0
    %2141 = vmatpush1.msra.mxu0 0.0
    %2142 = vmatprep.subr.mxu0 0.0
    %2143 = vmatpush1.msra.mxu0 0.0
    %2144 = vmatprep.subr.mxu0 0.0
    %2145 = vmatpush1.msra.mxu0 0.0
    %2146 = vmatprep.subr.mxu0 0.0
    %2147 = vmatpush1.msra.mxu0 0.0
    %2148 = vmatprep.subr.mxu0 0.0
    %2149 = vmatpush1.msra.mxu0 0.0
    %2150 = vmatprep.subr.mxu0 0.0
    %2151 = vmatpush1.msra.mxu0 0.0
    %2152 = vmatprep.subr.mxu0 0.0
    %2153 = vmatpush1.msra.mxu0 0.0
    %2154 = vmatprep.subr.mxu0 0.0
    %2155 = vmatpush1.msra.mxu0 0.0
    %2156 = vmatprep.subr.mxu0 0.0
    %2157 = vmatpush1.msra.mxu0 0.0
    %2158 = vmatprep.subr.mxu0 0.0
    %2159 = vmatpush1.msra.mxu0 0.0
    %2160 = vmatprep.subr.mxu0 0.0
    %2161 = vmatpush1.msra.mxu0 0.0
    %2162 = vmatprep.subr.mxu0 0.0
    %2163 = vmatpush1.msra.mxu0 0.0
    %2164 = vmatprep.subr.mxu0 0.0
    %2165 = vmatpush1.msra.mxu0 0.0
    %2166 = vmatprep.subr.mxu0 0.0
    %2167 = vmatpush1.msra.mxu0 0.0
    %2168 = vmatprep.subr.mxu0 0.0
    %2169 = vmatpush1.msra.mxu0 0.0
    %2170 = vmatprep.subr.mxu0 0.0
    %2171 = vmatpush1.msra.mxu0 0.0
    %2172 = vmatprep.subr.mxu0 0.0
    %2173 = vmatpush1.msra.mxu0 0.0
    %2174 = vmatprep.subr.mxu0 0.0
    %2175 = vmatpush1.msra.mxu0 0.0
    %2176 = vmatprep.subr.mxu0 0.0
    %2177 = vmatpush1.msra.mxu0 0.0
    %2178 = vmatprep.subr.mxu0 0.0
    %2179 = vmatpush1.msra.mxu0 0.0
    %2180 = vmatprep.subr.mxu0 0.0
    %2181 = vmatpush1.msra.mxu0 0.0
    %2182 = vmatprep.subr.mxu0 0.0
    %2183 = vmatpush1.msra.mxu0 0.0
    %2184 = vmatprep.subr.mxu0 0.0
    %2185 = vmatpush1.msra.mxu0 0.0
    %2186 = vmatprep.subr.mxu0 0.0
    %2187 = vmatpush1.msra.mxu0 0.0
    %2188 = vmatprep.subr.mxu0 0.0
    %2189 = vmatpush1.msra.mxu0 0.0
    %2190 = vmatprep.subr.mxu0 0.0
    %2191 = vmatpush1.msra.mxu0 0.0
    %2192 = vmatprep.mubr.f32.mxu0 0.0
    %2193 = vmatmul.mubr.f32.gmra.mrb[0].mxu0 %v2056
    %v2194 = vpop.f32.mrb[0].mxu0
    %v2195 = vadd.f32 0.0, %v2194
    %v2196 = vpop.f32.mrb[0].mxu0
    %2197 = vdwg.mxu0
    %v2199 = vrot.slane %v2125, 2
    %v2201 = vadd.f32 %v166, %v2199
    %v2202 = vxor.u32 %v2201, 2147483648
    %v2203 = vmul.f32 %v2202, 1.442695
    %v2204 = vpow.pop %v2203
    %v2205 = vadd.f32 %v2204, 1.0
    %v2206 = vrcp.pop %v2205
    %v2207 = vmul.f32 1.0, %v2206
    %v2209 = vrot.slane %v2195, 2
    %v2211 = vadd.f32 %v250, %v2209
    %v2212 = vxor.u32 %v2211, 2147483648
    %v2213 = vmul.f32 %v2212, 1.442695
    %v2214 = vpow.pop %v2213
    %v2215 = vadd.f32 %v2214, 1.0
    %v2216 = vrcp.pop %v2215
    %v2217 = vmul.f32 1.0, %v2216
    %2218 = vmatprep.subr.mxu0 0.0
    %2219 = vmatpush1.msra.mxu0 %v347
    %2220 = vmatprep.subr.mxu0 0.0
    %2221 = vmatpush1.msra.mxu0 %v348
    %2222 = vmatprep.subr.mxu0 0.0
    %2223 = vmatpush1.msra.mxu0 %v349
    %2224 = vmatprep.subr.mxu0 0.0
    %2225 = vmatpush1.msra.mxu0 %v350
    %2226 = vmatprep.subr.mxu0 0.0
    %2227 = vmatpush1.msra.mxu0 0.0
    %2228 = vmatprep.subr.mxu0 0.0
    %2229 = vmatpush1.msra.mxu0 0.0
    %2230 = vmatprep.subr.mxu0 0.0
    %2231 = vmatpush1.msra.mxu0 0.0
    %2232 = vmatprep.subr.mxu0 0.0
    %2233 = vmatpush1.msra.mxu0 0.0
    %2234 = vmatprep.subr.mxu0 0.0
    %2235 = vmatpush1.msra.mxu0 0.0
    %2236 = vmatprep.subr.mxu0 0.0
    %2237 = vmatpush1.msra.mxu0 0.0
    %2238 = vmatprep.subr.mxu0 0.0
    %2239 = vmatpush1.msra.mxu0 0.0
    %2240 = vmatprep.subr.mxu0 0.0
    %2241 = vmatpush1.msra.mxu0 0.0
    %2242 = vmatprep.subr.mxu0 0.0
    %2243 = vmatpush1.msra.mxu0 0.0
    %2244 = vmatprep.subr.mxu0 0.0
    %2245 = vmatpush1.msra.mxu0 0.0
    %2246 = vmatprep.subr.mxu0 0.0
    %2247 = vmatpush1.msra.mxu0 0.0
    %2248 = vmatprep.subr.mxu0 0.0
    %2249 = vmatpush1.msra.mxu0 0.0
    %2250 = vmatprep.subr.mxu0 0.0
    %2251 = vmatpush1.msra.mxu0 0.0
    %2252 = vmatprep.subr.mxu0 0.0
    %2253 = vmatpush1.msra.mxu0 0.0
    %2254 = vmatprep.subr.mxu0 0.0
    %2255 = vmatpush1.msra.mxu0 0.0
    %2256 = vmatprep.subr.mxu0 0.0
    %2257 = vmatpush1.msra.mxu0 0.0
    %2258 = vmatprep.subr.mxu0 0.0
    %2259 = vmatpush1.msra.mxu0 0.0
    %2260 = vmatprep.subr.mxu0 0.0
    %2261 = vmatpush1.msra.mxu0 0.0
    %2262 = vmatprep.subr.mxu0 0.0
    %2263 = vmatpush1.msra.mxu0 0.0
    %2264 = vmatprep.subr.mxu0 0.0
    %2265 = vmatpush1.msra.mxu0 0.0
    %2266 = vmatprep.subr.mxu0 0.0
    %2267 = vmatpush1.msra.mxu0 0.0
    %2268 = vmatprep.subr.mxu0 0.0
    %2269 = vmatpush1.msra.mxu0 0.0
    %2270 = vmatprep.subr.mxu0 0.0
    %2271 = vmatpush1.msra.mxu0 0.0
    %2272 = vmatprep.subr.mxu0 0.0
    %2273 = vmatpush1.msra.mxu0 0.0
    %2274 = vmatprep.subr.mxu0 0.0
    %2275 = vmatpush1.msra.mxu0 0.0
    %2276 = vmatprep.subr.mxu0 0.0
    %2277 = vmatpush1.msra.mxu0 0.0
    %2278 = vmatprep.subr.mxu0 0.0
    %2279 = vmatpush1.msra.mxu0 0.0
    %2280 = vmatprep.subr.mxu0 0.0
    %2281 = vmatpush1.msra.mxu0 0.0
    %2282 = vmatprep.mubr.f32.mxu0 0.0
    %2283 = vmatmul.mubr.f32.gmra.mrb[0].mxu0 %v2056
    %v2284 = vpop.f32.mrb[0].mxu0
    %v2285 = vadd.f32 %v354, %v2284
    %v2286 = vpop.f32.mrb[0].mxu0
    %2287 = vdwg.mxu0
    %v2289 = vrot.slane %v2285, 2
    %v2291 = vmul.f32 %v2207, %v2289
    %v2292 = vadd.f32 %v334, %v2291
    %v2293 = vtanh.pop %v2292
    %v2294 = vsub.f32 1.0, %v2217
    %v2295 = vmul.f32 %v2294, %v2293
    %v2296 = vrot.slane %v2053, 6
    %v2298 = vmul.f32 %v2217, %v2296
    %v2299 = vadd.f32 %v2295, %v2298
    %vm2300 = vcmask 1041408
    %v2301 = vsel %vm2300, %v589, %v834
    %v2302 = vsel %vm90, %v2301, %v1080
    %vm2303 = vcmask 1045504
    %v2304 = vsel %vm2303, %v2302, %v1326
    %v2305 = vsel %vm2300, %v1562, %v1807
    %v2306 = vsel %vm90, %v2305, %v2053
    %v2307 = vsel %vm2303, %v2306, %v2299
    %v2308 = vld [vmem:[%s6] sm:$0xf]
    %v2309 = vld [vmem:[#allocation5] sm:$0xff]
    %v2310 = vld [vmem:[#allocation5 + $0x8] sm:$0xff]
    %v2311 = vld [vmem:[#allocation5 + $0x10] sm:$0xff]
    %v2312 = vld [vmem:[#allocation5 + $0x18] sm:$0xff]
    %v2313 = vlaneseq
    %v2314 = vshrl.u32 %v2313, 7
    %v2315 = vsub.s32 0, %v2314
    %v2316 = vrot.slane %v2308, %v2315
    %v2318 = vsel %vm355, %v2304, 0
    %v2321 = vsel %vm355, %v2307, 0
    %2323 = vmatprep.subr.mxu0 0.0
    %2324 = vmatpush1.msra.mxu0 %v2309
    %2325 = vmatprep.subr.mxu0 0.0
    %2326 = vmatpush1.msra.mxu0 %v2310
    %2327 = vmatprep.subr.mxu0 0.0
    %2328 = vmatpush1.msra.mxu0 %v2311
    %2329 = vmatprep.subr.mxu0 0.0
    %2330 = vmatpush1.msra.mxu0 %v2312
    %2331 = vmatprep.subr.mxu0 0.0
    %2332 = vmatpush1.msra.mxu0 0.0
    %2333 = vmatprep.subr.mxu0 0.0
    %2334 = vmatpush1.msra.mxu0 0.0
    %2335 = vmatprep.subr.mxu0 0.0
    %2336 = vmatpush1.msra.mxu0 0.0
    %2337 = vmatprep.subr.mxu0 0.0
    %2338 = vmatpush1.msra.mxu0 0.0
    %2339 = vmatprep.subr.mxu0 0.0
    %2340 = vmatpush1.msra.mxu0 0.0
    %2341 = vmatprep.subr.mxu0 0.0
    %2342 = vmatpush1.msra.mxu0 0.0
    %2343 = vmatprep.subr.mxu0 0.0
    %2344 = vmatpush1.msra.mxu0 0.0
    %2345 = vmatprep.subr.mxu0 0.0
    %2346 = vmatpush1.msra.mxu0 0.0
    %2347 = vmatprep.subr.mxu0 0.0
    %2348 = vmatpush1.msra.mxu0 0.0
    %2349 = vmatprep.subr.mxu0 0.0
    %2350 = vmatpush1.msra.mxu0 0.0
    %2351 = vmatprep.subr.mxu0 0.0
    %2352 = vmatpush1.msra.mxu0 0.0
    %2353 = vmatprep.subr.mxu0 0.0
    %2354 = vmatpush1.msra.mxu0 0.0
    %2355 = vmatprep.subr.mxu0 0.0
    %2356 = vmatpush1.msra.mxu0 0.0
    %2357 = vmatprep.subr.mxu0 0.0
    %2358 = vmatpush1.msra.mxu0 0.0
    %2359 = vmatprep.subr.mxu0 0.0
    %2360 = vmatpush1.msra.mxu0 0.0
    %2361 = vmatprep.subr.mxu0 0.0
    %2362 = vmatpush1.msra.mxu0 0.0
    %2363 = vmatprep.subr.mxu0 0.0
    %2364 = vmatpush1.msra.mxu0 0.0
    %2365 = vmatprep.subr.mxu0 0.0
    %2366 = vmatpush1.msra.mxu0 0.0
    %2367 = vmatprep.subr.mxu0 0.0
    %2368 = vmatpush1.msra.mxu0 0.0
    %2369 = vmatprep.subr.mxu0 0.0
    %2370 = vmatpush1.msra.mxu0 0.0
    %2371 = vmatprep.subr.mxu0 0.0
    %2372 = vmatpush1.msra.mxu0 0.0
    %2373 = vmatprep.subr.mxu0 0.0
    %2374 = vmatpush1.msra.mxu0 0.0
    %2375 = vmatprep.subr.mxu0 0.0
    %2376 = vmatpush1.msra.mxu0 0.0
    %2377 = vmatprep.subr.mxu0 0.0
    %2378 = vmatpush1.msra.mxu0 0.0
    %2379 = vmatprep.subr.mxu0 0.0
    %2380 = vmatpush1.msra.mxu0 0.0
    %2381 = vmatprep.subr.mxu0 0.0
    %2382 = vmatpush1.msra.mxu0 0.0
    %2383 = vmatprep.subr.mxu0 0.0
    %2384 = vmatpush1.msra.mxu0 0.0
    %2385 = vmatprep.subr.mxu0 0.0
    %2386 = vmatpush1.msra.mxu0 0.0
    %2387 = vmatprep.mubr.f32.mxu0 0.0
    %2388 = vmatmul.mubr.f32.gmra.mrb[0].mxu0 %v2318
    %v2389 = vpop.f32.mrb[0].mxu0
    %v2390 = vadd.f32 %v2316, %v2389
    %v2391 = vpop.f32.mrb[0].mxu0
    %2392 = vmatprep.mubr.f32.mxu0 0.0
    %2393 = vmatmul.mubr.f32.gmra.mrb[0].mxu0 %v2321
    %v2394 = vpop.f32.mrb[0].mxu0
    %v2395 = vadd.f32 %v2316, %v2394
    %v2396 = vpop.f32.mrb[0].mxu0
    %2397 = vdwg.mxu0
    %s2398 = scalar_lea.vmem [#allocation5], 32
    %v2399 = vld [vmem:[%s2398] sm:$0xff]
    %v2400 = vld [vmem:[%s2398 + $0x8] sm:$0xff]
    %v2401 = vld [vmem:[%s2398 + $0x10] sm:$0xff]
    %v2402 = vld [vmem:[%s2398 + $0x18] sm:$0xff]
    %v2403 = vlaneseq
    %v2404 = vshrl.u32 %v2403, 7
    %v2405 = vsub.s32 1, %v2404
    %v2406 = vrot.slane %v2308, %v2405
    %2407 = vmatprep.subr.mxu0 0.0
    %2408 = vmatpush1.msra.mxu0 %v2399
    %2409 = vmatprep.subr.mxu0 0.0
    %2410 = vmatpush1.msra.mxu0 %v2400
    %2411 = vmatprep.subr.mxu0 0.0
    %2412 = vmatpush1.msra.mxu0 %v2401
    %2413 = vmatprep.subr.mxu0 0.0
    %2414 = vmatpush1.msra.mxu0 %v2402
    %2415 = vmatprep.subr.mxu0 0.0
    %2416 = vmatpush1.msra.mxu0 0.0
    %2417 = vmatprep.subr.mxu0 0.0
    %2418 = vmatpush1.msra.mxu0 0.0
    %2419 = vmatprep.subr.mxu0 0.0
    %2420 = vmatpush1.msra.mxu0 0.0
    %2421 = vmatprep.subr.mxu0 0.0
    %2422 = vmatpush1.msra.mxu0 0.0
    %2423 = vmatprep.subr.mxu0 0.0
    %2424 = vmatpush1.msra.mxu0 0.0
    %2425 = vmatprep.subr.mxu0 0.0
    %2426 = vmatpush1.msra.mxu0 0.0
    %2427 = vmatprep.subr.mxu0 0.0
    %2428 = vmatpush1.msra.mxu0 0.0
    %2429 = vmatprep.subr.mxu0 0.0
    %2430 = vmatpush1.msra.mxu0 0.0
    %2431 = vmatprep.subr.mxu0 0.0
    %2432 = vmatpush1.msra.mxu0 0.0
    %2433 = vmatprep.subr.mxu0 0.0
    %2434 = vmatpush1.msra.mxu0 0.0
    %2435 = vmatprep.subr.mxu0 0.0
    %2436 = vmatpush1.msra.mxu0 0.0
    %2437 = vmatprep.subr.mxu0 0.0
    %2438 = vmatpush1.msra.mxu0 0.0
    %2439 = vmatprep.subr.mxu0 0.0
    %2440 = vmatpush1.msra.mxu0 0.0
    %2441 = vmatprep.subr.mxu0 0.0
    %2442 = vmatpush1.msra.mxu0 0.0
    %2443 = vmatprep.subr.mxu0 0.0
    %2444 = vmatpush1.msra.mxu0 0.0
    %2445 = vmatprep.subr.mxu0 0.0
    %2446 = vmatpush1.msra.mxu0 0.0
    %2447 = vmatprep.subr.mxu0 0.0
    %2448 = vmatpush1.msra.mxu0 0.0
    %2449 = vmatprep.subr.mxu0 0.0
    %2450 = vmatpush1.msra.mxu0 0.0
    %2451 = vmatprep.subr.mxu0 0.0
    %2452 = vmatpush1.msra.mxu0 0.0
    %2453 = vmatprep.subr.mxu0 0.0
    %2454 = vmatpush1.msra.mxu0 0.0
    %2455 = vmatprep.subr.mxu0 0.0
    %2456 = vmatpush1.msra.mxu0 0.0
    %2457 = vmatprep.subr.mxu0 0.0
    %2458 = vmatpush1.msra.mxu0 0.0
    %2459 = vmatprep.subr.mxu0 0.0
    %2460 = vmatpush1.msra.mxu0 0.0
    %2461 = vmatprep.subr.mxu0 0.0
    %2462 = vmatpush1.msra.mxu0 0.0
    %2463 = vmatprep.subr.mxu0 0.0
    %2464 = vmatpush1.msra.mxu0 0.0
    %2465 = vmatprep.subr.mxu0 0.0
    %2466 = vmatpush1.msra.mxu0 0.0
    %2467 = vmatprep.subr.mxu0 0.0
    %2468 = vmatpush1.msra.mxu0 0.0
    %2469 = vmatprep.subr.mxu0 0.0
    %2470 = vmatpush1.msra.mxu0 0.0
    %2471 = vmatprep.mubr.f32.mxu0 0.0
    %2472 = vmatmul.mubr.f32.gmra.mrb[0].mxu0 %v2318
    %v2473 = vpop.f32.mrb[0].mxu0
    %v2474 = vadd.f32 %v2406, %v2473
    %v2475 = vpop.f32.mrb[0].mxu0
    %2476 = vmatprep.mubr.f32.mxu0 0.0
    %2477 = vmatmul.mubr.f32.gmra.mrb[0].mxu0 %v2321
    %v2478 = vpop.f32.mrb[0].mxu0
    %v2479 = vadd.f32 %v2406, %v2478
    %v2480 = vpop.f32.mrb[0].mxu0
    %2481 = vdwg.mxu0
    %s2482 = scalar_lea.vmem [#allocation5], 64
    %v2483 = vld [vmem:[%s2482] sm:$0xff]
    %v2484 = vld [vmem:[%s2482 + $0x8] sm:$0xff]
    %v2485 = vld [vmem:[%s2482 + $0x10] sm:$0xff]
    %v2486 = vld [vmem:[%s2482 + $0x18] sm:$0xff]
    %v2487 = vlaneseq
    %v2488 = vshrl.u32 %v2487, 7
    %v2489 = vsub.s32 2, %v2488
    %v2490 = vrot.slane %v2308, %v2489
    %2491 = vmatprep.subr.mxu0 0.0
    %2492 = vmatpush1.msra.mxu0 %v2483
    %2493 = vmatprep.subr.mxu0 0.0
    %2494 = vmatpush1.msra.mxu0 %v2484
    %2495 = vmatprep.subr.mxu0 0.0
    %2496 = vmatpush1.msra.mxu0 %v2485
    %2497 = vmatprep.subr.mxu0 0.0
    %2498 = vmatpush1.msra.mxu0 %v2486
    %2499 = vmatprep.subr.mxu0 0.0
    %2500 = vmatpush1.msra.mxu0 0.0
    %2501 = vmatprep.subr.mxu0 0.0
    %2502 = vmatpush1.msra.mxu0 0.0
    %2503 = vmatprep.subr.mxu0 0.0
    %2504 = vmatpush1.msra.mxu0 0.0
    %2505 = vmatprep.subr.mxu0 0.0
    %2506 = vmatpush1.msra.mxu0 0.0
    %2507 = vmatprep.subr.mxu0 0.0
    %2508 = vmatpush1.msra.mxu0 0.0
    %2509 = vmatprep.subr.mxu0 0.0
    %2510 = vmatpush1.msra.mxu0 0.0
    %2511 = vmatprep.subr.mxu0 0.0
    %2512 = vmatpush1.msra.mxu0 0.0
    %2513 = vmatprep.subr.mxu0 0.0
    %2514 = vmatpush1.msra.mxu0 0.0
    %2515 = vmatprep.subr.mxu0 0.0
    %2516 = vmatpush1.msra.mxu0 0.0
    %2517 = vmatprep.subr.mxu0 0.0
    %2518 = vmatpush1.msra.mxu0 0.0
    %2519 = vmatprep.subr.mxu0 0.0
    %2520 = vmatpush1.msra.mxu0 0.0
    %2521 = vmatprep.subr.mxu0 0.0
    %2522 = vmatpush1.msra.mxu0 0.0
    %2523 = vmatprep.subr.mxu0 0.0
    %2524 = vmatpush1.msra.mxu0 0.0
    %2525 = vmatprep.subr.mxu0 0.0
    %2526 = vmatpush1.msra.mxu0 0.0
    %2527 = vmatprep.subr.mxu0 0.0
    %2528 = vmatpush1.msra.mxu0 0.0
    %2529 = vmatprep.subr.mxu0 0.0
    %2530 = vmatpush1.msra.mxu0 0.0
    %2531 = vmatprep.subr.mxu0 0.0
    %2532 = vmatpush1.msra.mxu0 0.0
    %2533 = vmatprep.subr.mxu0 0.0
    %2534 = vmatpush1.msra.mxu0 0.0
    %2535 = vmatprep.subr.mxu0 0.0
    %2536 = vmatpush1.msra.mxu0 0.0
    %2537 = vmatprep.subr.mxu0 0.0
    %2538 = vmatpush1.msra.mxu0 0.0
    %2539 = vmatprep.subr.mxu0 0.0
    %2540 = vmatpush1.msra.mxu0 0.0
    %2541 = vmatprep.subr.mxu0 0.0
    %2542 = vmatpush1.msra.mxu0 0.0
    %2543 = vmatprep.subr.mxu0 0.0
    %2544 = vmatpush1.msra.mxu0 0.0
    %2545 = vmatprep.subr.mxu0 0.0
    %2546 = vmatpush1.msra.mxu0 0.0
    %2547 = vmatprep.subr.mxu0 0.0
    %2548 = vmatpush1.msra.mxu0 0.0
    %2549 = vmatprep.subr.mxu0 0.0
    %2550 = vmatpush1.msra.mxu0 0.0
    %2551 = vmatprep.subr.mxu0 0.0
    %2552 = vmatpush1.msra.mxu0 0.0
    %2553 = vmatprep.subr.mxu0 0.0
    %2554 = vmatpush1.msra.mxu0 0.0
    %2555 = vmatprep.mubr.f32.mxu0 0.0
    %2556 = vmatmul.mubr.f32.gmra.mrb[0].mxu0 %v2318
    %v2557 = vpop.f32.mrb[0].mxu0
    %v2558 = vadd.f32 %v2490, %v2557
    %v2559 = vpop.f32.mrb[0].mxu0
    %2560 = vmatprep.mubr.f32.mxu0 0.0
    %2561 = vmatmul.mubr.f32.gmra.mrb[0].mxu0 %v2321
    %v2562 = vpop.f32.mrb[0].mxu0
    %v2563 = vadd.f32 %v2490, %v2562
    %v2564 = vpop.f32.mrb[0].mxu0
    %2565 = vdwg.mxu0
    %v2566 = vld [vmem:[#allocation7] sm:$0xff]
    %v2567 = vld [vmem:[#allocation7 + $0x8] sm:$0xff]
    %v2568 = vld [vmem:[#allocation7 + $0x10] sm:$0xff]
    %v2569 = vld [vmem:[#allocation7 + $0x18] sm:$0xff]
    %s2570 = scalar_lea.vmem [#allocation7], 32
    %v2571 = vld [vmem:[%s2570] sm:$0xff]
    %v2572 = vld [vmem:[%s2570 + $0x8] sm:$0xff]
    %v2573 = vld [vmem:[%s2570 + $0x10] sm:$0xff]
    %v2574 = vld [vmem:[%s2570 + $0x18] sm:$0xff]
    %s2575 = scalar_lea.vmem [#allocation7], 64
    %v2576 = vld [vmem:[%s2575] sm:$0xff]
    %v2577 = vld [vmem:[%s2575 + $0x8] sm:$0xff]
    %v2578 = vld [vmem:[%s2575 + $0x10] sm:$0xff]
    %v2579 = vld [vmem:[%s2575 + $0x18] sm:$0xff]
    %v2580 = vlaneseq
    %v2581 = vshrl.u32 %v2580, 7
    %v2582 = vsub.s32 3, %v2581
    %v2583 = vrot.slane %v2308, %v2582
    %2584 = vmatprep.subr.mxu0 0.0
    %2585 = vmatpush1.msra.mxu0 %v2566
    %2586 = vmatprep.subr.mxu0 0.0
    %2587 = vmatpush1.msra.mxu0 %v2567
    %2588 = vmatprep.subr.mxu0 0.0
    %2589 = vmatpush1.msra.mxu0 %v2568
    %2590 = vmatprep.subr.mxu0 0.0
    %2591 = vmatpush1.msra.mxu0 %v2569
    %2592 = vmatprep.subr.mxu0 0.0
    %2593 = vmatpush1.msra.mxu0 0.0
    %2594 = vmatprep.subr.mxu0 0.0
    %2595 = vmatpush1.msra.mxu0 0.0
    %2596 = vmatprep.subr.mxu0 0.0
    %2597 = vmatpush1.msra.mxu0 0.0
    %2598 = vmatprep.subr.mxu0 0.0
    %2599 = vmatpush1.msra.mxu0 0.0
    %2600 = vmatprep.subr.mxu0 0.0
    %2601 = vmatpush1.msra.mxu0 0.0
    %2602 = vmatprep.subr.mxu0 0.0
    %2603 = vmatpush1.msra.mxu0 0.0
    %2604 = vmatprep.subr.mxu0 0.0
    %2605 = vmatpush1.msra.mxu0 0.0
    %2606 = vmatprep.subr.mxu0 0.0
    %2607 = vmatpush1.msra.mxu0 0.0
    %2608 = vmatprep.subr.mxu0 0.0
    %2609 = vmatpush1.msra.mxu0 0.0
    %2610 = vmatprep.subr.mxu0 0.0
    %2611 = vmatpush1.msra.mxu0 0.0
    %2612 = vmatprep.subr.mxu0 0.0
    %2613 = vmatpush1.msra.mxu0 0.0
    %2614 = vmatprep.subr.mxu0 0.0
    %2615 = vmatpush1.msra.mxu0 0.0
    %2616 = vmatprep.subr.mxu0 0.0
    %2617 = vmatpush1.msra.mxu0 0.0
    %2618 = vmatprep.subr.mxu0 0.0
    %2619 = vmatpush1.msra.mxu0 0.0
    %2620 = vmatprep.subr.mxu0 0.0
    %2621 = vmatpush1.msra.mxu0 0.0
    %2622 = vmatprep.subr.mxu0 0.0
    %2623 = vmatpush1.msra.mxu0 0.0
    %2624 = vmatprep.subr.mxu0 0.0
    %2625 = vmatpush1.msra.mxu0 0.0
    %2626 = vmatprep.subr.mxu0 0.0
    %2627 = vmatpush1.msra.mxu0 0.0
    %2628 = vmatprep.subr.mxu0 0.0
    %2629 = vmatpush1.msra.mxu0 0.0
    %2630 = vmatprep.subr.mxu0 0.0
    %2631 = vmatpush1.msra.mxu0 0.0
    %2632 = vmatprep.subr.mxu0 0.0
    %2633 = vmatpush1.msra.mxu0 0.0
    %2634 = vmatprep.subr.mxu0 0.0
    %2635 = vmatpush1.msra.mxu0 0.0
    %2636 = vmatprep.subr.mxu0 0.0
    %2637 = vmatpush1.msra.mxu0 0.0
    %2638 = vmatprep.subr.mxu0 0.0
    %2639 = vmatpush1.msra.mxu0 0.0
    %2640 = vmatprep.subr.mxu0 0.0
    %2641 = vmatpush1.msra.mxu0 0.0
    %2642 = vmatprep.subr.mxu0 0.0
    %2643 = vmatpush1.msra.mxu0 0.0
    %2644 = vmatprep.subr.mxu0 0.0
    %2645 = vmatpush1.msra.mxu0 0.0
    %2646 = vmatprep.subr.mxu0 0.0
    %2647 = vmatpush1.msra.mxu0 0.0
    %2648 = vmatprep.mubr.f32.mxu0 0.0
    %2649 = vmatmul.mubr.f32.gmra.mrb[0].mxu0 %v357
    %v2650 = vpop.f32.mrb[0].mxu0
    %v2651 = vadd.f32 0.0, %v2650
    %v2652 = vpop.f32.mrb[0].mxu0
    %2653 = vdwg.mxu0
    %2654 = vmatprep.subr.mxu0 0.0
    %2655 = vmatpush1.msra.mxu0 %v2571
    %2656 = vmatprep.subr.mxu0 0.0
    %2657 = vmatpush1.msra.mxu0 %v2572
    %2658 = vmatprep.subr.mxu0 0.0
    %2659 = vmatpush1.msra.mxu0 %v2573
    %2660 = vmatprep.subr.mxu0 0.0
    %2661 = vmatpush1.msra.mxu0 %v2574
    %2662 = vmatprep.subr.mxu0 0.0
    %2663 = vmatpush1.msra.mxu0 0.0
    %2664 = vmatprep.subr.mxu0 0.0
    %2665 = vmatpush1.msra.mxu0 0.0
    %2666 = vmatprep.subr.mxu0 0.0
    %2667 = vmatpush1.msra.mxu0 0.0
    %2668 = vmatprep.subr.mxu0 0.0
    %2669 = vmatpush1.msra.mxu0 0.0
    %2670 = vmatprep.subr.mxu0 0.0
    %2671 = vmatpush1.msra.mxu0 0.0
    %2672 = vmatprep.subr.mxu0 0.0
    %2673 = vmatpush1.msra.mxu0 0.0
    %2674 = vmatprep.subr.mxu0 0.0
    %2675 = vmatpush1.msra.mxu0 0.0
    %2676 = vmatprep.subr.mxu0 0.0
    %2677 = vmatpush1.msra.mxu0 0.0
    %2678 = vmatprep.subr.mxu0 0.0
    %2679 = vmatpush1.msra.mxu0 0.0
    %2680 = vmatprep.subr.mxu0 0.0
    %2681 = vmatpush1.msra.mxu0 0.0
    %2682 = vmatprep.subr.mxu0 0.0
    %2683 = vmatpush1.msra.mxu0 0.0
    %2684 = vmatprep.subr.mxu0 0.0
    %2685 = vmatpush1.msra.mxu0 0.0
    %2686 = vmatprep.subr.mxu0 0.0
    %2687 = vmatpush1.msra.mxu0 0.0
    %2688 = vmatprep.subr.mxu0 0.0
    %2689 = vmatpush1.msra.mxu0 0.0
    %2690 = vmatprep.subr.mxu0 0.0
    %2691 = vmatpush1.msra.mxu0 0.0
    %2692 = vmatprep.subr.mxu0 0.0
    %2693 = vmatpush1.msra.mxu0 0.0
    %2694 = vmatprep.subr.mxu0 0.0
    %2695 = vmatpush1.msra.mxu0 0.0
    %2696 = vmatprep.subr.mxu0 0.0
    %2697 = vmatpush1.msra.mxu0 0.0
    %2698 = vmatprep.subr.mxu0 0.0
    %2699 = vmatpush1.msra.mxu0 0.0
    %2700 = vmatprep.subr.mxu0 0.0
    %2701 = vmatpush1.msra.mxu0 0.0
    %2702 = vmatprep.subr.mxu0 0.0
    %2703 = vmatpush1.msra.mxu0 0.0
    %2704 = vmatprep.subr.mxu0 0.0
    %2705 = vmatpush1.msra.mxu0 0.0
    %2706 = vmatprep.subr.mxu0 0.0
    %2707 = vmatpush1.msra.mxu0 0.0
    %2708 = vmatprep.subr.mxu0 0.0
    %2709 = vmatpush1.msra.mxu0 0.0
    %2710 = vmatprep.subr.mxu0 0.0
    %2711 = vmatpush1.msra.mxu0 0.0
    %2712 = vmatprep.subr.mxu0 0.0
    %2713 = vmatpush1.msra.mxu0 0.0
    %2714 = vmatprep.subr.mxu0 0.0
    %2715 = vmatpush1.msra.mxu0 0.0
    %2716 = vmatprep.subr.mxu0 0.0
    %2717 = vmatpush1.msra.mxu0 0.0
    %2718 = vmatprep.mubr.f32.mxu0 0.0
    %2719 = vmatmul.mubr.f32.gmra.mrb[0].mxu0 %v357
    %v2720 = vpop.f32.mrb[0].mxu0
    %v2721 = vadd.f32 0.0, %v2720
    %v2722 = vpop.f32.mrb[0].mxu0
    %2723 = vdwg.mxu0
    %v2724 = vadd.f32 %v2390, %v2651
    %v2725 = vxor.u32 %v2724, 2147483648
    %v2726 = vmul.f32 %v2725, 1.442695
    %v2727 = vpow.pop %v2726
    %v2728 = vadd.f32 %v2727, 1.0
    %v2729 = vrcp.pop %v2728
    %v2730 = vmul.f32 1.0, %v2729
    %v2731 = vadd.f32 %v2474, %v2721
    %v2732 = vxor.u32 %v2731, 2147483648
    %v2733 = vmul.f32 %v2732, 1.442695
    %v2734 = vpow.pop %v2733
    %v2735 = vadd.f32 %v2734, 1.0
    %v2736 = vrcp.pop %v2735
    %v2737 = vmul.f32 1.0, %v2736
    %2738 = vmatprep.subr.mxu0 0.0
    %2739 = vmatpush1.msra.mxu0 %v2576
    %2740 = vmatprep.subr.mxu0 0.0
    %2741 = vmatpush1.msra.mxu0 %v2577
    %2742 = vmatprep.subr.mxu0 0.0
    %2743 = vmatpush1.msra.mxu0 %v2578
    %2744 = vmatprep.subr.mxu0 0.0
    %2745 = vmatpush1.msra.mxu0 %v2579
    %2746 = vmatprep.subr.mxu0 0.0
    %2747 = vmatpush1.msra.mxu0 0.0
    %2748 = vmatprep.subr.mxu0 0.0
    %2749 = vmatpush1.msra.mxu0 0.0
    %2750 = vmatprep.subr.mxu0 0.0
    %2751 = vmatpush1.msra.mxu0 0.0
    %2752 = vmatprep.subr.mxu0 0.0
    %2753 = vmatpush1.msra.mxu0 0.0
    %2754 = vmatprep.subr.mxu0 0.0
    %2755 = vmatpush1.msra.mxu0 0.0
    %2756 = vmatprep.subr.mxu0 0.0
    %2757 = vmatpush1.msra.mxu0 0.0
    %2758 = vmatprep.subr.mxu0 0.0
    %2759 = vmatpush1.msra.mxu0 0.0
    %2760 = vmatprep.subr.mxu0 0.0
    %2761 = vmatpush1.msra.mxu0 0.0
    %2762 = vmatprep.subr.mxu0 0.0
    %2763 = vmatpush1.msra.mxu0 0.0
    %2764 = vmatprep.subr.mxu0 0.0
    %2765 = vmatpush1.msra.mxu0 0.0
    %2766 = vmatprep.subr.mxu0 0.0
    %2767 = vmatpush1.msra.mxu0 0.0
    %2768 = vmatprep.subr.mxu0 0.0
    %2769 = vmatpush1.msra.mxu0 0.0
    %2770 = vmatprep.subr.mxu0 0.0
    %2771 = vmatpush1.msra.mxu0 0.0
    %2772 = vmatprep.subr.mxu0 0.0
    %2773 = vmatpush1.msra.mxu0 0.0
    %2774 = vmatprep.subr.mxu0 0.0
    %2775 = vmatpush1.msra.mxu0 0.0
    %2776 = vmatprep.subr.mxu0 0.0
    %2777 = vmatpush1.msra.mxu0 0.0
    %2778 = vmatprep.subr.mxu0 0.0
    %2779 = vmatpush1.msra.mxu0 0.0
    %2780 = vmatprep.subr.mxu0 0.0
    %2781 = vmatpush1.msra.mxu0 0.0
    %2782 = vmatprep.subr.mxu0 0.0
    %2783 = vmatpush1.msra.mxu0 0.0
    %2784 = vmatprep.subr.mxu0 0.0
    %2785 = vmatpush1.msra.mxu0 0.0
    %2786 = vmatprep.subr.mxu0 0.0
    %2787 = vmatpush1.msra.mxu0 0.0
    %2788 = vmatprep.subr.mxu0 0.0
    %2789 = vmatpush1.msra.mxu0 0.0
    %2790 = vmatprep.subr.mxu0 0.0
    %2791 = vmatpush1.msra.mxu0 0.0
    %2792 = vmatprep.subr.mxu0 0.0
    %2793 = vmatpush1.msra.mxu0 0.0
    %2794 = vmatprep.subr.mxu0 0.0
    %2795 = vmatpush1.msra.mxu0 0.0
    %2796 = vmatprep.subr.mxu0 0.0
    %2797 = vmatpush1.msra.mxu0 0.0
    %2798 = vmatprep.subr.mxu0 0.0
    %2799 = vmatpush1.msra.mxu0 0.0
    %2800 = vmatprep.subr.mxu0 0.0
    %2801 = vmatpush1.msra.mxu0 0.0
    %2802 = vmatprep.mubr.f32.mxu0 0.0
    %2803 = vmatmul.mubr.f32.gmra.mrb[0].mxu0 %v357
    %v2804 = vpop.f32.mrb[0].mxu0
    %v2805 = vadd.f32 %v2583, %v2804
    %v2806 = vpop.f32.mrb[0].mxu0
    %2807 = vdwg.mxu0
    %v2808 = vmul.f32 %v2730, %v2805
    %v2809 = vadd.f32 %v2558, %v2808
    %v2810 = vtanh.pop %v2809
    %v2811 = vsub.f32 1.0, %v2737
    %v2812 = vmul.f32 %v2811, %v2810
    %v2813 = vmul.f32 %v2737, 0.0
    %v2814 = vadd.f32 %v2812, %v2813
    %v2816 = vsel %vm355, %v2814, 0
    %2818 = vmatprep.subr.mxu0 0.0
    %2819 = vmatpush1.msra.mxu0 %v2566
    %2820 = vmatprep.subr.mxu0 0.0
    %2821 = vmatpush1.msra.mxu0 %v2567
    %2822 = vmatprep.subr.mxu0 0.0
    %2823 = vmatpush1.msra.mxu0 %v2568
    %2824 = vmatprep.subr.mxu0 0.0
    %2825 = vmatpush1.msra.mxu0 %v2569
    %2826 = vmatprep.subr.mxu0 0.0
    %2827 = vmatpush1.msra.mxu0 0.0
    %2828 = vmatprep.subr.mxu0 0.0
    %2829 = vmatpush1.msra.mxu0 0.0
    %2830 = vmatprep.subr.mxu0 0.0
    %2831 = vmatpush1.msra.mxu0 0.0
    %2832 = vmatprep.subr.mxu0 0.0
    %2833 = vmatpush1.msra.mxu0 0.0
    %2834 = vmatprep.subr.mxu0 0.0
    %2835 = vmatpush1.msra.mxu0 0.0
    %2836 = vmatprep.subr.mxu0 0.0
    %2837 = vmatpush1.msra.mxu0 0.0
    %2838 = vmatprep.subr.mxu0 0.0
    %2839 = vmatpush1.msra.mxu0 0.0
    %2840 = vmatprep.subr.mxu0 0.0
    %2841 = vmatpush1.msra.mxu0 0.0
    %2842 = vmatprep.subr.mxu0 0.0
    %2843 = vmatpush1.msra.mxu0 0.0
    %2844 = vmatprep.subr.mxu0 0.0
    %2845 = vmatpush1.msra.mxu0 0.0
    %2846 = vmatprep.subr.mxu0 0.0
    %2847 = vmatpush1.msra.mxu0 0.0
    %2848 = vmatprep.subr.mxu0 0.0
    %2849 = vmatpush1.msra.mxu0 0.0
    %2850 = vmatprep.subr.mxu0 0.0
    %2851 = vmatpush1.msra.mxu0 0.0
    %2852 = vmatprep.subr.mxu0 0.0
    %2853 = vmatpush1.msra.mxu0 0.0
    %2854 = vmatprep.subr.mxu0 0.0
    %2855 = vmatpush1.msra.mxu0 0.0
    %2856 = vmatprep.subr.mxu0 0.0
    %2857 = vmatpush1.msra.mxu0 0.0
    %2858 = vmatprep.subr.mxu0 0.0
    %2859 = vmatpush1.msra.mxu0 0.0
    %2860 = vmatprep.subr.mxu0 0.0
    %2861 = vmatpush1.msra.mxu0 0.0
    %2862 = vmatprep.subr.mxu0 0.0
    %2863 = vmatpush1.msra.mxu0 0.0
    %2864 = vmatprep.subr.mxu0 0.0
    %2865 = vmatpush1.msra.mxu0 0.0
    %2866 = vmatprep.subr.mxu0 0.0
    %2867 = vmatpush1.msra.mxu0 0.0
    %2868 = vmatprep.subr.mxu0 0.0
    %2869 = vmatpush1.msra.mxu0 0.0
    %2870 = vmatprep.subr.mxu0 0.0
    %2871 = vmatpush1.msra.mxu0 0.0
    %2872 = vmatprep.subr.mxu0 0.0
    %2873 = vmatpush1.msra.mxu0 0.0
    %2874 = vmatprep.subr.mxu0 0.0
    %2875 = vmatpush1.msra.mxu0 0.0
    %2876 = vmatprep.subr.mxu0 0.0
    %2877 = vmatpush1.msra.mxu0 0.0
    %2878 = vmatprep.subr.mxu0 0.0
    %2879 = vmatpush1.msra.mxu0 0.0
    %2880 = vmatprep.subr.mxu0 0.0
    %2881 = vmatpush1.msra.mxu0 0.0
    %2882 = vmatprep.mubr.f32.mxu0 0.0
    %2883 = vmatmul.mubr.f32.gmra.mrb[0].mxu0 %v2816
    %v2884 = vpop.f32.mrb[0].mxu0
    %v2885 = vadd.f32 0.0, %v2884
    %v2886 = vpop.f32.mrb[0].mxu0
    %2887 = vdwg.mxu0
    %2888 = vmatprep.subr.mxu0 0.0
    %2889 = vmatpush1.msra.mxu0 %v2571
    %2890 = vmatprep.subr.mxu0 0.0
    %2891 = vmatpush1.msra.mxu0 %v2572
    %2892 = vmatprep.subr.mxu0 0.0
    %2893 = vmatpush1.msra.mxu0 %v2573
    %2894 = vmatprep.subr.mxu0 0.0
    %2895 = vmatpush1.msra.mxu0 %v2574
    %2896 = vmatprep.subr.mxu0 0.0
    %2897 = vmatpush1.msra.mxu0 0.0
    %2898 = vmatprep.subr.mxu0 0.0
    %2899 = vmatpush1.msra.mxu0 0.0
    %2900 = vmatprep.subr.mxu0 0.0
    %2901 = vmatpush1.msra.mxu0 0.0
    %2902 = vmatprep.subr.mxu0 0.0
    %2903 = vmatpush1.msra.mxu0 0.0
    %2904 = vmatprep.subr.mxu0 0.0
    %2905 = vmatpush1.msra.mxu0 0.0
    %2906 = vmatprep.subr.mxu0 0.0
    %2907 = vmatpush1.msra.mxu0 0.0
    %2908 = vmatprep.subr.mxu0 0.0
    %2909 = vmatpush1.msra.mxu0 0.0
    %2910 = vmatprep.subr.mxu0 0.0
    %2911 = vmatpush1.msra.mxu0 0.0
    %2912 = vmatprep.subr.mxu0 0.0
    %2913 = vmatpush1.msra.mxu0 0.0
    %2914 = vmatprep.subr.mxu0 0.0
    %2915 = vmatpush1.msra.mxu0 0.0
    %2916 = vmatprep.subr.mxu0 0.0
    %2917 = vmatpush1.msra.mxu0 0.0
    %2918 = vmatprep.subr.mxu0 0.0
    %2919 = vmatpush1.msra.mxu0 0.0
    %2920 = vmatprep.subr.mxu0 0.0
    %2921 = vmatpush1.msra.mxu0 0.0
    %2922 = vmatprep.subr.mxu0 0.0
    %2923 = vmatpush1.msra.mxu0 0.0
    %2924 = vmatprep.subr.mxu0 0.0
    %2925 = vmatpush1.msra.mxu0 0.0
    %2926 = vmatprep.subr.mxu0 0.0
    %2927 = vmatpush1.msra.mxu0 0.0
    %2928 = vmatprep.subr.mxu0 0.0
    %2929 = vmatpush1.msra.mxu0 0.0
    %2930 = vmatprep.subr.mxu0 0.0
    %2931 = vmatpush1.msra.mxu0 0.0
    %2932 = vmatprep.subr.mxu0 0.0
    %2933 = vmatpush1.msra.mxu0 0.0
    %2934 = vmatprep.subr.mxu0 0.0
    %2935 = vmatpush1.msra.mxu0 0.0
    %2936 = vmatprep.subr.mxu0 0.0
    %2937 = vmatpush1.msra.mxu0 0.0
    %2938 = vmatprep.subr.mxu0 0.0
    %2939 = vmatpush1.msra.mxu0 0.0
    %2940 = vmatprep.subr.mxu0 0.0
    %2941 = vmatpush1.msra.mxu0 0.0
    %2942 = vmatprep.subr.mxu0 0.0
    %2943 = vmatpush1.msra.mxu0 0.0
    %2944 = vmatprep.subr.mxu0 0.0
    %2945 = vmatpush1.msra.mxu0 0.0
    %2946 = vmatprep.subr.mxu0 0.0
    %2947 = vmatpush1.msra.mxu0 0.0
    %2948 = vmatprep.subr.mxu0 0.0
    %2949 = vmatpush1.msra.mxu0 0.0
    %2950 = vmatprep.subr.mxu0 0.0
    %2951 = vmatpush1.msra.mxu0 0.0
    %2952 = vmatprep.mubr.f32.mxu0 0.0
    %2953 = vmatmul.mubr.f32.gmra.mrb[0].mxu0 %v2816
    %v2954 = vpop.f32.mrb[0].mxu0
    %v2955 = vadd.f32 0.0, %v2954
    %v2956 = vpop.f32.mrb[0].mxu0
    %2957 = vdwg.mxu0
    %v2959 = vrot.slane %v2885, 6
    %v2961 = vadd.f32 %v2390, %v2959
    %v2962 = vxor.u32 %v2961, 2147483648
    %v2963 = vmul.f32 %v2962, 1.442695
    %v2964 = vpow.pop %v2963
    %v2965 = vadd.f32 %v2964, 1.0
    %v2966 = vrcp.pop %v2965
    %v2967 = vmul.f32 1.0, %v2966
    %v2969 = vrot.slane %v2955, 6
    %v2971 = vadd.f32 %v2474, %v2969
    %v2972 = vxor.u32 %v2971, 2147483648
    %v2973 = vmul.f32 %v2972, 1.442695
    %v2974 = vpow.pop %v2973
    %v2975 = vadd.f32 %v2974, 1.0
    %v2976 = vrcp.pop %v2975
    %v2977 = vmul.f32 1.0, %v2976
    %2978 = vmatprep.subr.mxu0 0.0
    %2979 = vmatpush1.msra.mxu0 %v2576
    %2980 = vmatprep.subr.mxu0 0.0
    %2981 = vmatpush1.msra.mxu0 %v2577
    %2982 = vmatprep.subr.mxu0 0.0
    %2983 = vmatpush1.msra.mxu0 %v2578
    %2984 = vmatprep.subr.mxu0 0.0
    %2985 = vmatpush1.msra.mxu0 %v2579
    %2986 = vmatprep.subr.mxu0 0.0
    %2987 = vmatpush1.msra.mxu0 0.0
    %2988 = vmatprep.subr.mxu0 0.0
    %2989 = vmatpush1.msra.mxu0 0.0
    %2990 = vmatprep.subr.mxu0 0.0
    %2991 = vmatpush1.msra.mxu0 0.0
    %2992 = vmatprep.subr.mxu0 0.0
    %2993 = vmatpush1.msra.mxu0 0.0
    %2994 = vmatprep.subr.mxu0 0.0
    %2995 = vmatpush1.msra.mxu0 0.0
    %2996 = vmatprep.subr.mxu0 0.0
    %2997 = vmatpush1.msra.mxu0 0.0
    %2998 = vmatprep.subr.mxu0 0.0
    %2999 = vmatpush1.msra.mxu0 0.0
    %3000 = vmatprep.subr.mxu0 0.0
    %3001 = vmatpush1.msra.mxu0 0.0
    %3002 = vmatprep.subr.mxu0 0.0
    %3003 = vmatpush1.msra.mxu0 0.0
    %3004 = vmatprep.subr.mxu0 0.0
    %3005 = vmatpush1.msra.mxu0 0.0
    %3006 = vmatprep.subr.mxu0 0.0
    %3007 = vmatpush1.msra.mxu0 0.0
    %3008 = vmatprep.subr.mxu0 0.0
    %3009 = vmatpush1.msra.mxu0 0.0
    %3010 = vmatprep.subr.mxu0 0.0
    %3011 = vmatpush1.msra.mxu0 0.0
    %3012 = vmatprep.subr.mxu0 0.0
    %3013 = vmatpush1.msra.mxu0 0.0
    %3014 = vmatprep.subr.mxu0 0.0
    %3015 = vmatpush1.msra.mxu0 0.0
    %3016 = vmatprep.subr.mxu0 0.0
    %3017 = vmatpush1.msra.mxu0 0.0
    %3018 = vmatprep.subr.mxu0 0.0
    %3019 = vmatpush1.msra.mxu0 0.0
    %3020 = vmatprep.subr.mxu0 0.0
    %3021 = vmatpush1.msra.mxu0 0.0
    %3022 = vmatprep.subr.mxu0 0.0
    %3023 = vmatpush1.msra.mxu0 0.0
    %3024 = vmatprep.subr.mxu0 0.0
    %3025 = vmatpush1.msra.mxu0 0.0
    %3026 = vmatprep.subr.mxu0 0.0
    %3027 = vmatpush1.msra.mxu0 0.0
    %3028 = vmatprep.subr.mxu0 0.0
    %3029 = vmatpush1.msra.mxu0 0.0
    %3030 = vmatprep.subr.mxu0 0.0
    %3031 = vmatpush1.msra.mxu0 0.0
    %3032 = vmatprep.subr.mxu0 0.0
    %3033 = vmatpush1.msra.mxu0 0.0
    %3034 = vmatprep.subr.mxu0 0.0
    %3035 = vmatpush1.msra.mxu0 0.0
    %3036 = vmatprep.subr.mxu0 0.0
    %3037 = vmatpush1.msra.mxu0 0.0
    %3038 = vmatprep.subr.mxu0 0.0
    %3039 = vmatpush1.msra.mxu0 0.0
    %3040 = vmatprep.subr.mxu0 0.0
    %3041 = vmatpush1.msra.mxu0 0.0
    %3042 = vmatprep.mubr.f32.mxu0 0.0
    %3043 = vmatmul.mubr.f32.gmra.mrb[0].mxu0 %v2816
    %v3044 = vpop.f32.mrb[0].mxu0
    %v3045 = vadd.f32 %v2583, %v3044
    %v3046 = vpop.f32.mrb[0].mxu0
    %3047 = vdwg.mxu0
    %v3049 = vrot.slane %v3045, 6
    %v3051 = vmul.f32 %v2967, %v3049
    %v3052 = vadd.f32 %v2558, %v3051
    %v3053 = vtanh.pop %v3052
    %v3054 = vsub.f32 1.0, %v2977
    %v3055 = vmul.f32 %v3054, %v3053
    %v3056 = vrot.slane %v2814, 6
    %v3058 = vmul.f32 %v2977, %v3056
    %v3059 = vadd.f32 %v3055, %v3058
    %v3061 = vrot.slane %v3059, 2
    %v3062 = vsel %vm355, %v3061, 0
    %3064 = vmatprep.subr.mxu0 0.0
    %3065 = vmatpush1.msra.mxu0 %v2566
    %3066 = vmatprep.subr.mxu0 0.0
    %3067 = vmatpush1.msra.mxu0 %v2567
    %3068 = vmatprep.subr.mxu0 0.0
    %3069 = vmatpush1.msra.mxu0 %v2568
    %3070 = vmatprep.subr.mxu0 0.0
    %3071 = vmatpush1.msra.mxu0 %v2569
    %3072 = vmatprep.subr.mxu0 0.0
    %3073 = vmatpush1.msra.mxu0 0.0
    %3074 = vmatprep.subr.mxu0 0.0
    %3075 = vmatpush1.msra.mxu0 0.0
    %3076 = vmatprep.subr.mxu0 0.0
    %3077 = vmatpush1.msra.mxu0 0.0
    %3078 = vmatprep.subr.mxu0 0.0
    %3079 = vmatpush1.msra.mxu0 0.0
    %3080 = vmatprep.subr.mxu0 0.0
    %3081 = vmatpush1.msra.mxu0 0.0
    %3082 = vmatprep.subr.mxu0 0.0
    %3083 = vmatpush1.msra.mxu0 0.0
    %3084 = vmatprep.subr.mxu0 0.0
    %3085 = vmatpush1.msra.mxu0 0.0
    %3086 = vmatprep.subr.mxu0 0.0
    %3087 = vmatpush1.msra.mxu0 0.0
    %3088 = vmatprep.subr.mxu0 0.0
    %3089 = vmatpush1.msra.mxu0 0.0
    %3090 = vmatprep.subr.mxu0 0.0
    %3091 = vmatpush1.msra.mxu0 0.0
    %3092 = vmatprep.subr.mxu0 0.0
    %3093 = vmatpush1.msra.mxu0 0.0
    %3094 = vmatprep.subr.mxu0 0.0
    %3095 = vmatpush1.msra.mxu0 0.0
    %3096 = vmatprep.subr.mxu0 0.0
    %3097 = vmatpush1.msra.mxu0 0.0
    %3098 = vmatprep.subr.mxu0 0.0
    %3099 = vmatpush1.msra.mxu0 0.0
    %3100 = vmatprep.subr.mxu0 0.0
    %3101 = vmatpush1.msra.mxu0 0.0
    %3102 = vmatprep.subr.mxu0 0.0
    %3103 = vmatpush1.msra.mxu0 0.0
    %3104 = vmatprep.subr.mxu0 0.0
    %3105 = vmatpush1.msra.mxu0 0.0
    %3106 = vmatprep.subr.mxu0 0.0
    %3107 = vmatpush1.msra.mxu0 0.0
    %3108 = vmatprep.subr.mxu0 0.0
    %3109 = vmatpush1.msra.mxu0 0.0
    %3110 = vmatprep.subr.mxu0 0.0
    %3111 = vmatpush1.msra.mxu0 0.0
    %3112 = vmatprep.subr.mxu0 0.0
    %3113 = vmatpush1.msra.mxu0 0.0
    %3114 = vmatprep.subr.mxu0 0.0
    %3115 = vmatpush1.msra.mxu0 0.0
    %3116 = vmatprep.subr.mxu0 0.0
    %3117 = vmatpush1.msra.mxu0 0.0
    %3118 = vmatprep.subr.mxu0 0.0
    %3119 = vmatpush1.msra.mxu0 0.0
    %3120 = vmatprep.subr.mxu0 0.0
    %3121 = vmatpush1.msra.mxu0 0.0
    %3122 = vmatprep.subr.mxu0 0.0
    %3123 = vmatpush1.msra.mxu0 0.0
    %3124 = vmatprep.subr.mxu0 0.0
    %3125 = vmatpush1.msra.mxu0 0.0
    %3126 = vmatprep.subr.mxu0 0.0
    %3127 = vmatpush1.msra.mxu0 0.0
    %3128 = vmatprep.mubr.f32.mxu0 0.0
    %3129 = vmatmul.mubr.f32.gmra.mrb[0].mxu0 %v3062
    %v3130 = vpop.f32.mrb[0].mxu0
    %v3131 = vadd.f32 0.0, %v3130
    %v3132 = vpop.f32.mrb[0].mxu0
    %3133 = vdwg.mxu0
    %3134 = vmatprep.subr.mxu0 0.0
    %3135 = vmatpush1.msra.mxu0 %v2571
    %3136 = vmatprep.subr.mxu0 0.0
    %3137 = vmatpush1.msra.mxu0 %v2572
    %3138 = vmatprep.subr.mxu0 0.0
    %3139 = vmatpush1.msra.mxu0 %v2573
    %3140 = vmatprep.subr.mxu0 0.0
    %3141 = vmatpush1.msra.mxu0 %v2574
    %3142 = vmatprep.subr.mxu0 0.0
    %3143 = vmatpush1.msra.mxu0 0.0
    %3144 = vmatprep.subr.mxu0 0.0
    %3145 = vmatpush1.msra.mxu0 0.0
    %3146 = vmatprep.subr.mxu0 0.0
    %3147 = vmatpush1.msra.mxu0 0.0
    %3148 = vmatprep.subr.mxu0 0.0
    %3149 = vmatpush1.msra.mxu0 0.0
    %3150 = vmatprep.subr.mxu0 0.0
    %3151 = vmatpush1.msra.mxu0 0.0
    %3152 = vmatprep.subr.mxu0 0.0
    %3153 = vmatpush1.msra.mxu0 0.0
    %3154 = vmatprep.subr.mxu0 0.0
    %3155 = vmatpush1.msra.mxu0 0.0
    %3156 = vmatprep.subr.mxu0 0.0
    %3157 = vmatpush1.msra.mxu0 0.0
    %3158 = vmatprep.subr.mxu0 0.0
    %3159 = vmatpush1.msra.mxu0 0.0
    %3160 = vmatprep.subr.mxu0 0.0
    %3161 = vmatpush1.msra.mxu0 0.0
    %3162 = vmatprep.subr.mxu0 0.0
    %3163 = vmatpush1.msra.mxu0 0.0
    %3164 = vmatprep.subr.mxu0 0.0
    %3165 = vmatpush1.msra.mxu0 0.0
    %3166 = vmatprep.subr.mxu0 0.0
    %3167 = vmatpush1.msra.mxu0 0.0
    %3168 = vmatprep.subr.mxu0 0.0
    %3169 = vmatpush1.msra.mxu0 0.0
    %3170 = vmatprep.subr.mxu0 0.0
    %3171 = vmatpush1.msra.mxu0 0.0
    %3172 = vmatprep.subr.mxu0 0.0
    %3173 = vmatpush1.msra.mxu0 0.0
    %3174 = vmatprep.subr.mxu0 0.0
    %3175 = vmatpush1.msra.mxu0 0.0
    %3176 = vmatprep.subr.mxu0 0.0
    %3177 = vmatpush1.msra.mxu0 0.0
    %3178 = vmatprep.subr.mxu0 0.0
    %3179 = vmatpush1.msra.mxu0 0.0
    %3180 = vmatprep.subr.mxu0 0.0
    %3181 = vmatpush1.msra.mxu0 0.0
    %3182 = vmatprep.subr.mxu0 0.0
    %3183 = vmatpush1.msra.mxu0 0.0
    %3184 = vmatprep.subr.mxu0 0.0
    %3185 = vmatpush1.msra.mxu0 0.0
    %3186 = vmatprep.subr.mxu0 0.0
    %3187 = vmatpush1.msra.mxu0 0.0
    %3188 = vmatprep.subr.mxu0 0.0
    %3189 = vmatpush1.msra.mxu0 0.0
    %3190 = vmatprep.subr.mxu0 0.0
    %3191 = vmatpush1.msra.mxu0 0.0
    %3192 = vmatprep.subr.mxu0 0.0
    %3193 = vmatpush1.msra.mxu0 0.0
    %3194 = vmatprep.subr.mxu0 0.0
    %3195 = vmatpush1.msra.mxu0 0.0
    %3196 = vmatprep.subr.mxu0 0.0
    %3197 = vmatpush1.msra.mxu0 0.0
    %3198 = vmatprep.mubr.f32.mxu0 0.0
    %3199 = vmatmul.mubr.f32.gmra.mrb[0].mxu0 %v3062
    %v3200 = vpop.f32.mrb[0].mxu0
    %v3201 = vadd.f32 0.0, %v3200
    %v3202 = vpop.f32.mrb[0].mxu0
    %3203 = vdwg.mxu0
    %v3205 = vrot.slane %v3131, 4
    %v3207 = vadd.f32 %v2390, %v3205
    %v3208 = vxor.u32 %v3207, 2147483648
    %v3209 = vmul.f32 %v3208, 1.442695
    %v3210 = vpow.pop %v3209
    %v3211 = vadd.f32 %v3210, 1.0
    %v3212 = vrcp.pop %v3211
    %v3213 = vmul.f32 1.0, %v3212
    %v3215 = vrot.slane %v3201, 4
    %v3217 = vadd.f32 %v2474, %v3215
    %v3218 = vxor.u32 %v3217, 2147483648
    %v3219 = vmul.f32 %v3218, 1.442695
    %v3220 = vpow.pop %v3219
    %v3221 = vadd.f32 %v3220, 1.0
    %v3222 = vrcp.pop %v3221
    %v3223 = vmul.f32 1.0, %v3222
    %3224 = vmatprep.subr.mxu0 0.0
    %3225 = vmatpush1.msra.mxu0 %v2576
    %3226 = vmatprep.subr.mxu0 0.0
    %3227 = vmatpush1.msra.mxu0 %v2577
    %3228 = vmatprep.subr.mxu0 0.0
    %3229 = vmatpush1.msra.mxu0 %v2578
    %3230 = vmatprep.subr.mxu0 0.0
    %3231 = vmatpush1.msra.mxu0 %v2579
    %3232 = vmatprep.subr.mxu0 0.0
    %3233 = vmatpush1.msra.mxu0 0.0
    %3234 = vmatprep.subr.mxu0 0.0
    %3235 = vmatpush1.msra.mxu0 0.0
    %3236 = vmatprep.subr.mxu0 0.0
    %3237 = vmatpush1.msra.mxu0 0.0
    %3238 = vmatprep.subr.mxu0 0.0
    %3239 = vmatpush1.msra.mxu0 0.0
    %3240 = vmatprep.subr.mxu0 0.0
    %3241 = vmatpush1.msra.mxu0 0.0
    %3242 = vmatprep.subr.mxu0 0.0
    %3243 = vmatpush1.msra.mxu0 0.0
    %3244 = vmatprep.subr.mxu0 0.0
    %3245 = vmatpush1.msra.mxu0 0.0
    %3246 = vmatprep.subr.mxu0 0.0
    %3247 = vmatpush1.msra.mxu0 0.0
    %3248 = vmatprep.subr.mxu0 0.0
    %3249 = vmatpush1.msra.mxu0 0.0
    %3250 = vmatprep.subr.mxu0 0.0
    %3251 = vmatpush1.msra.mxu0 0.0
    %3252 = vmatprep.subr.mxu0 0.0
    %3253 = vmatpush1.msra.mxu0 0.0
    %3254 = vmatprep.subr.mxu0 0.0
    %3255 = vmatpush1.msra.mxu0 0.0
    %3256 = vmatprep.subr.mxu0 0.0
    %3257 = vmatpush1.msra.mxu0 0.0
    %3258 = vmatprep.subr.mxu0 0.0
    %3259 = vmatpush1.msra.mxu0 0.0
    %3260 = vmatprep.subr.mxu0 0.0
    %3261 = vmatpush1.msra.mxu0 0.0
    %3262 = vmatprep.subr.mxu0 0.0
    %3263 = vmatpush1.msra.mxu0 0.0
    %3264 = vmatprep.subr.mxu0 0.0
    %3265 = vmatpush1.msra.mxu0 0.0
    %3266 = vmatprep.subr.mxu0 0.0
    %3267 = vmatpush1.msra.mxu0 0.0
    %3268 = vmatprep.subr.mxu0 0.0
    %3269 = vmatpush1.msra.mxu0 0.0
    %3270 = vmatprep.subr.mxu0 0.0
    %3271 = vmatpush1.msra.mxu0 0.0
    %3272 = vmatprep.subr.mxu0 0.0
    %3273 = vmatpush1.msra.mxu0 0.0
    %3274 = vmatprep.subr.mxu0 0.0
    %3275 = vmatpush1.msra.mxu0 0.0
    %3276 = vmatprep.subr.mxu0 0.0
    %3277 = vmatpush1.msra.mxu0 0.0
    %3278 = vmatprep.subr.mxu0 0.0
    %3279 = vmatpush1.msra.mxu0 0.0
    %3280 = vmatprep.subr.mxu0 0.0
    %3281 = vmatpush1.msra.mxu0 0.0
    %3282 = vmatprep.subr.mxu0 0.0
    %3283 = vmatpush1.msra.mxu0 0.0
    %3284 = vmatprep.subr.mxu0 0.0
    %3285 = vmatpush1.msra.mxu0 0.0
    %3286 = vmatprep.subr.mxu0 0.0
    %3287 = vmatpush1.msra.mxu0 0.0
    %3288 = vmatprep.mubr.f32.mxu0 0.0
    %3289 = vmatmul.mubr.f32.gmra.mrb[0].mxu0 %v3062
    %v3290 = vpop.f32.mrb[0].mxu0
    %v3291 = vadd.f32 %v2583, %v3290
    %v3292 = vpop.f32.mrb[0].mxu0
    %3293 = vdwg.mxu0
    %v3295 = vrot.slane %v3291, 4
    %v3297 = vmul.f32 %v3213, %v3295
    %v3298 = vadd.f32 %v2558, %v3297
    %v3299 = vtanh.pop %v3298
    %v3300 = vsub.f32 1.0, %v3223
    %v3301 = vmul.f32 %v3300, %v3299
    %v3302 = vrot.slane %v3059, 6
    %v3304 = vmul.f32 %v3223, %v3302
    %v3305 = vadd.f32 %v3301, %v3304
    %v3307 = vrot.slane %v3305, 4
    %v3308 = vsel %vm355, %v3307, 0
    %3310 = vmatprep.subr.mxu0 0.0
    %3311 = vmatpush1.msra.mxu0 %v2566
    %3312 = vmatprep.subr.mxu0 0.0
    %3313 = vmatpush1.msra.mxu0 %v2567
    %3314 = vmatprep.subr.mxu0 0.0
    %3315 = vmatpush1.msra.mxu0 %v2568
    %3316 = vmatprep.subr.mxu0 0.0
    %3317 = vmatpush1.msra.mxu0 %v2569
    %3318 = vmatprep.subr.mxu0 0.0
    %3319 = vmatpush1.msra.mxu0 0.0
    %3320 = vmatprep.subr.mxu0 0.0
    %3321 = vmatpush1.msra.mxu0 0.0
    %3322 = vmatprep.subr.mxu0 0.0
    %3323 = vmatpush1.msra.mxu0 0.0
    %3324 = vmatprep.subr.mxu0 0.0
    %3325 = vmatpush1.msra.mxu0 0.0
    %3326 = vmatprep.subr.mxu0 0.0
    %3327 = vmatpush1.msra.mxu0 0.0
    %3328 = vmatprep.subr.mxu0 0.0
    %3329 = vmatpush1.msra.mxu0 0.0
    %3330 = vmatprep.subr.mxu0 0.0
    %3331 = vmatpush1.msra.mxu0 0.0
    %3332 = vmatprep.subr.mxu0 0.0
    %3333 = vmatpush1.msra.mxu0 0.0
    %3334 = vmatprep.subr.mxu0 0.0
    %3335 = vmatpush1.msra.mxu0 0.0
    %3336 = vmatprep.subr.mxu0 0.0
    %3337 = vmatpush1.msra.mxu0 0.0
    %3338 = vmatprep.subr.mxu0 0.0
    %3339 = vmatpush1.msra.mxu0 0.0
    %3340 = vmatprep.subr.mxu0 0.0
    %3341 = vmatpush1.msra.mxu0 0.0
    %3342 = vmatprep.subr.mxu0 0.0
    %3343 = vmatpush1.msra.mxu0 0.0
    %3344 = vmatprep.subr.mxu0 0.0
    %3345 = vmatpush1.msra.mxu0 0.0
    %3346 = vmatprep.subr.mxu0 0.0
    %3347 = vmatpush1.msra.mxu0 0.0
    %3348 = vmatprep.subr.mxu0 0.0
    %3349 = vmatpush1.msra.mxu0 0.0
    %3350 = vmatprep.subr.mxu0 0.0
    %3351 = vmatpush1.msra.mxu0 0.0
    %3352 = vmatprep.subr.mxu0 0.0
    %3353 = vmatpush1.msra.mxu0 0.0
    %3354 = vmatprep.subr.mxu0 0.0
    %3355 = vmatpush1.msra.mxu0 0.0
    %3356 = vmatprep.subr.mxu0 0.0
    %3357 = vmatpush1.msra.mxu0 0.0
    %3358 = vmatprep.subr.mxu0 0.0
    %3359 = vmatpush1.msra.mxu0 0.0
    %3360 = vmatprep.subr.mxu0 0.0
    %3361 = vmatpush1.msra.mxu0 0.0
    %3362 = vmatprep.subr.mxu0 0.0
    %3363 = vmatpush1.msra.mxu0 0.0
    %3364 = vmatprep.subr.mxu0 0.0
    %3365 = vmatpush1.msra.mxu0 0.0
    %3366 = vmatprep.subr.mxu0 0.0
    %3367 = vmatpush1.msra.mxu0 0.0
    %3368 = vmatprep.subr.mxu0 0.0
    %3369 = vmatpush1.msra.mxu0 0.0
    %3370 = vmatprep.subr.mxu0 0.0
    %3371 = vmatpush1.msra.mxu0 0.0
    %3372 = vmatprep.subr.mxu0 0.0
    %3373 = vmatpush1.msra.mxu0 0.0
    %3374 = vmatprep.mubr.f32.mxu0 0.0
    %3375 = vmatmul.mubr.f32.gmra.mrb[0].mxu0 %v3308
    %v3376 = vpop.f32.mrb[0].mxu0
    %v3377 = vadd.f32 0.0, %v3376
    %v3378 = vpop.f32.mrb[0].mxu0
    %3379 = vdwg.mxu0
    %3380 = vmatprep.subr.mxu0 0.0
    %3381 = vmatpush1.msra.mxu0 %v2571
    %3382 = vmatprep.subr.mxu0 0.0
    %3383 = vmatpush1.msra.mxu0 %v2572
    %3384 = vmatprep.subr.mxu0 0.0
    %3385 = vmatpush1.msra.mxu0 %v2573
    %3386 = vmatprep.subr.mxu0 0.0
    %3387 = vmatpush1.msra.mxu0 %v2574
    %3388 = vmatprep.subr.mxu0 0.0
    %3389 = vmatpush1.msra.mxu0 0.0
    %3390 = vmatprep.subr.mxu0 0.0
    %3391 = vmatpush1.msra.mxu0 0.0
    %3392 = vmatprep.subr.mxu0 0.0
    %3393 = vmatpush1.msra.mxu0 0.0
    %3394 = vmatprep.subr.mxu0 0.0
    %3395 = vmatpush1.msra.mxu0 0.0
    %3396 = vmatprep.subr.mxu0 0.0
    %3397 = vmatpush1.msra.mxu0 0.0
    %3398 = vmatprep.subr.mxu0 0.0
    %3399 = vmatpush1.msra.mxu0 0.0
    %3400 = vmatprep.subr.mxu0 0.0
    %3401 = vmatpush1.msra.mxu0 0.0
    %3402 = vmatprep.subr.mxu0 0.0
    %3403 = vmatpush1.msra.mxu0 0.0
    %3404 = vmatprep.subr.mxu0 0.0
    %3405 = vmatpush1.msra.mxu0 0.0
    %3406 = vmatprep.subr.mxu0 0.0
    %3407 = vmatpush1.msra.mxu0 0.0
    %3408 = vmatprep.subr.mxu0 0.0
    %3409 = vmatpush1.msra.mxu0 0.0
    %3410 = vmatprep.subr.mxu0 0.0
    %3411 = vmatpush1.msra.mxu0 0.0
    %3412 = vmatprep.subr.mxu0 0.0
    %3413 = vmatpush1.msra.mxu0 0.0
    %3414 = vmatprep.subr.mxu0 0.0
    %3415 = vmatpush1.msra.mxu0 0.0
    %3416 = vmatprep.subr.mxu0 0.0
    %3417 = vmatpush1.msra.mxu0 0.0
    %3418 = vmatprep.subr.mxu0 0.0
    %3419 = vmatpush1.msra.mxu0 0.0
    %3420 = vmatprep.subr.mxu0 0.0
    %3421 = vmatpush1.msra.mxu0 0.0
    %3422 = vmatprep.subr.mxu0 0.0
    %3423 = vmatpush1.msra.mxu0 0.0
    %3424 = vmatprep.subr.mxu0 0.0
    %3425 = vmatpush1.msra.mxu0 0.0
    %3426 = vmatprep.subr.mxu0 0.0
    %3427 = vmatpush1.msra.mxu0 0.0
    %3428 = vmatprep.subr.mxu0 0.0
    %3429 = vmatpush1.msra.mxu0 0.0
    %3430 = vmatprep.subr.mxu0 0.0
    %3431 = vmatpush1.msra.mxu0 0.0
    %3432 = vmatprep.subr.mxu0 0.0
    %3433 = vmatpush1.msra.mxu0 0.0
    %3434 = vmatprep.subr.mxu0 0.0
    %3435 = vmatpush1.msra.mxu0 0.0
    %3436 = vmatprep.subr.mxu0 0.0
    %3437 = vmatpush1.msra.mxu0 0.0
    %3438 = vmatprep.subr.mxu0 0.0
    %3439 = vmatpush1.msra.mxu0 0.0
    %3440 = vmatprep.subr.mxu0 0.0
    %3441 = vmatpush1.msra.mxu0 0.0
    %3442 = vmatprep.subr.mxu0 0.0
    %3443 = vmatpush1.msra.mxu0 0.0
    %3444 = vmatprep.mubr.f32.mxu0 0.0
    %3445 = vmatmul.mubr.f32.gmra.mrb[0].mxu0 %v3308
    %v3446 = vpop.f32.mrb[0].mxu0
    %v3447 = vadd.f32 0.0, %v3446
    %v3448 = vpop.f32.mrb[0].mxu0
    %3449 = vdwg.mxu0
    %v3451 = vrot.slane %v3377, 2
    %v3453 = vadd.f32 %v2390, %v3451
    %v3454 = vxor.u32 %v3453, 2147483648
    %v3455 = vmul.f32 %v3454, 1.442695
    %v3456 = vpow.pop %v3455
    %v3457 = vadd.f32 %v3456, 1.0
    %v3458 = vrcp.pop %v3457
    %v3459 = vmul.f32 1.0, %v3458
    %v3461 = vrot.slane %v3447, 2
    %v3463 = vadd.f32 %v2474, %v3461
    %v3464 = vxor.u32 %v3463, 2147483648
    %v3465 = vmul.f32 %v3464, 1.442695
    %v3466 = vpow.pop %v3465
    %v3467 = vadd.f32 %v3466, 1.0
    %v3468 = vrcp.pop %v3467
    %v3469 = vmul.f32 1.0, %v3468
    %3470 = vmatprep.subr.mxu0 0.0
    %3471 = vmatpush1.msra.mxu0 %v2576
    %3472 = vmatprep.subr.mxu0 0.0
    %3473 = vmatpush1.msra.mxu0 %v2577
    %3474 = vmatprep.subr.mxu0 0.0
    %3475 = vmatpush1.msra.mxu0 %v2578
    %3476 = vmatprep.subr.mxu0 0.0
    %3477 = vmatpush1.msra.mxu0 %v2579
    %3478 = vmatprep.subr.mxu0 0.0
    %3479 = vmatpush1.msra.mxu0 0.0
    %3480 = vmatprep.subr.mxu0 0.0
    %3481 = vmatpush1.msra.mxu0 0.0
    %3482 = vmatprep.subr.mxu0 0.0
    %3483 = vmatpush1.msra.mxu0 0.0
    %3484 = vmatprep.subr.mxu0 0.0
    %3485 = vmatpush1.msra.mxu0 0.0
    %3486 = vmatprep.subr.mxu0 0.0
    %3487 = vmatpush1.msra.mxu0 0.0
    %3488 = vmatprep.subr.mxu0 0.0
    %3489 = vmatpush1.msra.mxu0 0.0
    %3490 = vmatprep.subr.mxu0 0.0
    %3491 = vmatpush1.msra.mxu0 0.0
    %3492 = vmatprep.subr.mxu0 0.0
    %3493 = vmatpush1.msra.mxu0 0.0
    %3494 = vmatprep.subr.mxu0 0.0
    %3495 = vmatpush1.msra.mxu0 0.0
    %3496 = vmatprep.subr.mxu0 0.0
    %3497 = vmatpush1.msra.mxu0 0.0
    %3498 = vmatprep.subr.mxu0 0.0
    %3499 = vmatpush1.msra.mxu0 0.0
    %3500 = vmatprep.subr.mxu0 0.0
    %3501 = vmatpush1.msra.mxu0 0.0
    %3502 = vmatprep.subr.mxu0 0.0
    %3503 = vmatpush1.msra.mxu0 0.0
    %3504 = vmatprep.subr.mxu0 0.0
    %3505 = vmatpush1.msra.mxu0 0.0
    %3506 = vmatprep.subr.mxu0 0.0
    %3507 = vmatpush1.msra.mxu0 0.0
    %3508 = vmatprep.subr.mxu0 0.0
    %3509 = vmatpush1.msra.mxu0 0.0
    %3510 = vmatprep.subr.mxu0 0.0
    %3511 = vmatpush1.msra.mxu0 0.0
    %3512 = vmatprep.subr.mxu0 0.0
    %3513 = vmatpush1.msra.mxu0 0.0
    %3514 = vmatprep.subr.mxu0 0.0
    %3515 = vmatpush1.msra.mxu0 0.0
    %3516 = vmatprep.subr.mxu0 0.0
    %3517 = vmatpush1.msra.mxu0 0.0
    %3518 = vmatprep.subr.mxu0 0.0
    %3519 = vmatpush1.msra.mxu0 0.0
    %3520 = vmatprep.subr.mxu0 0.0
    %3521 = vmatpush1.msra.mxu0 0.0
    %3522 = vmatprep.subr.mxu0 0.0
    %3523 = vmatpush1.msra.mxu0 0.0
    %3524 = vmatprep.subr.mxu0 0.0
    %3525 = vmatpush1.msra.mxu0 0.0
    %3526 = vmatprep.subr.mxu0 0.0
    %3527 = vmatpush1.msra.mxu0 0.0
    %3528 = vmatprep.subr.mxu0 0.0
    %3529 = vmatpush1.msra.mxu0 0.0
    %3530 = vmatprep.subr.mxu0 0.0
    %3531 = vmatpush1.msra.mxu0 0.0
    %3532 = vmatprep.subr.mxu0 0.0
    %3533 = vmatpush1.msra.mxu0 0.0
    %3534 = vmatprep.mubr.f32.mxu0 0.0
    %3535 = vmatmul.mubr.f32.gmra.mrb[0].mxu0 %v3308
    %v3536 = vpop.f32.mrb[0].mxu0
    %v3537 = vadd.f32 %v2583, %v3536
    %v3538 = vpop.f32.mrb[0].mxu0
    %3539 = vdwg.mxu0
    %v3541 = vrot.slane %v3537, 2
    %v3543 = vmul.f32 %v3459, %v3541
    %v3544 = vadd.f32 %v2558, %v3543
    %v3545 = vtanh.pop %v3544
    %v3546 = vsub.f32 1.0, %v3469
    %v3547 = vmul.f32 %v3546, %v3545
    %v3548 = vrot.slane %v3305, 6
    %v3550 = vmul.f32 %v3469, %v3548
    %v3551 = vadd.f32 %v3547, %v3550
    %v3553 = vrot.slane %v3551, 6
    %v3554 = vsel %vm355, %v3553, 0
    %3556 = vmatprep.subr.mxu0 0.0
    %3557 = vmatpush1.msra.mxu0 %v2566
    %3558 = vmatprep.subr.mxu0 0.0
    %3559 = vmatpush1.msra.mxu0 %v2567
    %3560 = vmatprep.subr.mxu0 0.0
    %3561 = vmatpush1.msra.mxu0 %v2568
    %3562 = vmatprep.subr.mxu0 0.0
    %3563 = vmatpush1.msra.mxu0 %v2569
    %3564 = vmatprep.subr.mxu0 0.0
    %3565 = vmatpush1.msra.mxu0 0.0
    %3566 = vmatprep.subr.mxu0 0.0
    %3567 = vmatpush1.msra.mxu0 0.0
    %3568 = vmatprep.subr.mxu0 0.0
    %3569 = vmatpush1.msra.mxu0 0.0
    %3570 = vmatprep.subr.mxu0 0.0
    %3571 = vmatpush1.msra.mxu0 0.0
    %3572 = vmatprep.subr.mxu0 0.0
    %3573 = vmatpush1.msra.mxu0 0.0
    %3574 = vmatprep.subr.mxu0 0.0
    %3575 = vmatpush1.msra.mxu0 0.0
    %3576 = vmatprep.subr.mxu0 0.0
    %3577 = vmatpush1.msra.mxu0 0.0
    %3578 = vmatprep.subr.mxu0 0.0
    %3579 = vmatpush1.msra.mxu0 0.0
    %3580 = vmatprep.subr.mxu0 0.0
    %3581 = vmatpush1.msra.mxu0 0.0
    %3582 = vmatprep.subr.mxu0 0.0
    %3583 = vmatpush1.msra.mxu0 0.0
    %3584 = vmatprep.subr.mxu0 0.0
    %3585 = vmatpush1.msra.mxu0 0.0
    %3586 = vmatprep.subr.mxu0 0.0
    %3587 = vmatpush1.msra.mxu0 0.0
    %3588 = vmatprep.subr.mxu0 0.0
    %3589 = vmatpush1.msra.mxu0 0.0
    %3590 = vmatprep.subr.mxu0 0.0
    %3591 = vmatpush1.msra.mxu0 0.0
    %3592 = vmatprep.subr.mxu0 0.0
    %3593 = vmatpush1.msra.mxu0 0.0
    %3594 = vmatprep.subr.mxu0 0.0
    %3595 = vmatpush1.msra.mxu0 0.0
    %3596 = vmatprep.subr.mxu0 0.0
    %3597 = vmatpush1.msra.mxu0 0.0
    %3598 = vmatprep.subr.mxu0 0.0
    %3599 = vmatpush1.msra.mxu0 0.0
    %3600 = vmatprep.subr.mxu0 0.0
    %3601 = vmatpush1.msra.mxu0 0.0
    %3602 = vmatprep.subr.mxu0 0.0
    %3603 = vmatpush1.msra.mxu0 0.0
    %3604 = vmatprep.subr.mxu0 0.0
    %3605 = vmatpush1.msra.mxu0 0.0
    %3606 = vmatprep.subr.mxu0 0.0
    %3607 = vmatpush1.msra.mxu0 0.0
    %3608 = vmatprep.subr.mxu0 0.0
    %3609 = vmatpush1.msra.mxu0 0.0
    %3610 = vmatprep.subr.mxu0 0.0
    %3611 = vmatpush1.msra.mxu0 0.0
    %3612 = vmatprep.subr.mxu0 0.0
    %3613 = vmatpush1.msra.mxu0 0.0
    %3614 = vmatprep.subr.mxu0 0.0
    %3615 = vmatpush1.msra.mxu0 0.0
    %3616 = vmatprep.subr.mxu0 0.0
    %3617 = vmatpush1.msra.mxu0 0.0
    %3618 = vmatprep.subr.mxu0 0.0
    %3619 = vmatpush1.msra.mxu0 0.0
    %3620 = vmatprep.mubr.f32.mxu0 0.0
    %3621 = vmatmul.mubr.f32.gmra.mrb[0].mxu0 %v3554
    %v3622 = vpop.f32.mrb[0].mxu0
    %v3623 = vadd.f32 0.0, %v3622
    %v3624 = vpop.f32.mrb[0].mxu0
    %3625 = vdwg.mxu0
    %3626 = vmatprep.subr.mxu0 0.0
    %3627 = vmatpush1.msra.mxu0 %v2571
    %3628 = vmatprep.subr.mxu0 0.0
    %3629 = vmatpush1.msra.mxu0 %v2572
    %3630 = vmatprep.subr.mxu0 0.0
    %3631 = vmatpush1.msra.mxu0 %v2573
    %3632 = vmatprep.subr.mxu0 0.0
    %3633 = vmatpush1.msra.mxu0 %v2574
    %3634 = vmatprep.subr.mxu0 0.0
    %3635 = vmatpush1.msra.mxu0 0.0
    %3636 = vmatprep.subr.mxu0 0.0
    %3637 = vmatpush1.msra.mxu0 0.0
    %3638 = vmatprep.subr.mxu0 0.0
    %3639 = vmatpush1.msra.mxu0 0.0
    %3640 = vmatprep.subr.mxu0 0.0
    %3641 = vmatpush1.msra.mxu0 0.0
    %3642 = vmatprep.subr.mxu0 0.0
    %3643 = vmatpush1.msra.mxu0 0.0
    %3644 = vmatprep.subr.mxu0 0.0
    %3645 = vmatpush1.msra.mxu0 0.0
    %3646 = vmatprep.subr.mxu0 0.0
    %3647 = vmatpush1.msra.mxu0 0.0
    %3648 = vmatprep.subr.mxu0 0.0
    %3649 = vmatpush1.msra.mxu0 0.0
    %3650 = vmatprep.subr.mxu0 0.0
    %3651 = vmatpush1.msra.mxu0 0.0
    %3652 = vmatprep.subr.mxu0 0.0
    %3653 = vmatpush1.msra.mxu0 0.0
    %3654 = vmatprep.subr.mxu0 0.0
    %3655 = vmatpush1.msra.mxu0 0.0
    %3656 = vmatprep.subr.mxu0 0.0
    %3657 = vmatpush1.msra.mxu0 0.0
    %3658 = vmatprep.subr.mxu0 0.0
    %3659 = vmatpush1.msra.mxu0 0.0
    %3660 = vmatprep.subr.mxu0 0.0
    %3661 = vmatpush1.msra.mxu0 0.0
    %3662 = vmatprep.subr.mxu0 0.0
    %3663 = vmatpush1.msra.mxu0 0.0
    %3664 = vmatprep.subr.mxu0 0.0
    %3665 = vmatpush1.msra.mxu0 0.0
    %3666 = vmatprep.subr.mxu0 0.0
    %3667 = vmatpush1.msra.mxu0 0.0
    %3668 = vmatprep.subr.mxu0 0.0
    %3669 = vmatpush1.msra.mxu0 0.0
    %3670 = vmatprep.subr.mxu0 0.0
    %3671 = vmatpush1.msra.mxu0 0.0
    %3672 = vmatprep.subr.mxu0 0.0
    %3673 = vmatpush1.msra.mxu0 0.0
    %3674 = vmatprep.subr.mxu0 0.0
    %3675 = vmatpush1.msra.mxu0 0.0
    %3676 = vmatprep.subr.mxu0 0.0
    %3677 = vmatpush1.msra.mxu0 0.0
    %3678 = vmatprep.subr.mxu0 0.0
    %3679 = vmatpush1.msra.mxu0 0.0
    %3680 = vmatprep.subr.mxu0 0.0
    %3681 = vmatpush1.msra.mxu0 0.0
    %3682 = vmatprep.subr.mxu0 0.0
    %3683 = vmatpush1.msra.mxu0 0.0
    %3684 = vmatprep.subr.mxu0 0.0
    %3685 = vmatpush1.msra.mxu0 0.0
    %3686 = vmatprep.subr.mxu0 0.0
    %3687 = vmatpush1.msra.mxu0 0.0
    %3688 = vmatprep.subr.mxu0 0.0
    %3689 = vmatpush1.msra.mxu0 0.0
    %3690 = vmatprep.mubr.f32.mxu0 0.0
    %3691 = vmatmul.mubr.f32.gmra.mrb[0].mxu0 %v3554
    %v3692 = vpop.f32.mrb[0].mxu0
    %v3693 = vadd.f32 0.0, %v3692
    %v3694 = vpop.f32.mrb[0].mxu0
    %3695 = vdwg.mxu0
    %v3696 = vadd.f32 %v2395, %v3623
    %v3697 = vxor.u32 %v3696, 2147483648
    %v3698 = vmul.f32 %v3697, 1.442695
    %v3699 = vpow.pop %v3698
    %v3700 = vadd.f32 %v3699, 1.0
    %v3701 = vrcp.pop %v3700
    %v3702 = vmul.f32 1.0, %v3701
    %v3703 = vadd.f32 %v2479, %v3693
    %v3704 = vxor.u32 %v3703, 2147483648
    %v3705 = vmul.f32 %v3704, 1.442695
    %v3706 = vpow.pop %v3705
    %v3707 = vadd.f32 %v3706, 1.0
    %v3708 = vrcp.pop %v3707
    %v3709 = vmul.f32 1.0, %v3708
    %3710 = vmatprep.subr.mxu0 0.0
    %3711 = vmatpush1.msra.mxu0 %v2576
    %3712 = vmatprep.subr.mxu0 0.0
    %3713 = vmatpush1.msra.mxu0 %v2577
    %3714 = vmatprep.subr.mxu0 0.0
    %3715 = vmatpush1.msra.mxu0 %v2578
    %3716 = vmatprep.subr.mxu0 0.0
    %3717 = vmatpush1.msra.mxu0 %v2579
    %3718 = vmatprep.subr.mxu0 0.0
    %3719 = vmatpush1.msra.mxu0 0.0
    %3720 = vmatprep.subr.mxu0 0.0
    %3721 = vmatpush1.msra.mxu0 0.0
    %3722 = vmatprep.subr.mxu0 0.0
    %3723 = vmatpush1.msra.mxu0 0.0
    %3724 = vmatprep.subr.mxu0 0.0
    %3725 = vmatpush1.msra.mxu0 0.0
    %3726 = vmatprep.subr.mxu0 0.0
    %3727 = vmatpush1.msra.mxu0 0.0
    %3728 = vmatprep.subr.mxu0 0.0
    %3729 = vmatpush1.msra.mxu0 0.0
    %3730 = vmatprep.subr.mxu0 0.0
    %3731 = vmatpush1.msra.mxu0 0.0
    %3732 = vmatprep.subr.mxu0 0.0
    %3733 = vmatpush1.msra.mxu0 0.0
    %3734 = vmatprep.subr.mxu0 0.0
    %3735 = vmatpush1.msra.mxu0 0.0
    %3736 = vmatprep.subr.mxu0 0.0
    %3737 = vmatpush1.msra.mxu0 0.0
    %3738 = vmatprep.subr.mxu0 0.0
    %3739 = vmatpush1.msra.mxu0 0.0
    %3740 = vmatprep.subr.mxu0 0.0
    %3741 = vmatpush1.msra.mxu0 0.0
    %3742 = vmatprep.subr.mxu0 0.0
    %3743 = vmatpush1.msra.mxu0 0.0
    %3744 = vmatprep.subr.mxu0 0.0
    %3745 = vmatpush1.msra.mxu0 0.0
    %3746 = vmatprep.subr.mxu0 0.0
    %3747 = vmatpush1.msra.mxu0 0.0
    %3748 = vmatprep.subr.mxu0 0.0
    %3749 = vmatpush1.msra.mxu0 0.0
    %3750 = vmatprep.subr.mxu0 0.0
    %3751 = vmatpush1.msra.mxu0 0.0
    %3752 = vmatprep.subr.mxu0 0.0
    %3753 = vmatpush1.msra.mxu0 0.0
    %3754 = vmatprep.subr.mxu0 0.0
    %3755 = vmatpush1.msra.mxu0 0.0
    %3756 = vmatprep.subr.mxu0 0.0
    %3757 = vmatpush1.msra.mxu0 0.0
    %3758 = vmatprep.subr.mxu0 0.0
    %3759 = vmatpush1.msra.mxu0 0.0
    %3760 = vmatprep.subr.mxu0 0.0
    %3761 = vmatpush1.msra.mxu0 0.0
    %3762 = vmatprep.subr.mxu0 0.0
    %3763 = vmatpush1.msra.mxu0 0.0
    %3764 = vmatprep.subr.mxu0 0.0
    %3765 = vmatpush1.msra.mxu0 0.0
    %3766 = vmatprep.subr.mxu0 0.0
    %3767 = vmatpush1.msra.mxu0 0.0
    %3768 = vmatprep.subr.mxu0 0.0
    %3769 = vmatpush1.msra.mxu0 0.0
    %3770 = vmatprep.subr.mxu0 0.0
    %3771 = vmatpush1.msra.mxu0 0.0
    %3772 = vmatprep.subr.mxu0 0.0
    %3773 = vmatpush1.msra.mxu0 0.0
    %3774 = vmatprep.mubr.f32.mxu0 0.0
    %3775 = vmatmul.mubr.f32.gmra.mrb[0].mxu0 %v3554
    %v3776 = vpop.f32.mrb[0].mxu0
    %v3777 = vadd.f32 %v2583, %v3776
    %v3778 = vpop.f32.mrb[0].mxu0
    %3779 = vdwg.mxu0
    %v3780 = vmul.f32 %v3702, %v3777
    %v3781 = vadd.f32 %v2563, %v3780
    %v3782 = vtanh.pop %v3781
    %v3783 = vsub.f32 1.0, %v3709
    %v3784 = vmul.f32 %v3783, %v3782
    %v3786 = vmul.f32 %v3709, %v3553
    %v3787 = vadd.f32 %v3784, %v3786
    %v3789 = vsel %vm355, %v3787, 0
    %3791 = vmatprep.subr.mxu0 0.0
    %3792 = vmatpush1.msra.mxu0 %v2566
    %3793 = vmatprep.subr.mxu0 0.0
    %3794 = vmatpush1.msra.mxu0 %v2567
    %3795 = vmatprep.subr.mxu0 0.0
    %3796 = vmatpush1.msra.mxu0 %v2568
    %3797 = vmatprep.subr.mxu0 0.0
    %3798 = vmatpush1.msra.mxu0 %v2569
    %3799 = vmatprep.subr.mxu0 0.0
    %3800 = vmatpush1.msra.mxu0 0.0
    %3801 = vmatprep.subr.mxu0 0.0
    %3802 = vmatpush1.msra.mxu0 0.0
    %3803 = vmatprep.subr.mxu0 0.0
    %3804 = vmatpush1.msra.mxu0 0.0
    %3805 = vmatprep.subr.mxu0 0.0
    %3806 = vmatpush1.msra.mxu0 0.0
    %3807 = vmatprep.subr.mxu0 0.0
    %3808 = vmatpush1.msra.mxu0 0.0
    %3809 = vmatprep.subr.mxu0 0.0
    %3810 = vmatpush1.msra.mxu0 0.0
    %3811 = vmatprep.subr.mxu0 0.0
    %3812 = vmatpush1.msra.mxu0 0.0
    %3813 = vmatprep.subr.mxu0 0.0
    %3814 = vmatpush1.msra.mxu0 0.0
    %3815 = vmatprep.subr.mxu0 0.0
    %3816 = vmatpush1.msra.mxu0 0.0
    %3817 = vmatprep.subr.mxu0 0.0
    %3818 = vmatpush1.msra.mxu0 0.0
    %3819 = vmatprep.subr.mxu0 0.0
    %3820 = vmatpush1.msra.mxu0 0.0
    %3821 = vmatprep.subr.mxu0 0.0
    %3822 = vmatpush1.msra.mxu0 0.0
    %3823 = vmatprep.subr.mxu0 0.0
    %3824 = vmatpush1.msra.mxu0 0.0
    %3825 = vmatprep.subr.mxu0 0.0
    %3826 = vmatpush1.msra.mxu0 0.0
    %3827 = vmatprep.subr.mxu0 0.0
    %3828 = vmatpush1.msra.mxu0 0.0
    %3829 = vmatprep.subr.mxu0 0.0
    %3830 = vmatpush1.msra.mxu0 0.0
    %3831 = vmatprep.subr.mxu0 0.0
    %3832 = vmatpush1.msra.mxu0 0.0
    %3833 = vmatprep.subr.mxu0 0.0
    %3834 = vmatpush1.msra.mxu0 0.0
    %3835 = vmatprep.subr.mxu0 0.0
    %3836 = vmatpush1.msra.mxu0 0.0
    %3837 = vmatprep.subr.mxu0 0.0
    %3838 = vmatpush1.msra.mxu0 0.0
    %3839 = vmatprep.subr.mxu0 0.0
    %3840 = vmatpush1.msra.mxu0 0.0
    %3841 = vmatprep.subr.mxu0 0.0
    %3842 = vmatpush1.msra.mxu0 0.0
    %3843 = vmatprep.subr.mxu0 0.0
    %3844 = vmatpush1.msra.mxu0 0.0
    %3845 = vmatprep.subr.mxu0 0.0
    %3846 = vmatpush1.msra.mxu0 0.0
    %3847 = vmatprep.subr.mxu0 0.0
    %3848 = vmatpush1.msra.mxu0 0.0
    %3849 = vmatprep.subr.mxu0 0.0
    %3850 = vmatpush1.msra.mxu0 0.0
    %3851 = vmatprep.subr.mxu0 0.0
    %3852 = vmatpush1.msra.mxu0 0.0
    %3853 = vmatprep.subr.mxu0 0.0
    %3854 = vmatpush1.msra.mxu0 0.0
    %3855 = vmatprep.mubr.f32.mxu0 0.0
    %3856 = vmatmul.mubr.f32.gmra.mrb[0].mxu0 %v3789
    %v3857 = vpop.f32.mrb[0].mxu0
    %v3858 = vadd.f32 0.0, %v3857
    %v3859 = vpop.f32.mrb[0].mxu0
    %3860 = vdwg.mxu0
    %3861 = vmatprep.subr.mxu0 0.0
    %3862 = vmatpush1.msra.mxu0 %v2571
    %3863 = vmatprep.subr.mxu0 0.0
    %3864 = vmatpush1.msra.mxu0 %v2572
    %3865 = vmatprep.subr.mxu0 0.0
    %3866 = vmatpush1.msra.mxu0 %v2573
    %3867 = vmatprep.subr.mxu0 0.0
    %3868 = vmatpush1.msra.mxu0 %v2574
    %3869 = vmatprep.subr.mxu0 0.0
    %3870 = vmatpush1.msra.mxu0 0.0
    %3871 = vmatprep.subr.mxu0 0.0
    %3872 = vmatpush1.msra.mxu0 0.0
    %3873 = vmatprep.subr.mxu0 0.0
    %3874 = vmatpush1.msra.mxu0 0.0
    %3875 = vmatprep.subr.mxu0 0.0
    %3876 = vmatpush1.msra.mxu0 0.0
    %3877 = vmatprep.subr.mxu0 0.0
    %3878 = vmatpush1.msra.mxu0 0.0
    %3879 = vmatprep.subr.mxu0 0.0
    %3880 = vmatpush1.msra.mxu0 0.0
    %3881 = vmatprep.subr.mxu0 0.0
    %3882 = vmatpush1.msra.mxu0 0.0
    %3883 = vmatprep.subr.mxu0 0.0
    %3884 = vmatpush1.msra.mxu0 0.0
    %3885 = vmatprep.subr.mxu0 0.0
    %3886 = vmatpush1.msra.mxu0 0.0
    %3887 = vmatprep.subr.mxu0 0.0
    %3888 = vmatpush1.msra.mxu0 0.0
    %3889 = vmatprep.subr.mxu0 0.0
    %3890 = vmatpush1.msra.mxu0 0.0
    %3891 = vmatprep.subr.mxu0 0.0
    %3892 = vmatpush1.msra.mxu0 0.0
    %3893 = vmatprep.subr.mxu0 0.0
    %3894 = vmatpush1.msra.mxu0 0.0
    %3895 = vmatprep.subr.mxu0 0.0
    %3896 = vmatpush1.msra.mxu0 0.0
    %3897 = vmatprep.subr.mxu0 0.0
    %3898 = vmatpush1.msra.mxu0 0.0
    %3899 = vmatprep.subr.mxu0 0.0
    %3900 = vmatpush1.msra.mxu0 0.0
    %3901 = vmatprep.subr.mxu0 0.0
    %3902 = vmatpush1.msra.mxu0 0.0
    %3903 = vmatprep.subr.mxu0 0.0
    %3904 = vmatpush1.msra.mxu0 0.0
    %3905 = vmatprep.subr.mxu0 0.0
    %3906 = vmatpush1.msra.mxu0 0.0
    %3907 = vmatprep.subr.mxu0 0.0
    %3908 = vmatpush1.msra.mxu0 0.0
    %3909 = vmatprep.subr.mxu0 0.0
    %3910 = vmatpush1.msra.mxu0 0.0
    %3911 = vmatprep.subr.mxu0 0.0
    %3912 = vmatpush1.msra.mxu0 0.0
    %3913 = vmatprep.subr.mxu0 0.0
    %3914 = vmatpush1.msra.mxu0 0.0
    %3915 = vmatprep.subr.mxu0 0.0
    %3916 = vmatpush1.msra.mxu0 0.0
    %3917 = vmatprep.subr.mxu0 0.0
    %3918 = vmatpush1.msra.mxu0 0.0
    %3919 = vmatprep.subr.mxu0 0.0
    %3920 = vmatpush1.msra.mxu0 0.0
    %3921 = vmatprep.subr.mxu0 0.0
    %3922 = vmatpush1.msra.mxu0 0.0
    %3923 = vmatprep.subr.mxu0 0.0
    %3924 = vmatpush1.msra.mxu0 0.0
    %3925 = vmatprep.mubr.f32.mxu0 0.0
    %3926 = vmatmul.mubr.f32.gmra.mrb[0].mxu0 %v3789
    %v3927 = vpop.f32.mrb[0].mxu0
    %v3928 = vadd.f32 0.0, %v3927
    %v3929 = vpop.f32.mrb[0].mxu0
    %3930 = vdwg.mxu0
    %v3932 = vrot.slane %v3858, 6
    %v3934 = vadd.f32 %v2395, %v3932
    %v3935 = vxor.u32 %v3934, 2147483648
    %v3936 = vmul.f32 %v3935, 1.442695
    %v3937 = vpow.pop %v3936
    %v3938 = vadd.f32 %v3937, 1.0
    %v3939 = vrcp.pop %v3938
    %v3940 = vmul.f32 1.0, %v3939
    %v3942 = vrot.slane %v3928, 6
    %v3944 = vadd.f32 %v2479, %v3942
    %v3945 = vxor.u32 %v3944, 2147483648
    %v3946 = vmul.f32 %v3945, 1.442695
    %v3947 = vpow.pop %v3946
    %v3948 = vadd.f32 %v3947, 1.0
    %v3949 = vrcp.pop %v3948
    %v3950 = vmul.f32 1.0, %v3949
    %3951 = vmatprep.subr.mxu0 0.0
    %3952 = vmatpush1.msra.mxu0 %v2576
    %3953 = vmatprep.subr.mxu0 0.0
    %3954 = vmatpush1.msra.mxu0 %v2577
    %3955 = vmatprep.subr.mxu0 0.0
    %3956 = vmatpush1.msra.mxu0 %v2578
    %3957 = vmatprep.subr.mxu0 0.0
    %3958 = vmatpush1.msra.mxu0 %v2579
    %3959 = vmatprep.subr.mxu0 0.0
    %3960 = vmatpush1.msra.mxu0 0.0
    %3961 = vmatprep.subr.mxu0 0.0
    %3962 = vmatpush1.msra.mxu0 0.0
    %3963 = vmatprep.subr.mxu0 0.0
    %3964 = vmatpush1.msra.mxu0 0.0
    %3965 = vmatprep.subr.mxu0 0.0
    %3966 = vmatpush1.msra.mxu0 0.0
    %3967 = vmatprep.subr.mxu0 0.0
    %3968 = vmatpush1.msra.mxu0 0.0
    %3969 = vmatprep.subr.mxu0 0.0
    %3970 = vmatpush1.msra.mxu0 0.0
    %3971 = vmatprep.subr.mxu0 0.0
    %3972 = vmatpush1.msra.mxu0 0.0
    %3973 = vmatprep.subr.mxu0 0.0
    %3974 = vmatpush1.msra.mxu0 0.0
    %3975 = vmatprep.subr.mxu0 0.0
    %3976 = vmatpush1.msra.mxu0 0.0
    %3977 = vmatprep.subr.mxu0 0.0
    %3978 = vmatpush1.msra.mxu0 0.0
    %3979 = vmatprep.subr.mxu0 0.0
    %3980 = vmatpush1.msra.mxu0 0.0
    %3981 = vmatprep.subr.mxu0 0.0
    %3982 = vmatpush1.msra.mxu0 0.0
    %3983 = vmatprep.subr.mxu0 0.0
    %3984 = vmatpush1.msra.mxu0 0.0
    %3985 = vmatprep.subr.mxu0 0.0
    %3986 = vmatpush1.msra.mxu0 0.0
    %3987 = vmatprep.subr.mxu0 0.0
    %3988 = vmatpush1.msra.mxu0 0.0
    %3989 = vmatprep.subr.mxu0 0.0
    %3990 = vmatpush1.msra.mxu0 0.0
    %3991 = vmatprep.subr.mxu0 0.0
    %3992 = vmatpush1.msra.mxu0 0.0
    %3993 = vmatprep.subr.mxu0 0.0
    %3994 = vmatpush1.msra.mxu0 0.0
    %3995 = vmatprep.subr.mxu0 0.0
    %3996 = vmatpush1.msra.mxu0 0.0
    %3997 = vmatprep.subr.mxu0 0.0
    %3998 = vmatpush1.msra.mxu0 0.0
    %3999 = vmatprep.subr.mxu0 0.0
    %4000 = vmatpush1.msra.mxu0 0.0
    %4001 = vmatprep.subr.mxu0 0.0
    %4002 = vmatpush1.msra.mxu0 0.0
    %4003 = vmatprep.subr.mxu0 0.0
    %4004 = vmatpush1.msra.mxu0 0.0
    %4005 = vmatprep.subr.mxu0 0.0
    %4006 = vmatpush1.msra.mxu0 0.0
    %4007 = vmatprep.subr.mxu0 0.0
    %4008 = vmatpush1.msra.mxu0 0.0
    %4009 = vmatprep.subr.mxu0 0.0
    %4010 = vmatpush1.msra.mxu0 0.0
    %4011 = vmatprep.subr.mxu0 0.0
    %4012 = vmatpush1.msra.mxu0 0.0
    %4013 = vmatprep.subr.mxu0 0.0
    %4014 = vmatpush1.msra.mxu0 0.0
    %4015 = vmatprep.mubr.f32.mxu0 0.0
    %4016 = vmatmul.mubr.f32.gmra.mrb[0].mxu0 %v3789
    %v4017 = vpop.f32.mrb[0].mxu0
    %v4018 = vadd.f32 %v2583, %v4017
    %v4019 = vpop.f32.mrb[0].mxu0
    %4020 = vdwg.mxu0
    %v4022 = vrot.slane %v4018, 6
    %v4024 = vmul.f32 %v3940, %v4022
    %v4025 = vadd.f32 %v2563, %v4024
    %v4026 = vtanh.pop %v4025
    %v4027 = vsub.f32 1.0, %v3950
    %v4028 = vmul.f32 %v4027, %v4026
    %v4029 = vrot.slane %v3787, 6
    %v4031 = vmul.f32 %v3950, %v4029
    %v4032 = vadd.f32 %v4028, %v4031
    %v4034 = vrot.slane %v4032, 2
    %v4035 = vsel %vm355, %v4034, 0
    %4037 = vmatprep.subr.mxu0 0.0
    %4038 = vmatpush1.msra.mxu0 %v2566
    %4039 = vmatprep.subr.mxu0 0.0
    %4040 = vmatpush1.msra.mxu0 %v2567
    %4041 = vmatprep.subr.mxu0 0.0
    %4042 = vmatpush1.msra.mxu0 %v2568
    %4043 = vmatprep.subr.mxu0 0.0
    %4044 = vmatpush1.msra.mxu0 %v2569
    %4045 = vmatprep.subr.mxu0 0.0
    %4046 = vmatpush1.msra.mxu0 0.0
    %4047 = vmatprep.subr.mxu0 0.0
    %4048 = vmatpush1.msra.mxu0 0.0
    %4049 = vmatprep.subr.mxu0 0.0
    %4050 = vmatpush1.msra.mxu0 0.0
    %4051 = vmatprep.subr.mxu0 0.0
    %4052 = vmatpush1.msra.mxu0 0.0
    %4053 = vmatprep.subr.mxu0 0.0
    %4054 = vmatpush1.msra.mxu0 0.0
    %4055 = vmatprep.subr.mxu0 0.0
    %4056 = vmatpush1.msra.mxu0 0.0
    %4057 = vmatprep.subr.mxu0 0.0
    %4058 = vmatpush1.msra.mxu0 0.0
    %4059 = vmatprep.subr.mxu0 0.0
    %4060 = vmatpush1.msra.mxu0 0.0
    %4061 = vmatprep.subr.mxu0 0.0
    %4062 = vmatpush1.msra.mxu0 0.0
    %4063 = vmatprep.subr.mxu0 0.0
    %4064 = vmatpush1.msra.mxu0 0.0
    %4065 = vmatprep.subr.mxu0 0.0
    %4066 = vmatpush1.msra.mxu0 0.0
    %4067 = vmatprep.subr.mxu0 0.0
    %4068 = vmatpush1.msra.mxu0 0.0
    %4069 = vmatprep.subr.mxu0 0.0
    %4070 = vmatpush1.msra.mxu0 0.0
    %4071 = vmatprep.subr.mxu0 0.0
    %4072 = vmatpush1.msra.mxu0 0.0
    %4073 = vmatprep.subr.mxu0 0.0
    %4074 = vmatpush1.msra.mxu0 0.0
    %4075 = vmatprep.subr.mxu0 0.0
    %4076 = vmatpush1.msra.mxu0 0.0
    %4077 = vmatprep.subr.mxu0 0.0
    %4078 = vmatpush1.msra.mxu0 0.0
    %4079 = vmatprep.subr.mxu0 0.0
    %4080 = vmatpush1.msra.mxu0 0.0
    %4081 = vmatprep.subr.mxu0 0.0
    %4082 = vmatpush1.msra.mxu0 0.0
    %4083 = vmatprep.subr.mxu0 0.0
    %4084 = vmatpush1.msra.mxu0 0.0
    %4085 = vmatprep.subr.mxu0 0.0
    %4086 = vmatpush1.msra.mxu0 0.0
    %4087 = vmatprep.subr.mxu0 0.0
    %4088 = vmatpush1.msra.mxu0 0.0
    %4089 = vmatprep.subr.mxu0 0.0
    %4090 = vmatpush1.msra.mxu0 0.0
    %4091 = vmatprep.subr.mxu0 0.0
    %4092 = vmatpush1.msra.mxu0 0.0
    %4093 = vmatprep.subr.mxu0 0.0
    %4094 = vmatpush1.msra.mxu0 0.0
    %4095 = vmatprep.subr.mxu0 0.0
    %4096 = vmatpush1.msra.mxu0 0.0
    %4097 = vmatprep.subr.mxu0 0.0
    %4098 = vmatpush1.msra.mxu0 0.0
    %4099 = vmatprep.subr.mxu0 0.0
    %4100 = vmatpush1.msra.mxu0 0.0
    %4101 = vmatprep.mubr.f32.mxu0 0.0
    %4102 = vmatmul.mubr.f32.gmra.mrb[0].mxu0 %v4035
    %v4103 = vpop.f32.mrb[0].mxu0
    %v4104 = vadd.f32 0.0, %v4103
    %v4105 = vpop.f32.mrb[0].mxu0
    %4106 = vdwg.mxu0
    %4107 = vmatprep.subr.mxu0 0.0
    %4108 = vmatpush1.msra.mxu0 %v2571
    %4109 = vmatprep.subr.mxu0 0.0
    %4110 = vmatpush1.msra.mxu0 %v2572
    %4111 = vmatprep.subr.mxu0 0.0
    %4112 = vmatpush1.msra.mxu0 %v2573
    %4113 = vmatprep.subr.mxu0 0.0
    %4114 = vmatpush1.msra.mxu0 %v2574
    %4115 = vmatprep.subr.mxu0 0.0
    %4116 = vmatpush1.msra.mxu0 0.0
    %4117 = vmatprep.subr.mxu0 0.0
    %4118 = vmatpush1.msra.mxu0 0.0
    %4119 = vmatprep.subr.mxu0 0.0
    %4120 = vmatpush1.msra.mxu0 0.0
    %4121 = vmatprep.subr.mxu0 0.0
    %4122 = vmatpush1.msra.mxu0 0.0
    %4123 = vmatprep.subr.mxu0 0.0
    %4124 = vmatpush1.msra.mxu0 0.0
    %4125 = vmatprep.subr.mxu0 0.0
    %4126 = vmatpush1.msra.mxu0 0.0
    %4127 = vmatprep.subr.mxu0 0.0
    %4128 = vmatpush1.msra.mxu0 0.0
    %4129 = vmatprep.subr.mxu0 0.0
    %4130 = vmatpush1.msra.mxu0 0.0
    %4131 = vmatprep.subr.mxu0 0.0
    %4132 = vmatpush1.msra.mxu0 0.0
    %4133 = vmatprep.subr.mxu0 0.0
    %4134 = vmatpush1.msra.mxu0 0.0
    %4135 = vmatprep.subr.mxu0 0.0
    %4136 = vmatpush1.msra.mxu0 0.0
    %4137 = vmatprep.subr.mxu0 0.0
    %4138 = vmatpush1.msra.mxu0 0.0
    %4139 = vmatprep.subr.mxu0 0.0
    %4140 = vmatpush1.msra.mxu0 0.0
    %4141 = vmatprep.subr.mxu0 0.0
    %4142 = vmatpush1.msra.mxu0 0.0
    %4143 = vmatprep.subr.mxu0 0.0
    %4144 = vmatpush1.msra.mxu0 0.0
    %4145 = vmatprep.subr.mxu0 0.0
    %4146 = vmatpush1.msra.mxu0 0.0
    %4147 = vmatprep.subr.mxu0 0.0
    %4148 = vmatpush1.msra.mxu0 0.0
    %4149 = vmatprep.subr.mxu0 0.0
    %4150 = vmatpush1.msra.mxu0 0.0
    %4151 = vmatprep.subr.mxu0 0.0
    %4152 = vmatpush1.msra.mxu0 0.0
    %4153 = vmatprep.subr.mxu0 0.0
    %4154 = vmatpush1.msra.mxu0 0.0
    %4155 = vmatprep.subr.mxu0 0.0
    %4156 = vmatpush1.msra.mxu0 0.0
    %4157 = vmatprep.subr.mxu0 0.0
    %4158 = vmatpush1.msra.mxu0 0.0
    %4159 = vmatprep.subr.mxu0 0.0
    %4160 = vmatpush1.msra.mxu0 0.0
    %4161 = vmatprep.subr.mxu0 0.0
    %4162 = vmatpush1.msra.mxu0 0.0
    %4163 = vmatprep.subr.mxu0 0.0
    %4164 = vmatpush1.msra.mxu0 0.0
    %4165 = vmatprep.subr.mxu0 0.0
    %4166 = vmatpush1.msra.mxu0 0.0
    %4167 = vmatprep.subr.mxu0 0.0
    %4168 = vmatpush1.msra.mxu0 0.0
    %4169 = vmatprep.subr.mxu0 0.0
    %4170 = vmatpush1.msra.mxu0 0.0
    %4171 = vmatprep.mubr.f32.mxu0 0.0
    %4172 = vmatmul.mubr.f32.gmra.mrb[0].mxu0 %v4035
    %v4173 = vpop.f32.mrb[0].mxu0
    %v4174 = vadd.f32 0.0, %v4173
    %v4175 = vpop.f32.mrb[0].mxu0
    %4176 = vdwg.mxu0
    %v4178 = vrot.slane %v4104, 4
    %v4180 = vadd.f32 %v2395, %v4178
    %v4181 = vxor.u32 %v4180, 2147483648
    %v4182 = vmul.f32 %v4181, 1.442695
    %v4183 = vpow.pop %v4182
    %v4184 = vadd.f32 %v4183, 1.0
    %v4185 = vrcp.pop %v4184
    %v4186 = vmul.f32 1.0, %v4185
    %v4188 = vrot.slane %v4174, 4
    %v4190 = vadd.f32 %v2479, %v4188
    %v4191 = vxor.u32 %v4190, 2147483648
    %v4192 = vmul.f32 %v4191, 1.442695
    %v4193 = vpow.pop %v4192
    %v4194 = vadd.f32 %v4193, 1.0
    %v4195 = vrcp.pop %v4194
    %v4196 = vmul.f32 1.0, %v4195
    %4197 = vmatprep.subr.mxu0 0.0
    %4198 = vmatpush1.msra.mxu0 %v2576
    %4199 = vmatprep.subr.mxu0 0.0
    %4200 = vmatpush1.msra.mxu0 %v2577
    %4201 = vmatprep.subr.mxu0 0.0
    %4202 = vmatpush1.msra.mxu0 %v2578
    %4203 = vmatprep.subr.mxu0 0.0
    %4204 = vmatpush1.msra.mxu0 %v2579
    %4205 = vmatprep.subr.mxu0 0.0
    %4206 = vmatpush1.msra.mxu0 0.0
    %4207 = vmatprep.subr.mxu0 0.0
    %4208 = vmatpush1.msra.mxu0 0.0
    %4209 = vmatprep.subr.mxu0 0.0
    %4210 = vmatpush1.msra.mxu0 0.0
    %4211 = vmatprep.subr.mxu0 0.0
    %4212 = vmatpush1.msra.mxu0 0.0
    %4213 = vmatprep.subr.mxu0 0.0
    %4214 = vmatpush1.msra.mxu0 0.0
    %4215 = vmatprep.subr.mxu0 0.0
    %4216 = vmatpush1.msra.mxu0 0.0
    %4217 = vmatprep.subr.mxu0 0.0
    %4218 = vmatpush1.msra.mxu0 0.0
    %4219 = vmatprep.subr.mxu0 0.0
    %4220 = vmatpush1.msra.mxu0 0.0
    %4221 = vmatprep.subr.mxu0 0.0
    %4222 = vmatpush1.msra.mxu0 0.0
    %4223 = vmatprep.subr.mxu0 0.0
    %4224 = vmatpush1.msra.mxu0 0.0
    %4225 = vmatprep.subr.mxu0 0.0
    %4226 = vmatpush1.msra.mxu0 0.0
    %4227 = vmatprep.subr.mxu0 0.0
    %4228 = vmatpush1.msra.mxu0 0.0
    %4229 = vmatprep.subr.mxu0 0.0
    %4230 = vmatpush1.msra.mxu0 0.0
    %4231 = vmatprep.subr.mxu0 0.0
    %4232 = vmatpush1.msra.mxu0 0.0
    %4233 = vmatprep.subr.mxu0 0.0
    %4234 = vmatpush1.msra.mxu0 0.0
    %4235 = vmatprep.subr.mxu0 0.0
    %4236 = vmatpush1.msra.mxu0 0.0
    %4237 = vmatprep.subr.mxu0 0.0
    %4238 = vmatpush1.msra.mxu0 0.0
    %4239 = vmatprep.subr.mxu0 0.0
    %4240 = vmatpush1.msra.mxu0 0.0
    %4241 = vmatprep.subr.mxu0 0.0
    %4242 = vmatpush1.msra.mxu0 0.0
    %4243 = vmatprep.subr.mxu0 0.0
    %4244 = vmatpush1.msra.mxu0 0.0
    %4245 = vmatprep.subr.mxu0 0.0
    %4246 = vmatpush1.msra.mxu0 0.0
    %4247 = vmatprep.subr.mxu0 0.0
    %4248 = vmatpush1.msra.mxu0 0.0
    %4249 = vmatprep.subr.mxu0 0.0
    %4250 = vmatpush1.msra.mxu0 0.0
    %4251 = vmatprep.subr.mxu0 0.0
    %4252 = vmatpush1.msra.mxu0 0.0
    %4253 = vmatprep.subr.mxu0 0.0
    %4254 = vmatpush1.msra.mxu0 0.0
    %4255 = vmatprep.subr.mxu0 0.0
    %4256 = vmatpush1.msra.mxu0 0.0
    %4257 = vmatprep.subr.mxu0 0.0
    %4258 = vmatpush1.msra.mxu0 0.0
    %4259 = vmatprep.subr.mxu0 0.0
    %4260 = vmatpush1.msra.mxu0 0.0
    %4261 = vmatprep.mubr.f32.mxu0 0.0
    %4262 = vmatmul.mubr.f32.gmra.mrb[0].mxu0 %v4035
    %v4263 = vpop.f32.mrb[0].mxu0
    %v4264 = vadd.f32 %v2583, %v4263
    %v4265 = vpop.f32.mrb[0].mxu0
    %4266 = vdwg.mxu0
    %v4268 = vrot.slane %v4264, 4
    %v4270 = vmul.f32 %v4186, %v4268
    %v4271 = vadd.f32 %v2563, %v4270
    %v4272 = vtanh.pop %v4271
    %v4273 = vsub.f32 1.0, %v4196
    %v4274 = vmul.f32 %v4273, %v4272
    %v4275 = vrot.slane %v4032, 6
    %v4277 = vmul.f32 %v4196, %v4275
    %v4278 = vadd.f32 %v4274, %v4277
    %v4280 = vrot.slane %v4278, 4
    %v4281 = vsel %vm355, %v4280, 0
    %4283 = vmatprep.subr.mxu0 0.0
    %4284 = vmatpush1.msra.mxu0 %v2566
    %4285 = vmatprep.subr.mxu0 0.0
    %4286 = vmatpush1.msra.mxu0 %v2567
    %4287 = vmatprep.subr.mxu0 0.0
    %4288 = vmatpush1.msra.mxu0 %v2568
    %4289 = vmatprep.subr.mxu0 0.0
    %4290 = vmatpush1.msra.mxu0 %v2569
    %4291 = vmatprep.subr.mxu0 0.0
    %4292 = vmatpush1.msra.mxu0 0.0
    %4293 = vmatprep.subr.mxu0 0.0
    %4294 = vmatpush1.msra.mxu0 0.0
    %4295 = vmatprep.subr.mxu0 0.0
    %4296 = vmatpush1.msra.mxu0 0.0
    %4297 = vmatprep.subr.mxu0 0.0
    %4298 = vmatpush1.msra.mxu0 0.0
    %4299 = vmatprep.subr.mxu0 0.0
    %4300 = vmatpush1.msra.mxu0 0.0
    %4301 = vmatprep.subr.mxu0 0.0
    %4302 = vmatpush1.msra.mxu0 0.0
    %4303 = vmatprep.subr.mxu0 0.0
    %4304 = vmatpush1.msra.mxu0 0.0
    %4305 = vmatprep.subr.mxu0 0.0
    %4306 = vmatpush1.msra.mxu0 0.0
    %4307 = vmatprep.subr.mxu0 0.0
    %4308 = vmatpush1.msra.mxu0 0.0
    %4309 = vmatprep.subr.mxu0 0.0
    %4310 = vmatpush1.msra.mxu0 0.0
    %4311 = vmatprep.subr.mxu0 0.0
    %4312 = vmatpush1.msra.mxu0 0.0
    %4313 = vmatprep.subr.mxu0 0.0
    %4314 = vmatpush1.msra.mxu0 0.0
    %4315 = vmatprep.subr.mxu0 0.0
    %4316 = vmatpush1.msra.mxu0 0.0
    %4317 = vmatprep.subr.mxu0 0.0
    %4318 = vmatpush1.msra.mxu0 0.0
    %4319 = vmatprep.subr.mxu0 0.0
    %4320 = vmatpush1.msra.mxu0 0.0
    %4321 = vmatprep.subr.mxu0 0.0
    %4322 = vmatpush1.msra.mxu0 0.0
    %4323 = vmatprep.subr.mxu0 0.0
    %4324 = vmatpush1.msra.mxu0 0.0
    %4325 = vmatprep.subr.mxu0 0.0
    %4326 = vmatpush1.msra.mxu0 0.0
    %4327 = vmatprep.subr.mxu0 0.0
    %4328 = vmatpush1.msra.mxu0 0.0
    %4329 = vmatprep.subr.mxu0 0.0
    %4330 = vmatpush1.msra.mxu0 0.0
    %4331 = vmatprep.subr.mxu0 0.0
    %4332 = vmatpush1.msra.mxu0 0.0
    %4333 = vmatprep.subr.mxu0 0.0
    %4334 = vmatpush1.msra.mxu0 0.0
    %4335 = vmatprep.subr.mxu0 0.0
    %4336 = vmatpush1.msra.mxu0 0.0
    %4337 = vmatprep.subr.mxu0 0.0
    %4338 = vmatpush1.msra.mxu0 0.0
    %4339 = vmatprep.subr.mxu0 0.0
    %4340 = vmatpush1.msra.mxu0 0.0
    %4341 = vmatprep.subr.mxu0 0.0
    %4342 = vmatpush1.msra.mxu0 0.0
    %4343 = vmatprep.subr.mxu0 0.0
    %4344 = vmatpush1.msra.mxu0 0.0
    %4345 = vmatprep.subr.mxu0 0.0
    %4346 = vmatpush1.msra.mxu0 0.0
    %4347 = vmatprep.mubr.f32.mxu0 0.0
    %4348 = vmatmul.mubr.f32.gmra.mrb[0].mxu0 %v4281
    %v4349 = vpop.f32.mrb[0].mxu0
    %v4350 = vadd.f32 0.0, %v4349
    %v4351 = vpop.f32.mrb[0].mxu0
    %4352 = vdwg.mxu0
    %4353 = vmatprep.subr.mxu0 0.0
    %4354 = vmatpush1.msra.mxu0 %v2571
    %4355 = vmatprep.subr.mxu0 0.0
    %4356 = vmatpush1.msra.mxu0 %v2572
    %4357 = vmatprep.subr.mxu0 0.0
    %4358 = vmatpush1.msra.mxu0 %v2573
    %4359 = vmatprep.subr.mxu0 0.0
    %4360 = vmatpush1.msra.mxu0 %v2574
    %4361 = vmatprep.subr.mxu0 0.0
    %4362 = vmatpush1.msra.mxu0 0.0
    %4363 = vmatprep.subr.mxu0 0.0
    %4364 = vmatpush1.msra.mxu0 0.0
    %4365 = vmatprep.subr.mxu0 0.0
    %4366 = vmatpush1.msra.mxu0 0.0
    %4367 = vmatprep.subr.mxu0 0.0
    %4368 = vmatpush1.msra.mxu0 0.0
    %4369 = vmatprep.subr.mxu0 0.0
    %4370 = vmatpush1.msra.mxu0 0.0
    %4371 = vmatprep.subr.mxu0 0.0
    %4372 = vmatpush1.msra.mxu0 0.0
    %4373 = vmatprep.subr.mxu0 0.0
    %4374 = vmatpush1.msra.mxu0 0.0
    %4375 = vmatprep.subr.mxu0 0.0
    %4376 = vmatpush1.msra.mxu0 0.0
    %4377 = vmatprep.subr.mxu0 0.0
    %4378 = vmatpush1.msra.mxu0 0.0
    %4379 = vmatprep.subr.mxu0 0.0
    %4380 = vmatpush1.msra.mxu0 0.0
    %4381 = vmatprep.subr.mxu0 0.0
    %4382 = vmatpush1.msra.mxu0 0.0
    %4383 = vmatprep.subr.mxu0 0.0
    %4384 = vmatpush1.msra.mxu0 0.0
    %4385 = vmatprep.subr.mxu0 0.0
    %4386 = vmatpush1.msra.mxu0 0.0
    %4387 = vmatprep.subr.mxu0 0.0
    %4388 = vmatpush1.msra.mxu0 0.0
    %4389 = vmatprep.subr.mxu0 0.0
    %4390 = vmatpush1.msra.mxu0 0.0
    %4391 = vmatprep.subr.mxu0 0.0
    %4392 = vmatpush1.msra.mxu0 0.0
    %4393 = vmatprep.subr.mxu0 0.0
    %4394 = vmatpush1.msra.mxu0 0.0
    %4395 = vmatprep.subr.mxu0 0.0
    %4396 = vmatpush1.msra.mxu0 0.0
    %4397 = vmatprep.subr.mxu0 0.0
    %4398 = vmatpush1.msra.mxu0 0.0
    %4399 = vmatprep.subr.mxu0 0.0
    %4400 = vmatpush1.msra.mxu0 0.0
    %4401 = vmatprep.subr.mxu0 0.0
    %4402 = vmatpush1.msra.mxu0 0.0
    %4403 = vmatprep.subr.mxu0 0.0
    %4404 = vmatpush1.msra.mxu0 0.0
    %4405 = vmatprep.subr.mxu0 0.0
    %4406 = vmatpush1.msra.mxu0 0.0
    %4407 = vmatprep.subr.mxu0 0.0
    %4408 = vmatpush1.msra.mxu0 0.0
    %4409 = vmatprep.subr.mxu0 0.0
    %4410 = vmatpush1.msra.mxu0 0.0
    %4411 = vmatprep.subr.mxu0 0.0
    %4412 = vmatpush1.msra.mxu0 0.0
    %4413 = vmatprep.subr.mxu0 0.0
    %4414 = vmatpush1.msra.mxu0 0.0
    %4415 = vmatprep.subr.mxu0 0.0
    %4416 = vmatpush1.msra.mxu0 0.0
    %4417 = vmatprep.mubr.f32.mxu0 0.0
    %4418 = vmatmul.mubr.f32.gmra.mrb[0].mxu0 %v4281
    %v4419 = vpop.f32.mrb[0].mxu0
    %v4420 = vadd.f32 0.0, %v4419
    %v4421 = vpop.f32.mrb[0].mxu0
    %4422 = vdwg.mxu0
    %v4424 = vrot.slane %v4350, 2
    %v4426 = vadd.f32 %v2395, %v4424
    %v4427 = vxor.u32 %v4426, 2147483648
    %v4428 = vmul.f32 %v4427, 1.442695
    %v4429 = vpow.pop %v4428
    %v4430 = vadd.f32 %v4429, 1.0
    %v4431 = vrcp.pop %v4430
    %v4432 = vmul.f32 1.0, %v4431
    %v4434 = vrot.slane %v4420, 2
    %v4436 = vadd.f32 %v2479, %v4434
    %v4437 = vxor.u32 %v4436, 2147483648
    %v4438 = vmul.f32 %v4437, 1.442695
    %v4439 = vpow.pop %v4438
    %v4440 = vadd.f32 %v4439, 1.0
    %v4441 = vrcp.pop %v4440
    %v4442 = vmul.f32 1.0, %v4441
    %4443 = vmatprep.subr.mxu0 0.0
    %4444 = vmatpush1.msra.mxu0 %v2576
    %4445 = vmatprep.subr.mxu0 0.0
    %4446 = vmatpush1.msra.mxu0 %v2577
    %4447 = vmatprep.subr.mxu0 0.0
    %4448 = vmatpush1.msra.mxu0 %v2578
    %4449 = vmatprep.subr.mxu0 0.0
    %4450 = vmatpush1.msra.mxu0 %v2579
    %4451 = vmatprep.subr.mxu0 0.0
    %4452 = vmatpush1.msra.mxu0 0.0
    %4453 = vmatprep.subr.mxu0 0.0
    %4454 = vmatpush1.msra.mxu0 0.0
    %4455 = vmatprep.subr.mxu0 0.0
    %4456 = vmatpush1.msra.mxu0 0.0
    %4457 = vmatprep.subr.mxu0 0.0
    %4458 = vmatpush1.msra.mxu0 0.0
    %4459 = vmatprep.subr.mxu0 0.0
    %4460 = vmatpush1.msra.mxu0 0.0
    %4461 = vmatprep.subr.mxu0 0.0
    %4462 = vmatpush1.msra.mxu0 0.0
    %4463 = vmatprep.subr.mxu0 0.0
    %4464 = vmatpush1.msra.mxu0 0.0
    %4465 = vmatprep.subr.mxu0 0.0
    %4466 = vmatpush1.msra.mxu0 0.0
    %4467 = vmatprep.subr.mxu0 0.0
    %4468 = vmatpush1.msra.mxu0 0.0
    %4469 = vmatprep.subr.mxu0 0.0
    %4470 = vmatpush1.msra.mxu0 0.0
    %4471 = vmatprep.subr.mxu0 0.0
    %4472 = vmatpush1.msra.mxu0 0.0
    %4473 = vmatprep.subr.mxu0 0.0
    %4474 = vmatpush1.msra.mxu0 0.0
    %4475 = vmatprep.subr.mxu0 0.0
    %4476 = vmatpush1.msra.mxu0 0.0
    %4477 = vmatprep.subr.mxu0 0.0
    %4478 = vmatpush1.msra.mxu0 0.0
    %4479 = vmatprep.subr.mxu0 0.0
    %4480 = vmatpush1.msra.mxu0 0.0
    %4481 = vmatprep.subr.mxu0 0.0
    %4482 = vmatpush1.msra.mxu0 0.0
    %4483 = vmatprep.subr.mxu0 0.0
    %4484 = vmatpush1.msra.mxu0 0.0
    %4485 = vmatprep.subr.mxu0 0.0
    %4486 = vmatpush1.msra.mxu0 0.0
    %4487 = vmatprep.subr.mxu0 0.0
    %4488 = vmatpush1.msra.mxu0 0.0
    %4489 = vmatprep.subr.mxu0 0.0
    %4490 = vmatpush1.msra.mxu0 0.0
    %4491 = vmatprep.subr.mxu0 0.0
    %4492 = vmatpush1.msra.mxu0 0.0
    %4493 = vmatprep.subr.mxu0 0.0
    %4494 = vmatpush1.msra.mxu0 0.0
    %4495 = vmatprep.subr.mxu0 0.0
    %4496 = vmatpush1.msra.mxu0 0.0
    %4497 = vmatprep.subr.mxu0 0.0
    %4498 = vmatpush1.msra.mxu0 0.0
    %4499 = vmatprep.subr.mxu0 0.0
    %4500 = vmatpush1.msra.mxu0 0.0
    %4501 = vmatprep.subr.mxu0 0.0
    %4502 = vmatpush1.msra.mxu0 0.0
    %4503 = vmatprep.subr.mxu0 0.0
    %4504 = vmatpush1.msra.mxu0 0.0
    %4505 = vmatprep.subr.mxu0 0.0
    %4506 = vmatpush1.msra.mxu0 0.0
    %4507 = vmatprep.mubr.f32.mxu0 0.0
    %4508 = vmatmul.mubr.f32.gmra.mrb[0].mxu0 %v4281
    %v4509 = vpop.f32.mrb[0].mxu0
    %v4510 = vadd.f32 %v2583, %v4509
    %v4511 = vpop.f32.mrb[0].mxu0
    %4512 = vdwg.mxu0
    %v4514 = vrot.slane %v4510, 2
    %v4516 = vmul.f32 %v4432, %v4514
    %v4517 = vadd.f32 %v2563, %v4516
    %v4518 = vtanh.pop %v4517
    %v4519 = vsub.f32 1.0, %v4442
    %v4520 = vmul.f32 %v4519, %v4518
    %v4521 = vrot.slane %v4278, 6
    %v4523 = vmul.f32 %v4442, %v4521
    %v4524 = vadd.f32 %v4520, %v4523
    %v4525 = vld [vmem:[%s7] sm:$0xff]
    %v4526 = vld [vmem:[%s7 + $0x8] sm:$0xff]
    %v4527 = vld [vmem:[%s7 + $0x10] sm:$0xff]
    %v4528 = vld [vmem:[%s7 + $0x18] sm:$0xff]
    %v4529 = vld [vmem:[#allocation2] sm:$0x1]
    %v4531 = vlaneseq
    %v4532 = vshrl.u32 %v4531, 7
    %v4533 = vsub.s32 0, %v4532
    %v4534 = vrot.slane %v4529, %v4533
    %v4537 = vrot.slane %v4524, 6
    %v4538 = vsel %vm355, %v4537, 0
    %4540 = vmatprep.subr.mxu0 0.0
    %4541 = vmatpush1.msra.mxu0 %v4525
    %4542 = vmatprep.subr.mxu0 0.0
    %4543 = vmatpush1.msra.mxu0 %v4526
    %4544 = vmatprep.subr.mxu0 0.0
    %4545 = vmatpush1.msra.mxu0 %v4527
    %4546 = vmatprep.subr.mxu0 0.0
    %4547 = vmatpush1.msra.mxu0 %v4528
    %4548 = vmatprep.subr.mxu0 0.0
    %4549 = vmatpush1.msra.mxu0 0.0
    %4550 = vmatprep.subr.mxu0 0.0
    %4551 = vmatpush1.msra.mxu0 0.0
    %4552 = vmatprep.subr.mxu0 0.0
    %4553 = vmatpush1.msra.mxu0 0.0
    %4554 = vmatprep.subr.mxu0 0.0
    %4555 = vmatpush1.msra.mxu0 0.0
    %4556 = vmatprep.subr.mxu0 0.0
    %4557 = vmatpush1.msra.mxu0 0.0
    %4558 = vmatprep.subr.mxu0 0.0
    %4559 = vmatpush1.msra.mxu0 0.0
    %4560 = vmatprep.subr.mxu0 0.0
    %4561 = vmatpush1.msra.mxu0 0.0
    %4562 = vmatprep.subr.mxu0 0.0
    %4563 = vmatpush1.msra.mxu0 0.0
    %4564 = vmatprep.subr.mxu0 0.0
    %4565 = vmatpush1.msra.mxu0 0.0
    %4566 = vmatprep.subr.mxu0 0.0
    %4567 = vmatpush1.msra.mxu0 0.0
    %4568 = vmatprep.subr.mxu0 0.0
    %4569 = vmatpush1.msra.mxu0 0.0
    %4570 = vmatprep.subr.mxu0 0.0
    %4571 = vmatpush1.msra.mxu0 0.0
    %4572 = vmatprep.subr.mxu0 0.0
    %4573 = vmatpush1.msra.mxu0 0.0
    %4574 = vmatprep.subr.mxu0 0.0
    %4575 = vmatpush1.msra.mxu0 0.0
    %4576 = vmatprep.subr.mxu0 0.0
    %4577 = vmatpush1.msra.mxu0 0.0
    %4578 = vmatprep.subr.mxu0 0.0
    %4579 = vmatpush1.msra.mxu0 0.0
    %4580 = vmatprep.subr.mxu0 0.0
    %4581 = vmatpush1.msra.mxu0 0.0
    %4582 = vmatprep.subr.mxu0 0.0
    %4583 = vmatpush1.msra.mxu0 0.0
    %4584 = vmatprep.subr.mxu0 0.0
    %4585 = vmatpush1.msra.mxu0 0.0
    %4586 = vmatprep.subr.mxu0 0.0
    %4587 = vmatpush1.msra.mxu0 0.0
    %4588 = vmatprep.subr.mxu0 0.0
    %4589 = vmatpush1.msra.mxu0 0.0
    %4590 = vmatprep.subr.mxu0 0.0
    %4591 = vmatpush1.msra.mxu0 0.0
    %4592 = vmatprep.subr.mxu0 0.0
    %4593 = vmatpush1.msra.mxu0 0.0
    %4594 = vmatprep.subr.mxu0 0.0
    %4595 = vmatpush1.msra.mxu0 0.0
    %4596 = vmatprep.subr.mxu0 0.0
    %4597 = vmatpush1.msra.mxu0 0.0
    %4598 = vmatprep.subr.mxu0 0.0
    %4599 = vmatpush1.msra.mxu0 0.0
    %4600 = vmatprep.subr.mxu0 0.0
    %4601 = vmatpush1.msra.mxu0 0.0
    %4602 = vmatprep.subr.mxu0 0.0
    %4603 = vmatpush1.msra.mxu0 0.0
    %4604 = vmatprep.mubr.f32.mxu0 0.0
    %4605 = vmatmul.mubr.f32.gmra.mrb[0].mxu0 %v4538
    %v4606 = vpop.f32.mrb[0].mxu0
    %v4607 = vadd.f32 %v4534, %v4606
    %v4608 = vpop.f32.mrb[0].mxu0
    %4609 = vdwg.mxu0
    %vm4610 = vcmask 1024
    %4611 = vst.msk [vmem:[%s9] sm:$0x3] %vm4610, %v4607
    // Predicated region
    $region50: #{chl_predictor_forward.1} parent=1 // pred_check
      _
    $region51: #{chl_predictor_forward.1} parent=1 // pred_check_branch
      %4613 = sbr.rel (0) target = $region53
    $region52: #{chl_predictor_forward.1} parent=1 // pred_region
      _
    $region53: #{chl_predictor_forward.1} parent=1 // pred_fallthru
      _
    // Predicated region
    $region54: #{chl_predictor_forward.1} parent=1 // pred_check
      _
    $region55: #{chl_predictor_forward.1} parent=1 // pred_check_branch
      %4615 = sbr.rel (0) target = $region57
    $region56: #{chl_predictor_forward.1} parent=1 // pred_region
      _
    $region57: #{chl_predictor_forward.1} parent=1 // pred_fallthru
      _
    %4616 = vsyncpa [#allocation4], 1
    %4617 = vsyncpa [#allocation6], 1

</llo_original>
